<compile_context>
chip_gen: v7x
topology: tpu7x:2x2x1
jax: 0.10.0
libtpu: 0.0.40
codegen_flags: <defaults>
</compile_context>

<pallas_src>
import functools
from math import sqrt

import jax
import jax.numpy as jnp
from jax import lax
from jax.experimental import pallas as pl
from jax.experimental.pallas import tpu as pltpu


# ----------------------------------------------------------------------------
# Fused kernel: QKV projection + per-head attention + output linear.
# Grid: (B, num_q_tiles).  x is the full (S, E) row per batch; K/V are computed
# once per batch (pl.when qi == 0, chunked over S) into VMEM scratch and reused
# by every q tile.
# ----------------------------------------------------------------------------
def _fused_mha_kernel(x_ref, wq_ref, wk_ref, wv_ref, bq_ref, bk_ref, bv_ref,
                      wo_ref, bo_ref, o_ref, k_scr, v_scr,
                      *, num_heads, head_dim, q_tile, kv_chunk, n_kv_chunks,
                      approx_recip):
    qi = pl.program_id(1)
    cdt = wq_ref.dtype                      # matmul-operand (compute) dtype

    # ---- K / V projections for the full sequence, once per batch row --------
    # Chunked over S so only one (chunk, E) f32 accumulator is transiently live
    # (K chunk is stored to scratch before the V chunk is computed).
    @pl.when(qi == 0)
    def _():
        if n_kv_chunks == 1:
            xc = x_ref[0].astype(cdt)                                    # (S, E)
            k_scr[...] = (jnp.dot(xc, wk_ref[...],
                                  preferred_element_type=jnp.float32)
                          + bk_ref[...]).astype(k_scr.dtype)
            v_scr[...] = (jnp.dot(xc, wv_ref[...],
                                  preferred_element_type=jnp.float32)
                          + bv_ref[...]).astype(v_scr.dtype)
        else:
            def body(c, carry):
                start = pl.multiple_of(c * kv_chunk, kv_chunk)
                xc = x_ref[0, pl.ds(start, kv_chunk), :].astype(cdt)     # (ck, E)
                k = jnp.dot(xc, wk_ref[...],
                            preferred_element_type=jnp.float32) + bk_ref[...]
                k_scr[pl.ds(start, kv_chunk), :] = k.astype(k_scr.dtype)
                v = jnp.dot(xc, wv_ref[...],
                            preferred_element_type=jnp.float32) + bv_ref[...]
                v_scr[pl.ds(start, kv_chunk), :] = v.astype(v_scr.dtype)
                return carry
            lax.fori_loop(0, n_kv_chunks, body, 0)

    # ---- Q projection for this query tile (1/sqrt(Dh) pre-folded into Wq/bq) -
    qstart = pl.multiple_of(qi * q_tile, q_tile)
    xq = x_ref[0, pl.ds(qstart, q_tile), :].astype(cdt)                  # (tS, E)
    q = jnp.dot(xq, wq_ref[...], preferred_element_type=jnp.float32) + bq_ref[...]
    qc = q.astype(cdt)
    kc = k_scr[...]
    vc = v_scr[...]

    head_outs = []
    for h in range(num_heads):              # small static unroll over heads
        sl = slice(h * head_dim, (h + 1) * head_dim)
        qh = qc[:, sl]                      # (tS, Dh)
        kh = kc[:, sl]                      # (S,  Dh)
        vh = vc[:, sl]                      # (S,  Dh)
        # scores = qh @ kh.T without materializing a transposed copy of K.
        scores = lax.dot_general(qh, kh, (((1,), (1,)), ((), ())),
                                 preferred_element_type=jnp.float32)     # (tS, S)
        m = jnp.max(scores, axis=-1, keepdims=True)
        p = jnp.exp(scores - m)             # f32 exp (safe on v5e; v6e/v7x could
                                            # use a bf16 EUP path for huge S)
        denom = jnp.sum(p, axis=-1, keepdims=True)
        # Epilogue normalization: rescale the (tS, Dh) output, not the (tS, S)
        # probabilities (numerically identical row-wise linear rescale).
        oh = jnp.dot(p.astype(cdt), vh, preferred_element_type=jnp.float32)
        if approx_recip:
            oh = oh * pl.reciprocal(denom, approx=True)   # EUP slot, frees VALU
        else:
            oh = oh / denom                               # exact (f32 path)
        head_outs.append(oh)                              # (tS, Dh)

    # TODO(synk): when head_dim % 128 != 0 the per-head lane slices and this
    # concatenate force Mosaic relayouts; for large configs pad head_dim to 128
    # in the fused weight layout (zero columns) to keep lane slices aligned.
    concat = jnp.concatenate(head_outs, axis=-1)                         # (tS, E)

    # ---- fused output linear --------------------------------------------------
    y = jnp.dot(concat.astype(cdt), wo_ref[...],
                preferred_element_type=jnp.float32) + bo_ref[...]
    o_ref[0] = y.astype(o_ref.dtype)


# ----------------------------------------------------------------------------
# Tiling helpers
# ----------------------------------------------------------------------------
def _pick_q_tile(seq_len, compute_dtype, score_budget_bytes=8 << 20):
    """Largest MXU-friendly q tile that divides S, respects the packed-vreg
    minimum for the compute dtype, and keeps the f32 score intermediates
    (scores + p, ~2*tS*S*4 B) under budget.  Falls back to full S."""
    itemsize = jnp.dtype(compute_dtype).itemsize
    min_tile = 8 if itemsize >= 4 else (16 if itemsize == 2 else 32)
    candidates = [t for t in (1024, 512, 256, 128, 64, 32, 16, 8)
                  if t <= seq_len and seq_len % t == 0 and t % min_tile == 0]
    for t in candidates:
        if 2 * t * seq_len * 4 <= score_budget_bytes:
            return t
    return candidates[-1] if candidates else seq_len


def _pick_kv_chunk(seq_len):
    """K/V projection chunk: bounds the qi==0 f32 transients to chunk*E."""
    for t in (512, 256, 128, 64, 32, 16, 8):
        if t <= seq_len and seq_len % t == 0:
            return t
    return seq_len


def _vmem_cap_bytes():
    try:
        return int(pltpu.get_tpu_info().vmem_capacity_bytes) * 3 // 4
    except Exception:
        return 64 * 1024 * 1024   # conservative (v7x physical is 64 MiB)


# ----------------------------------------------------------------------------
# Parameter fusing (do once at parameter-load time, not per call)
# ----------------------------------------------------------------------------
def fuse_mha_params(params, compute_dtype=jnp.bfloat16):
    """Fold per-head weights into lane-dense (E, E) blocks, fold the
    1/sqrt(Dh) attention scale into Wq/bq, and cast to the compute dtype."""
    wq, wk, wv = params["wq"], params["wk"], params["wv"]
    bq, bk, bv = params["bq"], params["bk"], params["bv"]
    wo, bo = params["wo"], params["bo"]
    H, E, Dh = wq.shape
    assert H * Dh == E
    cdt = jnp.dtype(compute_dtype)
    scale = 1.0 / sqrt(float(Dh))

    def fuse_w(w):   # (H, E, Dh) -> (E, H*Dh), head-concatenated along lanes
        return jnp.transpose(w, (1, 0, 2)).reshape(E, E)

    def fuse_b(b):   # (H, 1, Dh) -> (1, H*Dh)
        return jnp.transpose(b, (1, 0, 2)).reshape(1, E)

    return {
        "wq": (fuse_w(wq) * scale).astype(cdt),
        "wk": fuse_w(wk).astype(cdt),
        "wv": fuse_w(wv).astype(cdt),
        "bq": (fuse_b(bq) * scale).astype(jnp.float32),
        "bk": fuse_b(bk).astype(jnp.float32),
        "bv": fuse_b(bv).astype(jnp.float32),
        "wo": wo.astype(cdt),
        "bo": bo.reshape(1, E).astype(jnp.float32),
        "num_heads": H,
        "head_dim": Dh,
        "embed_dim": E,
        "compute_dtype": cdt,
    }


# ----------------------------------------------------------------------------
# Wrapper
# ----------------------------------------------------------------------------
def multi_head_attention_fused(hidden_state, fused):
    """hidden_state: (B, S, E) in any float dtype (kept as-is in HBM; cast to
    the compute dtype inside the kernel).  fused: output of fuse_mha_params."""
    B, S, E = hidden_state.shape
    H, Dh = fused["num_heads"], fused["head_dim"]
    assert E == fused["embed_dim"]
    cdt = jnp.dtype(fused["compute_dtype"])
    approx_recip = cdt != jnp.dtype(jnp.float32)
    out_dtype = hidden_state.dtype

    tS = _pick_q_tile(S, cdt)
    nq = S // tS
    kvc = _pick_kv_chunk(S)

    kernel = functools.partial(_fused_mha_kernel, num_heads=H, head_dim=Dh,
                               q_tile=tS, kv_chunk=kvc, n_kv_chunks=S // kvc,
                               approx_recip=approx_recip)

    x_isz = jnp.dtype(hidden_state.dtype).itemsize
    o_isz = jnp.dtype(out_dtype).itemsize
    w_bytes = 4 * E * E * cdt.itemsize + 4 * E * 4
    flops = int(4 * 2 * B * S * E * E      # q/k/v projections + output linear
                + 4 * B * S * S * E)       # scores + p @ V (all heads)
    cost = pl.CostEstimate(
        flops=flops,
        transcendentals=int(B * H * S * S),
        bytes_accessed=int(B * S * E * x_isz + w_bytes + B * S * E * o_isz))

    def build(single_buffer_weights):
        wkw = {"pipeline_mode": pl.Buffered(1)} if single_buffer_weights else {}
        in_specs = [
            pl.BlockSpec((1, S, E), lambda b, qi: (b, 0, 0)),    # x (full row/batch)
            pl.BlockSpec((E, E), lambda b, qi: (0, 0), **wkw),   # Wq (scale folded)
            pl.BlockSpec((E, E), lambda b, qi: (0, 0), **wkw),   # Wk
            pl.BlockSpec((E, E), lambda b, qi: (0, 0), **wkw),   # Wv
            pl.BlockSpec((1, E), lambda b, qi: (0, 0), **wkw),   # bq
            pl.BlockSpec((1, E), lambda b, qi: (0, 0), **wkw),   # bk
            pl.BlockSpec((1, E), lambda b, qi: (0, 0), **wkw),   # bv
            pl.BlockSpec((E, E), lambda b, qi: (0, 0), **wkw),   # Wo
            pl.BlockSpec((1, E), lambda b, qi: (0, 0), **wkw),   # bo
        ]
        wbuf = 1 if single_buffer_weights else 2
        need = (2 * S * E * x_isz                 # x block, double-buffered
                + wbuf * w_bytes                  # fused weights + biases
                + 2 * S * E * cdt.itemsize        # K/V scratch
                + 2 * tS * E * o_isz              # out tile, double-buffered
                + 3 * tS * S * 4                  # f32 scores/p transients
                + 8 * tS * E * 4)                 # q/concat/misc transients
        vmem_limit = int(min(_vmem_cap_bytes(), max(need + (4 << 20), 32 << 20)))
        return pl.pallas_call(
            kernel,
            out_shape=jax.ShapeDtypeStruct((B, S, E), out_dtype),
            grid_spec=pltpu.PrefetchScalarGridSpec(
                num_scalar_prefetch=0,
                grid=(B, nq),
                in_specs=in_specs,
                out_specs=pl.BlockSpec((1, tS, E), lambda b, qi: (b, qi, 0)),
                scratch_shapes=[pltpu.VMEM((S, E), cdt),          # K scratch
                                pltpu.VMEM((S, E), cdt)],         # V scratch
            ),
            compiler_params=pltpu.CompilerParams(
                dimension_semantics=("parallel", "arbitrary"),
                vmem_limit_bytes=vmem_limit),
            cost_estimate=cost,
        )

    args = (hidden_state, fused["wq"], fused["wk"], fused["wv"],
            fused["bq"], fused["bk"], fused["bv"], fused["wo"], fused["bo"])
    try:
        return build(True)(*args)
    except Exception:
        # pipeline_mode=pl.Buffered(1) not supported by this JAX/backend combo:
        # fall back to default double-buffered weight blocks (correctness same).
        return build(False)(*args)


def multi_head_attention(hidden_state, params, *, compute_dtype=jnp.bfloat16):
    """Convenience wrapper: accepts either raw per-head params (PyTorch layout)
    or the output of fuse_mha_params (preferred for repeated calls)."""
    fused = params if "num_heads" in params else fuse_mha_params(params, compute_dtype)
    return multi_head_attention_fused(hidden_state, fused)


# ----------------------------------------------------------------------------
# Pure-JAX reference (mirrors the PyTorch forward exactly) for validation.
# ----------------------------------------------------------------------------
def multi_head_attention_ref(x, params):
    wq, wk, wv = params["wq"], params["wk"], params["wv"]
    bq, bk, bv = params["bq"], params["bk"], params["bv"]
    wo, bo = params["wo"], params["bo"]
    H, E, Dh = wq.shape
    head_outs = []
    for h in range(H):
        q = x @ wq[h] + bq[h]
        k = x @ wk[h] + bk[h]
        v = x @ wv[h] + bv[h]
        scores = jnp.einsum("bqd,bkd->bqk", q, k) / sqrt(float(Dh))
        w = jax.nn.softmax(scores, axis=-1)
        head_outs.append(jnp.einsum("bqk,bkd->bqd", w, v))
    concat = jnp.concatenate(head_outs, axis=-1)
    return concat @ wo + bo


if __name__ == "__main__":
    # Small, deterministic configuration.
    B, S, E, H = 2, 8, 32, 4
    Dh = E // H

    key = jax.random.PRNGKey(0)
    keys = jax.random.split(key, 10)
    scale = 1.0 / sqrt(float(E))

    params = {
        "wq": jax.random.uniform(keys[0], (H, E, Dh), jnp.float32, -scale, scale),
        "wk": jax.random.uniform(keys[1], (H, E, Dh), jnp.float32, -scale, scale),
        "wv": jax.random.uniform(keys[2], (H, E, Dh), jnp.float32, -scale, scale),
        "bq": jax.random.uniform(keys[3], (H, 1, Dh), jnp.float32, -scale, scale),
        "bk": jax.random.uniform(keys[4], (H, 1, Dh), jnp.float32, -scale, scale),
        "bv": jax.random.uniform(keys[5], (H, 1, Dh), jnp.float32, -scale, scale),
        "wo": jax.random.uniform(keys[6], (E, E), jnp.float32, -scale, scale),
        "bo": jax.random.uniform(keys[7], (1, E), jnp.float32, -scale, scale),
    }

    # --- exact f32 path: strict check against the PyTorch-equivalent reference
    x = jax.random.normal(keys[8], (B, S, E), jnp.float32)
    fused_f32 = fuse_mha_params(params, compute_dtype=jnp.float32)   # hoisted once
    out_f32 = jax.block_until_ready(multi_head_attention_fused(x, fused_f32))
    ref = multi_head_attention_ref(x, params)
    assert out_f32.shape == (B, S, E)
    assert jnp.allclose(out_f32, ref, atol=1e-5, rtol=1e-5), "f32 mismatch vs reference"

    # --- bf16-operand fast path (f32 accumulation); longer S exercises tiling
    S2 = 16
    x2 = jax.random.normal(keys[9], (B, S2, E), jnp.float32)
    fused_bf16 = fuse_mha_params(params, compute_dtype=jnp.bfloat16)
    out_bf16 = jax.block_until_ready(multi_head_attention_fused(x2, fused_bf16))
    ref2 = multi_head_attention_ref(x2, params)
    assert out_bf16.shape == (B, S2, E)
    rel_err = jnp.max(jnp.abs(out_bf16 - ref2)) / (jnp.max(jnp.abs(ref2)) + 1e-6)
    assert rel_err < 1e-1, f"bf16 path mismatch vs reference (rel err {rel_err})"

    print("KERNEL_OK")
</pallas_src>

<mosaic_0001>
module attributes {stable_mosaic.version = 11 : i64} {
  func.func @_fused_mha_kernel(%arg0: i32, %arg1: i32, %arg2: memref<1x8x32xf32, #tpu.memory_space<vmem>>, %arg3: memref<32x32xf32, #tpu.memory_space<vmem>>, %arg4: memref<32x32xf32, #tpu.memory_space<vmem>>, %arg5: memref<32x32xf32, #tpu.memory_space<vmem>>, %arg6: memref<1x32xf32, #tpu.memory_space<vmem>>, %arg7: memref<1x32xf32, #tpu.memory_space<vmem>>, %arg8: memref<1x32xf32, #tpu.memory_space<vmem>>, %arg9: memref<32x32xf32, #tpu.memory_space<vmem>>, %arg10: memref<1x32xf32, #tpu.memory_space<vmem>>, %arg11: memref<1x8x32xf32, #tpu.memory_space<vmem>>, %arg12: memref<8x32xf32, #tpu.memory_space<vmem>>, %arg13: memref<8x32xf32, #tpu.memory_space<vmem>>) attributes {dimension_semantics = [#tpu.dimension_semantics<parallel>, #tpu.dimension_semantics<arbitrary>], iteration_bounds = array<i64: 2, 1>, scalar_prefetch = 0 : i64, scratch_operands = 2 : i64, tpu.core_type = #tpu.core_type<tc>, window_params = [{transform_indices = @transform_0, window_bounds = array<i64: 1, 8, 32>}, {pipeline_mode = #tpu.pipeline_mode<synchronous>, transform_indices = @transform_1, window_bounds = array<i64: 32, 32>}, {pipeline_mode = #tpu.pipeline_mode<synchronous>, transform_indices = @transform_2, window_bounds = array<i64: 32, 32>}, {pipeline_mode = #tpu.pipeline_mode<synchronous>, transform_indices = @transform_3, window_bounds = array<i64: 32, 32>}, {pipeline_mode = #tpu.pipeline_mode<synchronous>, transform_indices = @transform_4, window_bounds = array<i64: 1, 32>}, {pipeline_mode = #tpu.pipeline_mode<synchronous>, transform_indices = @transform_5, window_bounds = array<i64: 1, 32>}, {pipeline_mode = #tpu.pipeline_mode<synchronous>, transform_indices = @transform_6, window_bounds = array<i64: 1, 32>}, {pipeline_mode = #tpu.pipeline_mode<synchronous>, transform_indices = @transform_7, window_bounds = array<i64: 32, 32>}, {pipeline_mode = #tpu.pipeline_mode<synchronous>, transform_indices = @transform_8, window_bounds = array<i64: 1, 32>}, {transform_indices = @transform_9, window_bounds = array<i64: 1, 8, 32>}]} {
    %c0_i32 = arith.constant 0 : i32
    %0 = arith.cmpi eq, %arg1, %c0_i32 : i32
    %1 = arith.extui %0 : i1 to i32
    %c0_i32_0 = arith.constant 0 : i32
    %2 = arith.cmpi ne, %1, %c0_i32_0 : i32
    scf.if %2 {
      %c0_34 = arith.constant 0 : index
      %c0_35 = arith.constant 0 : index
      %c0_36 = arith.constant 0 : index
      %80 = vector.load %arg2[%c0_34, %c0_35, %c0_36] : memref<1x8x32xf32, #tpu.memory_space<vmem>>, vector<1x8x32xf32>
      %81 = vector.shape_cast %80 : vector<1x8x32xf32> to vector<8x32xf32>
      %c0_37 = arith.constant 0 : index
      %c0_38 = arith.constant 0 : index
      %82 = vector.load %arg4[%c0_37, %c0_38] : memref<32x32xf32, #tpu.memory_space<vmem>>, vector<32x32xf32>
      %cst_39 = arith.constant dense<0.000000e+00> : vector<8x32xf32>
      %83 = tpu.matmul %81, %82, %cst_39 {dimension_numbers = #tpu.dot_dimension_numbers<[1], [0], [0], [1], [0, 0, 1, 1], [], []>} : vector<8x32xf32>, vector<32x32xf32>, vector<8x32xf32> -> vector<8x32xf32>
      %c0_40 = arith.constant 0 : index
      %c0_41 = arith.constant 0 : index
      %84 = vector.load %arg7[%c0_40, %c0_41] : memref<1x32xf32, #tpu.memory_space<vmem>>, vector<1x32xf32>
      %85 = vector.broadcast %84 : vector<1x32xf32> to vector<8x32xf32>
      %86 = arith.addf %83, %85 : vector<8x32xf32>
      %c0_42 = arith.constant 0 : index
      %c0_43 = arith.constant 0 : index
      %87 = vector.load %arg12[%c0_42, %c0_43] : memref<8x32xf32, #tpu.memory_space<vmem>>, vector<8x32xf32>
      tpu.vector_store %arg12[%c0_42, %c0_43], %86 {strides = array<i32>} : memref<8x32xf32, #tpu.memory_space<vmem>>, vector<8x32xf32>,
      %c0_44 = arith.constant 0 : index
      %c0_45 = arith.constant 0 : index
      %88 = vector.load %arg5[%c0_44, %c0_45] : memref<32x32xf32, #tpu.memory_space<vmem>>, vector<32x32xf32>
      %cst_46 = arith.constant dense<0.000000e+00> : vector<8x32xf32>
      %89 = tpu.matmul %81, %88, %cst_46 {dimension_numbers = #tpu.dot_dimension_numbers<[1], [0], [0], [1], [0, 0, 1, 1], [], []>} : vector<8x32xf32>, vector<32x32xf32>, vector<8x32xf32> -> vector<8x32xf32>
      %c0_47 = arith.constant 0 : index
      %c0_48 = arith.constant 0 : index
      %90 = vector.load %arg8[%c0_47, %c0_48] : memref<1x32xf32, #tpu.memory_space<vmem>>, vector<1x32xf32>
      %91 = vector.broadcast %90 : vector<1x32xf32> to vector<8x32xf32>
      %92 = arith.addf %89, %91 : vector<8x32xf32>
      %c0_49 = arith.constant 0 : index
      %c0_50 = arith.constant 0 : index
      %93 = vector.load %arg13[%c0_49, %c0_50] : memref<8x32xf32, #tpu.memory_space<vmem>>, vector<8x32xf32>
      tpu.vector_store %arg13[%c0_49, %c0_50], %92 {strides = array<i32>} : memref<8x32xf32, #tpu.memory_space<vmem>>, vector<8x32xf32>,
    } else {
    }
    %c8_i32 = arith.constant 8 : i32
    %3 = arith.muli %arg1, %c8_i32 : i32
    %4 = tpu.assume_multiple %3, 8 : i32
    %c0 = arith.constant 0 : index
    %5 = arith.index_cast %4 : i32 to index
    %c0_1 = arith.constant 0 : index
    %6 = vector.load %arg2[%c0, %5, %c0_1] : memref<1x8x32xf32, #tpu.memory_space<vmem>>, vector<1x8x32xf32>
    %7 = vector.shape_cast %6 : vector<1x8x32xf32> to vector<8x32xf32>
    %c0_2 = arith.constant 0 : index
    %c0_3 = arith.constant 0 : index
    %8 = vector.load %arg3[%c0_2, %c0_3] : memref<32x32xf32, #tpu.memory_space<vmem>>, vector<32x32xf32>
    %cst = arith.constant dense<0.000000e+00> : vector<8x32xf32>
    %9 = tpu.matmul %7, %8, %cst {dimension_numbers = #tpu.dot_dimension_numbers<[1], [0], [0], [1], [0, 0, 1, 1], [], []>} : vector<8x32xf32>, vector<32x32xf32>, vector<8x32xf32> -> vector<8x32xf32>
    %c0_4 = arith.constant 0 : index
    %c0_5 = arith.constant 0 : index
    %10 = vector.load %arg6[%c0_4, %c0_5] : memref<1x32xf32, #tpu.memory_space<vmem>>, vector<1x32xf32>
    %11 = vector.broadcast %10 : vector<1x32xf32> to vector<8x32xf32>
    %12 = arith.addf %9, %11 : vector<8x32xf32>
    %c0_6 = arith.constant 0 : index
    %c0_7 = arith.constant 0 : index
    %13 = vector.load %arg12[%c0_6, %c0_7] : memref<8x32xf32, #tpu.memory_space<vmem>>, vector<8x32xf32>
    %c0_8 = arith.constant 0 : index
    %c0_9 = arith.constant 0 : index
    %14 = vector.load %arg13[%c0_8, %c0_9] : memref<8x32xf32, #tpu.memory_space<vmem>>, vector<8x32xf32>
    %15 = vector.extract_strided_slice %12 {offsets = [0, 0], sizes = [8, 8], strides = [1, 1]} : vector<8x32xf32> to vector<8x8xf32>
    %16 = vector.extract_strided_slice %13 {offsets = [0, 0], sizes = [8, 8], strides = [1, 1]} : vector<8x32xf32> to vector<8x8xf32>
    %17 = vector.extract_strided_slice %14 {offsets = [0, 0], sizes = [8, 8], strides = [1, 1]} : vector<8x32xf32> to vector<8x8xf32>
    %cst_10 = arith.constant dense<0.000000e+00> : vector<8x8xf32>
    %18 = tpu.matmul %15, %16, %cst_10 {dimension_numbers = #tpu.dot_dimension_numbers<[1], [1], [0], [0], [0, 0, 1, 0], [], []>} : vector<8x8xf32>, vector<8x8xf32>, vector<8x8xf32> -> vector<8x8xf32>
    %cst_11 = arith.constant dense<0xFF800000> : vector<8xf32>
    %19 = vector.multi_reduction <maximumf>, %18, %cst_11 [1] : vector<8x8xf32> to vector<8xf32>
    %20 = vector.shape_cast %19 : vector<8xf32> to vector<8x1xf32>
    %21 = vector.broadcast %20 : vector<8x1xf32> to vector<8x8xf32>
    %22 = arith.subf %18, %21 : vector<8x8xf32>
    %23 = math.exp %22 : vector<8x8xf32>
    %cst_12 = arith.constant dense<0.000000e+00> : vector<8xf32>
    %24 = vector.multi_reduction <add>, %23, %cst_12 [1] : vector<8x8xf32> to vector<8xf32>
    %25 = vector.shape_cast %24 : vector<8xf32> to vector<8x1xf32>
    %cst_13 = arith.constant dense<0.000000e+00> : vector<8x8xf32>
    %26 = tpu.matmul %23, %17, %cst_13 {dimension_numbers = #tpu.dot_dimension_numbers<[1], [0], [0], [1], [0, 0, 1, 1], [], []>} : vector<8x8xf32>, vector<8x8xf32>, vector<8x8xf32> -> vector<8x8xf32>
    %27 = vector.broadcast %25 : vector<8x1xf32> to vector<8x8xf32>
    %28 = arith.divf %26, %27 : vector<8x8xf32>
    %29 = vector.extract_strided_slice %12 {offsets = [0, 8], sizes = [8, 8], strides = [1, 1]} : vector<8x32xf32> to vector<8x8xf32>
    %30 = vector.extract_strided_slice %13 {offsets = [0, 8], sizes = [8, 8], strides = [1, 1]} : vector<8x32xf32> to vector<8x8xf32>
    %31 = vector.extract_strided_slice %14 {offsets = [0, 8], sizes = [8, 8], strides = [1, 1]} : vector<8x32xf32> to vector<8x8xf32>
    %cst_14 = arith.constant dense<0.000000e+00> : vector<8x8xf32>
    %32 = tpu.matmul %29, %30, %cst_14 {dimension_numbers = #tpu.dot_dimension_numbers<[1], [1], [0], [0], [0, 0, 1, 0], [], []>} : vector<8x8xf32>, vector<8x8xf32>, vector<8x8xf32> -> vector<8x8xf32>
    %cst_15 = arith.constant dense<0xFF800000> : vector<8xf32>
    %33 = vector.multi_reduction <maximumf>, %32, %cst_15 [1] : vector<8x8xf32> to vector<8xf32>
    %34 = vector.shape_cast %33 : vector<8xf32> to vector<8x1xf32>
    %35 = vector.broadcast %34 : vector<8x1xf32> to vector<8x8xf32>
    %36 = arith.subf %32, %35 : vector<8x8xf32>
    %37 = math.exp %36 : vector<8x8xf32>
    %cst_16 = arith.constant dense<0.000000e+00> : vector<8xf32>
    %38 = vector.multi_reduction <add>, %37, %cst_16 [1] : vector<8x8xf32> to vector<8xf32>
    %39 = vector.shape_cast %38 : vector<8xf32> to vector<8x1xf32>
    %cst_17 = arith.constant dense<0.000000e+00> : vector<8x8xf32>
    %40 = tpu.matmul %37, %31, %cst_17 {dimension_numbers = #tpu.dot_dimension_numbers<[1], [0], [0], [1], [0, 0, 1, 1], [], []>} : vector<8x8xf32>, vector<8x8xf32>, vector<8x8xf32> -> vector<8x8xf32>
    %41 = vector.broadcast %39 : vector<8x1xf32> to vector<8x8xf32>
    %42 = arith.divf %40, %41 : vector<8x8xf32>
    %43 = vector.extract_strided_slice %12 {offsets = [0, 16], sizes = [8, 8], strides = [1, 1]} : vector<8x32xf32> to vector<8x8xf32>
    %44 = vector.extract_strided_slice %13 {offsets = [0, 16], sizes = [8, 8], strides = [1, 1]} : vector<8x32xf32> to vector<8x8xf32>
    %45 = vector.extract_strided_slice %14 {offsets = [0, 16], sizes = [8, 8], strides = [1, 1]} : vector<8x32xf32> to vector<8x8xf32>
    %cst_18 = arith.constant dense<0.000000e+00> : vector<8x8xf32>
    %46 = tpu.matmul %43, %44, %cst_18 {dimension_numbers = #tpu.dot_dimension_numbers<[1], [1], [0], [0], [0, 0, 1, 0], [], []>} : vector<8x8xf32>, vector<8x8xf32>, vector<8x8xf32> -> vector<8x8xf32>
    %cst_19 = arith.constant dense<0xFF800000> : vector<8xf32>
    %47 = vector.multi_reduction <maximumf>, %46, %cst_19 [1] : vector<8x8xf32> to vector<8xf32>
    %48 = vector.shape_cast %47 : vector<8xf32> to vector<8x1xf32>
    %49 = vector.broadcast %48 : vector<8x1xf32> to vector<8x8xf32>
    %50 = arith.subf %46, %49 : vector<8x8xf32>
    %51 = math.exp %50 : vector<8x8xf32>
    %cst_20 = arith.constant dense<0.000000e+00> : vector<8xf32>
    %52 = vector.multi_reduction <add>, %51, %cst_20 [1] : vector<8x8xf32> to vector<8xf32>
    %53 = vector.shape_cast %52 : vector<8xf32> to vector<8x1xf32>
    %cst_21 = arith.constant dense<0.000000e+00> : vector<8x8xf32>
    %54 = tpu.matmul %51, %45, %cst_21 {dimension_numbers = #tpu.dot_dimension_numbers<[1], [0], [0], [1], [0, 0, 1, 1], [], []>} : vector<8x8xf32>, vector<8x8xf32>, vector<8x8xf32> -> vector<8x8xf32>
    %55 = vector.broadcast %53 : vector<8x1xf32> to vector<8x8xf32>
    %56 = arith.divf %54, %55 : vector<8x8xf32>
    %57 = vector.extract_strided_slice %12 {offsets = [0, 24], sizes = [8, 8], strides = [1, 1]} : vector<8x32xf32> to vector<8x8xf32>
    %58 = vector.extract_strided_slice %13 {offsets = [0, 24], sizes = [8, 8], strides = [1, 1]} : vector<8x32xf32> to vector<8x8xf32>
    %59 = vector.extract_strided_slice %14 {offsets = [0, 24], sizes = [8, 8], strides = [1, 1]} : vector<8x32xf32> to vector<8x8xf32>
    %cst_22 = arith.constant dense<0.000000e+00> : vector<8x8xf32>
    %60 = tpu.matmul %57, %58, %cst_22 {dimension_numbers = #tpu.dot_dimension_numbers<[1], [1], [0], [0], [0, 0, 1, 0], [], []>} : vector<8x8xf32>, vector<8x8xf32>, vector<8x8xf32> -> vector<8x8xf32>
    %cst_23 = arith.constant dense<0xFF800000> : vector<8xf32>
    %61 = vector.multi_reduction <maximumf>, %60, %cst_23 [1] : vector<8x8xf32> to vector<8xf32>
    %62 = vector.shape_cast %61 : vector<8xf32> to vector<8x1xf32>
    %63 = vector.broadcast %62 : vector<8x1xf32> to vector<8x8xf32>
    %64 = arith.subf %60, %63 : vector<8x8xf32>
    %65 = math.exp %64 : vector<8x8xf32>
    %cst_24 = arith.constant dense<0.000000e+00> : vector<8xf32>
    %66 = vector.multi_reduction <add>, %65, %cst_24 [1] : vector<8x8xf32> to vector<8xf32>
    %67 = vector.shape_cast %66 : vector<8xf32> to vector<8x1xf32>
    %cst_25 = arith.constant dense<0.000000e+00> : vector<8x8xf32>
    %68 = tpu.matmul %65, %59, %cst_25 {dimension_numbers = #tpu.dot_dimension_numbers<[1], [0], [0], [1], [0, 0, 1, 1], [], []>} : vector<8x8xf32>, vector<8x8xf32>, vector<8x8xf32> -> vector<8x8xf32>
    %69 = vector.broadcast %67 : vector<8x1xf32> to vector<8x8xf32>
    %70 = arith.divf %68, %69 : vector<8x8xf32>
    %71 = tpu.concatenate %28, %42, %56, %70 in 1 : vector<8x8xf32>, vector<8x8xf32>, vector<8x8xf32>, vector<8x8xf32> -> vector<8x32xf32>
    %c0_26 = arith.constant 0 : index
    %c0_27 = arith.constant 0 : index
    %72 = vector.load %arg9[%c0_26, %c0_27] : memref<32x32xf32, #tpu.memory_space<vmem>>, vector<32x32xf32>
    %cst_28 = arith.constant dense<0.000000e+00> : vector<8x32xf32>
    %73 = tpu.matmul %71, %72, %cst_28 {dimension_numbers = #tpu.dot_dimension_numbers<[1], [0], [0], [1], [0, 0, 1, 1], [], []>} : vector<8x32xf32>, vector<32x32xf32>, vector<8x32xf32> -> vector<8x32xf32>
    %c0_29 = arith.constant 0 : index
    %c0_30 = arith.constant 0 : index
    %74 = vector.load %arg10[%c0_29, %c0_30] : memref<1x32xf32, #tpu.memory_space<vmem>>, vector<1x32xf32>
    %75 = vector.broadcast %74 : vector<1x32xf32> to vector<8x32xf32>
    %76 = arith.addf %73, %75 : vector<8x32xf32>
    %c0_31 = arith.constant 0 : index
    %c0_32 = arith.constant 0 : index
    %c0_33 = arith.constant 0 : index
    %77 = vector.load %arg11[%c0_31, %c0_32, %c0_33] : memref<1x8x32xf32, #tpu.memory_space<vmem>>, vector<1x8x32xf32>
    %78 = vector.shape_cast %77 : vector<1x8x32xf32> to vector<8x32xf32>
    %79 = vector.shape_cast %76 : vector<8x32xf32> to vector<1x8x32xf32>
    tpu.vector_store %arg11[%c0_31, %c0_32, %c0_33], %79 {strides = array<i32>} : memref<1x8x32xf32, #tpu.memory_space<vmem>>, vector<1x8x32xf32>,
    return
  }
  func.func @transform_0(%arg0: i32, %arg1: i32) -> (i32, i32, i32) {
    %c0_i32 = arith.constant 0 : i32
    %c0_i32_0 = arith.constant 0 : i32
    %c0_i32_1 = arith.constant 0 : i32
    return %arg0, %c0_i32, %c0_i32_0 : i32, i32, i32
  }
  func.func @transform_1(%arg0: i32, %arg1: i32) -> (i32, i32) {
    %c0_i32 = arith.constant 0 : i32
    %c0_i32_0 = arith.constant 0 : i32
    %c0_i32_1 = arith.constant 0 : i32
    return %c0_i32, %c0_i32_0 : i32, i32
  }
  func.func @transform_2(%arg0: i32, %arg1: i32) -> (i32, i32) {
    %c0_i32 = arith.constant 0 : i32
    %c0_i32_0 = arith.constant 0 : i32
    %c0_i32_1 = arith.constant 0 : i32
    return %c0_i32, %c0_i32_0 : i32, i32
  }
  func.func @transform_3(%arg0: i32, %arg1: i32) -> (i32, i32) {
    %c0_i32 = arith.constant 0 : i32
    %c0_i32_0 = arith.constant 0 : i32
    %c0_i32_1 = arith.constant 0 : i32
    return %c0_i32, %c0_i32_0 : i32, i32
  }
  func.func @transform_4(%arg0: i32, %arg1: i32) -> (i32, i32) {
    %c0_i32 = arith.constant 0 : i32
    %c0_i32_0 = arith.constant 0 : i32
    %c0_i32_1 = arith.constant 0 : i32
    return %c0_i32, %c0_i32_0 : i32, i32
  }
  func.func @transform_5(%arg0: i32, %arg1: i32) -> (i32, i32) {
    %c0_i32 = arith.constant 0 : i32
    %c0_i32_0 = arith.constant 0 : i32
    %c0_i32_1 = arith.constant 0 : i32
    return %c0_i32, %c0_i32_0 : i32, i32
  }
  func.func @transform_6(%arg0: i32, %arg1: i32) -> (i32, i32) {
    %c0_i32 = arith.constant 0 : i32
    %c0_i32_0 = arith.constant 0 : i32
    %c0_i32_1 = arith.constant 0 : i32
    return %c0_i32, %c0_i32_0 : i32, i32
  }
  func.func @transform_7(%arg0: i32, %arg1: i32) -> (i32, i32) {
    %c0_i32 = arith.constant 0 : i32
    %c0_i32_0 = arith.constant 0 : i32
    %c0_i32_1 = arith.constant 0 : i32
    return %c0_i32, %c0_i32_0 : i32, i32
  }
  func.func @transform_8(%arg0: i32, %arg1: i32) -> (i32, i32) {
    %c0_i32 = arith.constant 0 : i32
    %c0_i32_0 = arith.constant 0 : i32
    %c0_i32_1 = arith.constant 0 : i32
    return %c0_i32, %c0_i32_0 : i32, i32
  }
  func.func @transform_9(%arg0: i32, %arg1: i32) -> (i32, i32, i32) {
    %c0_i32 = arith.constant 0 : i32
    %c0_i32_0 = arith.constant 0 : i32
    return %arg0, %arg1, %c0_i32 : i32, i32, i32
  }
}

module attributes {stable_mosaic.version = 11 : i64} {
  func.func @_fused_mha_kernel(%arg0: i32, %arg1: i32, %arg2: memref<1x8x32xf32, #tpu.memory_space<vmem>>, %arg3: memref<32x32xf32, #tpu.memory_space<vmem>>, %arg4: memref<32x32xf32, #tpu.memory_space<vmem>>, %arg5: memref<32x32xf32, #tpu.memory_space<vmem>>, %arg6: memref<1x32xf32, #tpu.memory_space<vmem>>, %arg7: memref<1x32xf32, #tpu.memory_space<vmem>>, %arg8: memref<1x32xf32, #tpu.memory_space<vmem>>, %arg9: memref<32x32xf32, #tpu.memory_space<vmem>>, %arg10: memref<1x32xf32, #tpu.memory_space<vmem>>, %arg11: memref<1x8x32xf32, #tpu.memory_space<vmem>>, %arg12: memref<8x32xf32, #tpu.memory_space<vmem>>, %arg13: memref<8x32xf32, #tpu.memory_space<vmem>>) attributes {dimension_semantics = [#tpu.dimension_semantics<parallel>, #tpu.dimension_semantics<arbitrary>], iteration_bounds = array<i64: 2, 1>, scalar_prefetch = 0 : i64, scratch_operands = 2 : i64, tpu.core_type = #tpu.core_type<tc>, window_params = [{transform_indices = @transform_0, window_bounds = array<i64: 1, 8, 32>}, {pipeline_mode = #tpu.pipeline_mode<synchronous>, transform_indices = @transform_1, window_bounds = array<i64: 32, 32>}, {pipeline_mode = #tpu.pipeline_mode<synchronous>, transform_indices = @transform_2, window_bounds = array<i64: 32, 32>}, {pipeline_mode = #tpu.pipeline_mode<synchronous>, transform_indices = @transform_3, window_bounds = array<i64: 32, 32>}, {pipeline_mode = #tpu.pipeline_mode<synchronous>, transform_indices = @transform_4, window_bounds = array<i64: 1, 32>}, {pipeline_mode = #tpu.pipeline_mode<synchronous>, transform_indices = @transform_5, window_bounds = array<i64: 1, 32>}, {pipeline_mode = #tpu.pipeline_mode<synchronous>, transform_indices = @transform_6, window_bounds = array<i64: 1, 32>}, {pipeline_mode = #tpu.pipeline_mode<synchronous>, transform_indices = @transform_7, window_bounds = array<i64: 32, 32>}, {pipeline_mode = #tpu.pipeline_mode<synchronous>, transform_indices = @transform_8, window_bounds = array<i64: 1, 32>}, {transform_indices = @transform_9, window_bounds = array<i64: 1, 8, 32>}]} {
    %c0_i32 = arith.constant 0 : i32
    %0 = arith.cmpi eq, %arg1, %c0_i32 : i32
    %1 = arith.extui %0 : i1 to i32
    %c0_i32_0 = arith.constant 0 : i32
    %2 = arith.cmpi ne, %1, %c0_i32_0 : i32
    scf.if %2 {
      %c0_34 = arith.constant 0 : index
      %c0_35 = arith.constant 0 : index
      %c0_36 = arith.constant 0 : index
      %80 = vector.load %arg2[%c0_34, %c0_35, %c0_36] : memref<1x8x32xf32, #tpu.memory_space<vmem>>, vector<1x8x32xf32>
      %81 = vector.shape_cast %80 : vector<1x8x32xf32> to vector<8x32xf32>
      %c0_37 = arith.constant 0 : index
      %c0_38 = arith.constant 0 : index
      %82 = vector.load %arg4[%c0_37, %c0_38] : memref<32x32xf32, #tpu.memory_space<vmem>>, vector<32x32xf32>
      %cst_39 = arith.constant dense<0.000000e+00> : vector<8x32xf32>
      %83 = tpu.matmul %81, %82, %cst_39 {dimension_numbers = #tpu.dot_dimension_numbers<[1], [0], [0], [1], [0, 0, 1, 1], [], []>} : vector<8x32xf32>, vector<32x32xf32>, vector<8x32xf32> -> vector<8x32xf32>
      %c0_40 = arith.constant 0 : index
      %c0_41 = arith.constant 0 : index
      %84 = vector.load %arg7[%c0_40, %c0_41] : memref<1x32xf32, #tpu.memory_space<vmem>>, vector<1x32xf32>
      %85 = vector.broadcast %84 : vector<1x32xf32> to vector<8x32xf32>
      %86 = arith.addf %83, %85 : vector<8x32xf32>
      %c0_42 = arith.constant 0 : index
      %c0_43 = arith.constant 0 : index
      %87 = vector.load %arg12[%c0_42, %c0_43] : memref<8x32xf32, #tpu.memory_space<vmem>>, vector<8x32xf32>
      tpu.vector_store %arg12[%c0_42, %c0_43], %86 {strides = array<i32>} : memref<8x32xf32, #tpu.memory_space<vmem>>, vector<8x32xf32>,
      %c0_44 = arith.constant 0 : index
      %c0_45 = arith.constant 0 : index
      %88 = vector.load %arg5[%c0_44, %c0_45] : memref<32x32xf32, #tpu.memory_space<vmem>>, vector<32x32xf32>
      %cst_46 = arith.constant dense<0.000000e+00> : vector<8x32xf32>
      %89 = tpu.matmul %81, %88, %cst_46 {dimension_numbers = #tpu.dot_dimension_numbers<[1], [0], [0], [1], [0, 0, 1, 1], [], []>} : vector<8x32xf32>, vector<32x32xf32>, vector<8x32xf32> -> vector<8x32xf32>
      %c0_47 = arith.constant 0 : index
      %c0_48 = arith.constant 0 : index
      %90 = vector.load %arg8[%c0_47, %c0_48] : memref<1x32xf32, #tpu.memory_space<vmem>>, vector<1x32xf32>
      %91 = vector.broadcast %90 : vector<1x32xf32> to vector<8x32xf32>
      %92 = arith.addf %89, %91 : vector<8x32xf32>
      %c0_49 = arith.constant 0 : index
      %c0_50 = arith.constant 0 : index
      %93 = vector.load %arg13[%c0_49, %c0_50] : memref<8x32xf32, #tpu.memory_space<vmem>>, vector<8x32xf32>
      tpu.vector_store %arg13[%c0_49, %c0_50], %92 {strides = array<i32>} : memref<8x32xf32, #tpu.memory_space<vmem>>, vector<8x32xf32>,
    } else {
    }
    %c8_i32 = arith.constant 8 : i32
    %3 = arith.muli %arg1, %c8_i32 : i32
    %4 = tpu.assume_multiple %3, 8 : i32
    %c0 = arith.constant 0 : index
    %5 = arith.index_cast %4 : i32 to index
    %c0_1 = arith.constant 0 : index
    %6 = vector.load %arg2[%c0, %5, %c0_1] : memref<1x8x32xf32, #tpu.memory_space<vmem>>, vector<1x8x32xf32>
    %7 = vector.shape_cast %6 : vector<1x8x32xf32> to vector<8x32xf32>
    %c0_2 = arith.constant 0 : index
    %c0_3 = arith.constant 0 : index
    %8 = vector.load %arg3[%c0_2, %c0_3] : memref<32x32xf32, #tpu.memory_space<vmem>>, vector<32x32xf32>
    %cst = arith.constant dense<0.000000e+00> : vector<8x32xf32>
    %9 = tpu.matmul %7, %8, %cst {dimension_numbers = #tpu.dot_dimension_numbers<[1], [0], [0], [1], [0, 0, 1, 1], [], []>} : vector<8x32xf32>, vector<32x32xf32>, vector<8x32xf32> -> vector<8x32xf32>
    %c0_4 = arith.constant 0 : index
    %c0_5 = arith.constant 0 : index
    %10 = vector.load %arg6[%c0_4, %c0_5] : memref<1x32xf32, #tpu.memory_space<vmem>>, vector<1x32xf32>
    %11 = vector.broadcast %10 : vector<1x32xf32> to vector<8x32xf32>
    %12 = arith.addf %9, %11 : vector<8x32xf32>
    %c0_6 = arith.constant 0 : index
    %c0_7 = arith.constant 0 : index
    %13 = vector.load %arg12[%c0_6, %c0_7] : memref<8x32xf32, #tpu.memory_space<vmem>>, vector<8x32xf32>
    %c0_8 = arith.constant 0 : index
    %c0_9 = arith.constant 0 : index
    %14 = vector.load %arg13[%c0_8, %c0_9] : memref<8x32xf32, #tpu.memory_space<vmem>>, vector<8x32xf32>
    %15 = vector.extract_strided_slice %12 {offsets = [0, 0], sizes = [8, 8], strides = [1, 1]} : vector<8x32xf32> to vector<8x8xf32>
    %16 = vector.extract_strided_slice %13 {offsets = [0, 0], sizes = [8, 8], strides = [1, 1]} : vector<8x32xf32> to vector<8x8xf32>
    %17 = vector.extract_strided_slice %14 {offsets = [0, 0], sizes = [8, 8], strides = [1, 1]} : vector<8x32xf32> to vector<8x8xf32>
    %cst_10 = arith.constant dense<0.000000e+00> : vector<8x8xf32>
    %18 = tpu.matmul %15, %16, %cst_10 {dimension_numbers = #tpu.dot_dimension_numbers<[1], [1], [0], [0], [0, 0, 1, 0], [], []>} : vector<8x8xf32>, vector<8x8xf32>, vector<8x8xf32> -> vector<8x8xf32>
    %cst_11 = arith.constant dense<0xFF800000> : vector<8xf32>
    %19 = vector.multi_reduction <maximumf>, %18, %cst_11 [1] : vector<8x8xf32> to vector<8xf32>
    %20 = vector.shape_cast %19 : vector<8xf32> to vector<8x1xf32>
    %21 = vector.broadcast %20 : vector<8x1xf32> to vector<8x8xf32>
    %22 = arith.subf %18, %21 : vector<8x8xf32>
    %23 = math.exp %22 : vector<8x8xf32>
    %cst_12 = arith.constant dense<0.000000e+00> : vector<8xf32>
    %24 = vector.multi_reduction <add>, %23, %cst_12 [1] : vector<8x8xf32> to vector<8xf32>
    %25 = vector.shape_cast %24 : vector<8xf32> to vector<8x1xf32>
    %cst_13 = arith.constant dense<0.000000e+00> : vector<8x8xf32>
    %26 = tpu.matmul %23, %17, %cst_13 {dimension_numbers = #tpu.dot_dimension_numbers<[1], [0], [0], [1], [0, 0, 1, 1], [], []>} : vector<8x8xf32>, vector<8x8xf32>, vector<8x8xf32> -> vector<8x8xf32>
    %27 = vector.broadcast %25 : vector<8x1xf32> to vector<8x8xf32>
    %28 = arith.divf %26, %27 : vector<8x8xf32>
    %29 = vector.extract_strided_slice %12 {offsets = [0, 8], sizes = [8, 8], strides = [1, 1]} : vector<8x32xf32> to vector<8x8xf32>
    %30 = vector.extract_strided_slice %13 {offsets = [0, 8], sizes = [8, 8], strides = [1, 1]} : vector<8x32xf32> to vector<8x8xf32>
    %31 = vector.extract_strided_slice %14 {offsets = [0, 8], sizes = [8, 8], strides = [1, 1]} : vector<8x32xf32> to vector<8x8xf32>
    %cst_14 = arith.constant dense<0.000000e+00> : vector<8x8xf32>
    %32 = tpu.matmul %29, %30, %cst_14 {dimension_numbers = #tpu.dot_dimension_numbers<[1], [1], [0], [0], [0, 0, 1, 0], [], []>} : vector<8x8xf32>, vector<8x8xf32>, vector<8x8xf32> -> vector<8x8xf32>
    %cst_15 = arith.constant dense<0xFF800000> : vector<8xf32>
    %33 = vector.multi_reduction <maximumf>, %32, %cst_15 [1] : vector<8x8xf32> to vector<8xf32>
    %34 = vector.shape_cast %33 : vector<8xf32> to vector<8x1xf32>
    %35 = vector.broadcast %34 : vector<8x1xf32> to vector<8x8xf32>
    %36 = arith.subf %32, %35 : vector<8x8xf32>
    %37 = math.exp %36 : vector<8x8xf32>
    %cst_16 = arith.constant dense<0.000000e+00> : vector<8xf32>
    %38 = vector.multi_reduction <add>, %37, %cst_16 [1] : vector<8x8xf32> to vector<8xf32>
    %39 = vector.shape_cast %38 : vector<8xf32> to vector<8x1xf32>
    %cst_17 = arith.constant dense<0.000000e+00> : vector<8x8xf32>
    %40 = tpu.matmul %37, %31, %cst_17 {dimension_numbers = #tpu.dot_dimension_numbers<[1], [0], [0], [1], [0, 0, 1, 1], [], []>} : vector<8x8xf32>, vector<8x8xf32>, vector<8x8xf32> -> vector<8x8xf32>
    %41 = vector.broadcast %39 : vector<8x1xf32> to vector<8x8xf32>
    %42 = arith.divf %40, %41 : vector<8x8xf32>
    %43 = vector.extract_strided_slice %12 {offsets = [0, 16], sizes = [8, 8], strides = [1, 1]} : vector<8x32xf32> to vector<8x8xf32>
    %44 = vector.extract_strided_slice %13 {offsets = [0, 16], sizes = [8, 8], strides = [1, 1]} : vector<8x32xf32> to vector<8x8xf32>
    %45 = vector.extract_strided_slice %14 {offsets = [0, 16], sizes = [8, 8], strides = [1, 1]} : vector<8x32xf32> to vector<8x8xf32>
    %cst_18 = arith.constant dense<0.000000e+00> : vector<8x8xf32>
    %46 = tpu.matmul %43, %44, %cst_18 {dimension_numbers = #tpu.dot_dimension_numbers<[1], [1], [0], [0], [0, 0, 1, 0], [], []>} : vector<8x8xf32>, vector<8x8xf32>, vector<8x8xf32> -> vector<8x8xf32>
    %cst_19 = arith.constant dense<0xFF800000> : vector<8xf32>
    %47 = vector.multi_reduction <maximumf>, %46, %cst_19 [1] : vector<8x8xf32> to vector<8xf32>
    %48 = vector.shape_cast %47 : vector<8xf32> to vector<8x1xf32>
    %49 = vector.broadcast %48 : vector<8x1xf32> to vector<8x8xf32>
    %50 = arith.subf %46, %49 : vector<8x8xf32>
    %51 = math.exp %50 : vector<8x8xf32>
    %cst_20 = arith.constant dense<0.000000e+00> : vector<8xf32>
    %52 = vector.multi_reduction <add>, %51, %cst_20 [1] : vector<8x8xf32> to vector<8xf32>
    %53 = vector.shape_cast %52 : vector<8xf32> to vector<8x1xf32>
    %cst_21 = arith.constant dense<0.000000e+00> : vector<8x8xf32>
    %54 = tpu.matmul %51, %45, %cst_21 {dimension_numbers = #tpu.dot_dimension_numbers<[1], [0], [0], [1], [0, 0, 1, 1], [], []>} : vector<8x8xf32>, vector<8x8xf32>, vector<8x8xf32> -> vector<8x8xf32>
    %55 = vector.broadcast %53 : vector<8x1xf32> to vector<8x8xf32>
    %56 = arith.divf %54, %55 : vector<8x8xf32>
    %57 = vector.extract_strided_slice %12 {offsets = [0, 24], sizes = [8, 8], strides = [1, 1]} : vector<8x32xf32> to vector<8x8xf32>
    %58 = vector.extract_strided_slice %13 {offsets = [0, 24], sizes = [8, 8], strides = [1, 1]} : vector<8x32xf32> to vector<8x8xf32>
    %59 = vector.extract_strided_slice %14 {offsets = [0, 24], sizes = [8, 8], strides = [1, 1]} : vector<8x32xf32> to vector<8x8xf32>
    %cst_22 = arith.constant dense<0.000000e+00> : vector<8x8xf32>
    %60 = tpu.matmul %57, %58, %cst_22 {dimension_numbers = #tpu.dot_dimension_numbers<[1], [1], [0], [0], [0, 0, 1, 0], [], []>} : vector<8x8xf32>, vector<8x8xf32>, vector<8x8xf32> -> vector<8x8xf32>
    %cst_23 = arith.constant dense<0xFF800000> : vector<8xf32>
    %61 = vector.multi_reduction <maximumf>, %60, %cst_23 [1] : vector<8x8xf32> to vector<8xf32>
    %62 = vector.shape_cast %61 : vector<8xf32> to vector<8x1xf32>
    %63 = vector.broadcast %62 : vector<8x1xf32> to vector<8x8xf32>
    %64 = arith.subf %60, %63 : vector<8x8xf32>
    %65 = math.exp %64 : vector<8x8xf32>
    %cst_24 = arith.constant dense<0.000000e+00> : vector<8xf32>
    %66 = vector.multi_reduction <add>, %65, %cst_24 [1] : vector<8x8xf32> to vector<8xf32>
    %67 = vector.shape_cast %66 : vector<8xf32> to vector<8x1xf32>
    %cst_25 = arith.constant dense<0.000000e+00> : vector<8x8xf32>
    %68 = tpu.matmul %65, %59, %cst_25 {dimension_numbers = #tpu.dot_dimension_numbers<[1], [0], [0], [1], [0, 0, 1, 1], [], []>} : vector<8x8xf32>, vector<8x8xf32>, vector<8x8xf32> -> vector<8x8xf32>
    %69 = vector.broadcast %67 : vector<8x1xf32> to vector<8x8xf32>
    %70 = arith.divf %68, %69 : vector<8x8xf32>
    %71 = tpu.concatenate %28, %42, %56, %70 in 1 : vector<8x8xf32>, vector<8x8xf32>, vector<8x8xf32>, vector<8x8xf32> -> vector<8x32xf32>
    %c0_26 = arith.constant 0 : index
    %c0_27 = arith.constant 0 : index
    %72 = vector.load %arg9[%c0_26, %c0_27] : memref<32x32xf32, #tpu.memory_space<vmem>>, vector<32x32xf32>
    %cst_28 = arith.constant dense<0.000000e+00> : vector<8x32xf32>
    %73 = tpu.matmul %71, %72, %cst_28 {dimension_numbers = #tpu.dot_dimension_numbers<[1], [0], [0], [1], [0, 0, 1, 1], [], []>} : vector<8x32xf32>, vector<32x32xf32>, vector<8x32xf32> -> vector<8x32xf32>
    %c0_29 = arith.constant 0 : index
    %c0_30 = arith.constant 0 : index
    %74 = vector.load %arg10[%c0_29, %c0_30] : memref<1x32xf32, #tpu.memory_space<vmem>>, vector<1x32xf32>
    %75 = vector.broadcast %74 : vector<1x32xf32> to vector<8x32xf32>
    %76 = arith.addf %73, %75 : vector<8x32xf32>
    %c0_31 = arith.constant 0 : index
    %c0_32 = arith.constant 0 : index
    %c0_33 = arith.constant 0 : index
    %77 = vector.load %arg11[%c0_31, %c0_32, %c0_33] : memref<1x8x32xf32, #tpu.memory_space<vmem>>, vector<1x8x32xf32>
    %78 = vector.shape_cast %77 : vector<1x8x32xf32> to vector<8x32xf32>
    %79 = vector.shape_cast %76 : vector<8x32xf32> to vector<1x8x32xf32>
    tpu.vector_store %arg11[%c0_31, %c0_32, %c0_33], %79 {strides = array<i32>} : memref<1x8x32xf32, #tpu.memory_space<vmem>>, vector<1x8x32xf32>,
    return
  }
  func.func @transform_0(%arg0: i32, %arg1: i32) -> (i32, i32, i32) {
    %c0_i32 = arith.constant 0 : i32
    %c0_i32_0 = arith.constant 0 : i32
    %c0_i32_1 = arith.constant 0 : i32
    return %arg0, %c0_i32, %c0_i32_0 : i32, i32, i32
  }
  func.func @transform_1(%arg0: i32, %arg1: i32) -> (i32, i32) {
    %c0_i32 = arith.constant 0 : i32
    %c0_i32_0 = arith.constant 0 : i32
    %c0_i32_1 = arith.constant 0 : i32
    return %c0_i32, %c0_i32_0 : i32, i32
  }
  func.func @transform_2(%arg0: i32, %arg1: i32) -> (i32, i32) {
    %c0_i32 = arith.constant 0 : i32
    %c0_i32_0 = arith.constant 0 : i32
    %c0_i32_1 = arith.constant 0 : i32
    return %c0_i32, %c0_i32_0 : i32, i32
  }
  func.func @transform_3(%arg0: i32, %arg1: i32) -> (i32, i32) {
    %c0_i32 = arith.constant 0 : i32
    %c0_i32_0 = arith.constant 0 : i32
    %c0_i32_1 = arith.constant 0 : i32
    return %c0_i32, %c0_i32_0 : i32, i32
  }
  func.func @transform_4(%arg0: i32, %arg1: i32) -> (i32, i32) {
    %c0_i32 = arith.constant 0 : i32
    %c0_i32_0 = arith.constant 0 : i32
    %c0_i32_1 = arith.constant 0 : i32
    return %c0_i32, %c0_i32_0 : i32, i32
  }
  func.func @transform_5(%arg0: i32, %arg1: i32) -> (i32, i32) {
    %c0_i32 = arith.constant 0 : i32
    %c0_i32_0 = arith.constant 0 : i32
    %c0_i32_1 = arith.constant 0 : i32
    return %c0_i32, %c0_i32_0 : i32, i32
  }
  func.func @transform_6(%arg0: i32, %arg1: i32) -> (i32, i32) {
    %c0_i32 = arith.constant 0 : i32
    %c0_i32_0 = arith.constant 0 : i32
    %c0_i32_1 = arith.constant 0 : i32
    return %c0_i32, %c0_i32_0 : i32, i32
  }
  func.func @transform_7(%arg0: i32, %arg1: i32) -> (i32, i32) {
    %c0_i32 = arith.constant 0 : i32
    %c0_i32_0 = arith.constant 0 : i32
    %c0_i32_1 = arith.constant 0 : i32
    return %c0_i32, %c0_i32_0 : i32, i32
  }
  func.func @transform_8(%arg0: i32, %arg1: i32) -> (i32, i32) {
    %c0_i32 = arith.constant 0 : i32
    %c0_i32_0 = arith.constant 0 : i32
    %c0_i32_1 = arith.constant 0 : i32
    return %c0_i32, %c0_i32_0 : i32, i32
  }
  func.func @transform_9(%arg0: i32, %arg1: i32) -> (i32, i32, i32) {
    %c0_i32 = arith.constant 0 : i32
    %c0_i32_0 = arith.constant 0 : i32
    return %arg0, %arg1, %c0_i32 : i32, i32, i32
  }
}

</mosaic_0001>

<llo_original>
// kernel: tpu_custom_call.1
$region0: #{tpu_custom_call.1}
  #allocation0 [shape = 'u32[]', space=smem, size = 0x4, offset = 0x4, fixed_abs, tag = 'smem constant byte address 0x4 - core index']
  #allocation1 [shape = 'u32[144,128]{1,0:T(1,128)}', space=vmem, size = 0x12000, scoped, tag = 'internal scratch']
  #allocation2 [shape = 'f32[8,32]{1,0:T(8,128)}', space=vmem, size = 0x1000, scoped, tag = 'scratch operand']
  #allocation3 [shape = 'f32[8,32]{1,0:T(8,128)}', space=vmem, size = 0x1000, scoped, tag = 'scratch operand']
  %s0 = inlined_call_operand.hbm [shape: f32[2,8,32], index: 0, kind: input, shape index: {}]
  %s1 = inlined_call_operand.hbm [shape: f32[32,32], index: 1, kind: input, shape index: {}]
  %s2 = inlined_call_operand.hbm [shape: f32[32,32], index: 2, kind: input, shape index: {}]
  %s3 = inlined_call_operand.hbm [shape: f32[32,32], index: 3, kind: input, shape index: {}]
  %s4 = inlined_call_operand.vmem [shape: f32[1,32], index: 4, kind: input, shape index: {}]
  %s5 = inlined_call_operand.vmem [shape: f32[1,32], index: 5, kind: input, shape index: {}]
  %s6 = inlined_call_operand.vmem [shape: f32[1,32], index: 6, kind: input, shape index: {}]
  %s7 = inlined_call_operand.hbm [shape: f32[32,32], index: 7, kind: input, shape index: {}]
  %s8 = inlined_call_operand.vmem [shape: f32[1,32], index: 8, kind: input, shape index: {}]
  %s9 = inlined_call_operand.hbm [shape: f32[2,8,32], index: 9, kind: output, shape index: {}]
  %s10 = sld [smem:[#allocation0]]
  $region93: #{tpu_custom_call.1} parent=0
    _
  %s12 = ssub.s32 1, %s10
  %s13 = scalar_select 0, %s12, %s10
  $region1: #{tpu_custom_call.1} parent=0
    #allocation4 [shape = 'u8[8192]{0}', space=vmem, size = 0x2000, scoped, tag = 'input window, operand 0']
    #allocation5 [shape = 's32[2]{0}', space=sflag, size = 0x8, scoped, tag = 'scoped memory for tpu_custom_call.1']
    #allocation6 [shape = 's32[2]{0}', space=sflag, size = 0x8, scoped, tag = 'scoped memory for tpu_custom_call.1']
    #allocation7 [shape = 'u8[16384]{0}', space=vmem, size = 0x4000, scoped, tag = 'input window, operand 1, single buffered']
    #allocation8 [shape = 's32[1]{0}', space=sflag, size = 0x4, scoped, tag = 'scoped memory for tpu_custom_call.1']
    #allocation9 [shape = 'u8[16384]{0}', space=vmem, size = 0x4000, scoped, tag = 'input window, operand 2, single buffered']
    #allocation10 [shape = 'u8[16384]{0}', space=vmem, size = 0x4000, scoped, tag = 'input window, operand 3, single buffered']
    #allocation11 [shape = 's32[1]{0}', space=sflag, size = 0x4, scoped, tag = 'scoped memory for tpu_custom_call.1']
    #allocation12 [shape = 'u8[16384]{0}', space=vmem, size = 0x4000, scoped, tag = 'input window, operand 7, single buffered']
    #allocation13 [shape = 'u8[8192]{0}', space=vmem, size = 0x2000, scoped, tag = 'output window, operand 0']
    %14 = vsyncpa [#allocation5], 0
    %s15 = scalar_lea.sflag [#allocation5], 1
    %16 = vsyncpa %s15, 0
    %17 = vsyncpa [#allocation8], 0
    %18 = vsyncpa [#allocation11], 0
    %19 = vsyncpa [#allocation6], 0
    %s20 = scalar_lea.sflag [#allocation6], 1
    %21 = vsyncpa %s20, 0
    loop: start=0, step=1, limit=4
    $region2: #{tpu_custom_call.1} parent=1 // loop_pre_header
      _
    $region3: #{tpu_custom_call.1} parent=1 // loop_header
      %s23 = sphi 0, %s27
      %p24 = scmp.ge.s32.totalorder %s23, 4
      %s30 = sphi 0, %s42
      %s31 = sphi 0, %s38
      %s32 = sphi 0, %s30
      %s33 = sphi 0, %s31
      %s34 = sphi 0, %s32
      %s35 = sphi 0, %s33
      %s45 = sphi 0, %s47
      %s48 = sphi 0, %s45
      %s49 = sphi 0, %s48
      %s65 = sphi 0, %s49
      %s69 = sphi 0, %s69
      %s71 = sphi 0, %s69
      %s72 = sphi 0, %s71
      %s86 = sphi 0, %s72
      %s90 = sphi 0, %s90
      %s92 = sphi 0, %s90
      %s93 = sphi 0, %s92
      %s107 = sphi 0, %s93
      %s111 = sphi 0, %s111
      %s113 = sphi 0, %s111
      %s114 = sphi 0, %s113
      %s128 = sphi 0, %s114
      %s132 = sphi 0, %s132
      %s134 = sphi 0, %s132
      %s135 = sphi 0, %s134
      %s149 = sphi 0, %s135
      %s153 = sphi 0, %s153
      %s155 = sphi 0, %s153
      %s156 = sphi 0, %s155
      %s170 = sphi 0, %s156
      %s174 = sphi 0, %s174
      %s176 = sphi 0, %s174
      %s177 = sphi 0, %s176
      %s191 = sphi 0, %s177
      %s195 = sphi 0, %s195
      %s197 = sphi 0, %s195
      %s198 = sphi 0, %s197
      %s212 = sphi 0, %s198
      %s216 = sphi 0, %s216
      %s218 = sphi 0, %s216
      %s219 = sphi 0, %s218
      %s233 = sphi 0, %s219
      %s241 = sphi 0, %s243
      %s244 = sphi 0, %s241
      %s245 = sphi 0, %s244
      %s261 = sphi 0, %s245
    $region4: #{tpu_custom_call.1} parent=1 // loop_header_branch
      %26 = sbr.rel (%p24) target = $region8
    $region5: #{tpu_custom_call.1} parent=1 // loop_body
      %s28 = ssub.s32 %s23, 1
      %s29 = ssub.s32 %s23, 2
      %s36 = sadd.s32 1, %s31
      %p37 = scmp.ge.s32.totalorder %s36, 1
      %s38 = scalar_select %p37, 0, %s36
      %s39 = sadd.s32 1, %s30
      %s40 = scalar_select %p37, %s39, %s30
      %p41 = scmp.ge.s32.totalorder %s40, 2
      %s42 = scalar_select %p41, 0, %s40
      %s43 = ssub.s32 %s30, %s42
      %p44 = scmp.eq.s32.totalorder %s43, 0
      %s46 = sadd.s32 %s45, 1
      %s47 = scalar_select %p44, %s45, %s46
      %p50 = pneg %p44
      %p51 = scmp.eq.s32.totalorder %s23, 1
      %p52 = por %p50, %p51
      %p53 = scmp.ne.s32.totalorder %s45, %s48
      %p54 = scmp.eq.s32.totalorder %s23, 0
      %p55 = por %p53, %p54
      %p56 = scmp.ne.s32.totalorder %s45, %s48
      %p57 = scmp.eq.s32.totalorder %s28, 1
      %p58 = por %p56, %p57
      %p59 = scmp.ne.s32.totalorder %s48, %s49
      %p60 = scmp.eq.s32.totalorder %s28, 0
      %p61 = por %p59, %p60
      %p62 = scmp.ne.s32.totalorder %s48, %s49
      %p63 = scmp.eq.s32.totalorder %s29, 1
      %p64 = por %p62, %p63
      %p66 = scmp.ne.s32.totalorder %s49, %s65
      %p67 = scmp.eq.s32.totalorder %s29, 0
      %p68 = por %p66, %p67
      %s70 = sadd.s32 %s69, 1
      %p73 = scmp.eq.s32.totalorder %s23, 1
      %p74 = scmp.ne.s32.totalorder %s69, %s71
      %p75 = scmp.eq.s32.totalorder %s23, 0
      %p76 = por %p74, %p75
      %p77 = scmp.ne.s32.totalorder %s69, %s71
      %p78 = scmp.eq.s32.totalorder %s28, 1
      %p79 = por %p77, %p78
      %p80 = scmp.ne.s32.totalorder %s71, %s72
      %p81 = scmp.eq.s32.totalorder %s28, 0
      %p82 = por %p80, %p81
      %p83 = scmp.ne.s32.totalorder %s71, %s72
      %p84 = scmp.eq.s32.totalorder %s29, 1
      %p85 = por %p83, %p84
      %p87 = scmp.ne.s32.totalorder %s72, %s86
      %p88 = scmp.eq.s32.totalorder %s29, 0
      %p89 = por %p87, %p88
      %s91 = sadd.s32 %s90, 1
      %p94 = scmp.eq.s32.totalorder %s23, 1
      %p95 = scmp.ne.s32.totalorder %s90, %s92
      %p96 = scmp.eq.s32.totalorder %s23, 0
      %p97 = por %p95, %p96
      %p98 = scmp.ne.s32.totalorder %s90, %s92
      %p99 = scmp.eq.s32.totalorder %s28, 1
      %p100 = por %p98, %p99
      %p101 = scmp.ne.s32.totalorder %s92, %s93
      %p102 = scmp.eq.s32.totalorder %s28, 0
      %p103 = por %p101, %p102
      %p104 = scmp.ne.s32.totalorder %s92, %s93
      %p105 = scmp.eq.s32.totalorder %s29, 1
      %p106 = por %p104, %p105
      %p108 = scmp.ne.s32.totalorder %s93, %s107
      %p109 = scmp.eq.s32.totalorder %s29, 0
      %p110 = por %p108, %p109
      %s112 = sadd.s32 %s111, 1
      %p115 = scmp.eq.s32.totalorder %s23, 1
      %p116 = scmp.ne.s32.totalorder %s111, %s113
      %p117 = scmp.eq.s32.totalorder %s23, 0
      %p118 = por %p116, %p117
      %p119 = scmp.ne.s32.totalorder %s111, %s113
      %p120 = scmp.eq.s32.totalorder %s28, 1
      %p121 = por %p119, %p120
      %p122 = scmp.ne.s32.totalorder %s113, %s114
      %p123 = scmp.eq.s32.totalorder %s28, 0
      %p124 = por %p122, %p123
      %p125 = scmp.ne.s32.totalorder %s113, %s114
      %p126 = scmp.eq.s32.totalorder %s29, 1
      %p127 = por %p125, %p126
      %p129 = scmp.ne.s32.totalorder %s114, %s128
      %p130 = scmp.eq.s32.totalorder %s29, 0
      %p131 = por %p129, %p130
      %s133 = sadd.s32 %s132, 1
      %p136 = scmp.eq.s32.totalorder %s23, 1
      %p137 = scmp.ne.s32.totalorder %s132, %s134
      %p138 = scmp.eq.s32.totalorder %s23, 0
      %p139 = por %p137, %p138
      %p140 = scmp.ne.s32.totalorder %s132, %s134
      %p141 = scmp.eq.s32.totalorder %s28, 1
      %p142 = por %p140, %p141
      %p143 = scmp.ne.s32.totalorder %s134, %s135
      %p144 = scmp.eq.s32.totalorder %s28, 0
      %p145 = por %p143, %p144
      %p146 = scmp.ne.s32.totalorder %s134, %s135
      %p147 = scmp.eq.s32.totalorder %s29, 1
      %p148 = por %p146, %p147
      %p150 = scmp.ne.s32.totalorder %s135, %s149
      %p151 = scmp.eq.s32.totalorder %s29, 0
      %p152 = por %p150, %p151
      %s154 = sadd.s32 %s153, 1
      %p157 = scmp.eq.s32.totalorder %s23, 1
      %p158 = scmp.ne.s32.totalorder %s153, %s155
      %p159 = scmp.eq.s32.totalorder %s23, 0
      %p160 = por %p158, %p159
      %p161 = scmp.ne.s32.totalorder %s153, %s155
      %p162 = scmp.eq.s32.totalorder %s28, 1
      %p163 = por %p161, %p162
      %p164 = scmp.ne.s32.totalorder %s155, %s156
      %p165 = scmp.eq.s32.totalorder %s28, 0
      %p166 = por %p164, %p165
      %p167 = scmp.ne.s32.totalorder %s155, %s156
      %p168 = scmp.eq.s32.totalorder %s29, 1
      %p169 = por %p167, %p168
      %p171 = scmp.ne.s32.totalorder %s156, %s170
      %p172 = scmp.eq.s32.totalorder %s29, 0
      %p173 = por %p171, %p172
      %s175 = sadd.s32 %s174, 1
      %p178 = scmp.eq.s32.totalorder %s23, 1
      %p179 = scmp.ne.s32.totalorder %s174, %s176
      %p180 = scmp.eq.s32.totalorder %s23, 0
      %p181 = por %p179, %p180
      %p182 = scmp.ne.s32.totalorder %s174, %s176
      %p183 = scmp.eq.s32.totalorder %s28, 1
      %p184 = por %p182, %p183
      %p185 = scmp.ne.s32.totalorder %s176, %s177
      %p186 = scmp.eq.s32.totalorder %s28, 0
      %p187 = por %p185, %p186
      %p188 = scmp.ne.s32.totalorder %s176, %s177
      %p189 = scmp.eq.s32.totalorder %s29, 1
      %p190 = por %p188, %p189
      %p192 = scmp.ne.s32.totalorder %s177, %s191
      %p193 = scmp.eq.s32.totalorder %s29, 0
      %p194 = por %p192, %p193
      %s196 = sadd.s32 %s195, 1
      %p199 = scmp.eq.s32.totalorder %s23, 1
      %p200 = scmp.ne.s32.totalorder %s195, %s197
      %p201 = scmp.eq.s32.totalorder %s23, 0
      %p202 = por %p200, %p201
      %p203 = scmp.ne.s32.totalorder %s195, %s197
      %p204 = scmp.eq.s32.totalorder %s28, 1
      %p205 = por %p203, %p204
      %p206 = scmp.ne.s32.totalorder %s197, %s198
      %p207 = scmp.eq.s32.totalorder %s28, 0
      %p208 = por %p206, %p207
      %p209 = scmp.ne.s32.totalorder %s197, %s198
      %p210 = scmp.eq.s32.totalorder %s29, 1
      %p211 = por %p209, %p210
      %p213 = scmp.ne.s32.totalorder %s198, %s212
      %p214 = scmp.eq.s32.totalorder %s29, 0
      %p215 = por %p213, %p214
      %s217 = sadd.s32 %s216, 1
      %p220 = scmp.eq.s32.totalorder %s23, 1
      %p221 = scmp.ne.s32.totalorder %s216, %s218
      %p222 = scmp.eq.s32.totalorder %s23, 0
      %p223 = por %p221, %p222
      %p224 = scmp.ne.s32.totalorder %s216, %s218
      %p225 = scmp.eq.s32.totalorder %s28, 1
      %p226 = por %p224, %p225
      %p227 = scmp.ne.s32.totalorder %s218, %s219
      %p228 = scmp.eq.s32.totalorder %s28, 0
      %p229 = por %p227, %p228
      %p230 = scmp.ne.s32.totalorder %s218, %s219
      %p231 = scmp.eq.s32.totalorder %s29, 1
      %p232 = por %p230, %p231
      %p234 = scmp.ne.s32.totalorder %s219, %s233
      %p235 = scmp.eq.s32.totalorder %s29, 0
      %p236 = por %p234, %p235
      %s237 = ssub.s32 %s30, %s42
      %s238 = ssub.s32 %s31, %s38
      %s239 = sor.u32 %s237, %s238
      %p240 = scmp.eq.s32.totalorder %s239, 0
      %s242 = sadd.s32 %s241, 1
      %s243 = scalar_select %p240, %s241, %s242
      %p246 = pneg %p240
      %p247 = scmp.eq.s32.totalorder %s23, 1
      %p248 = por %p246, %p247
      %p249 = scmp.ne.s32.totalorder %s241, %s244
      %p250 = scmp.eq.s32.totalorder %s23, 0
      %p251 = por %p249, %p250
      %p252 = scmp.ne.s32.totalorder %s241, %s244
      %p253 = scmp.eq.s32.totalorder %s28, 1
      %p254 = por %p252, %p253
      %p255 = scmp.ne.s32.totalorder %s244, %s245
      %p256 = scmp.eq.s32.totalorder %s28, 0
      %p257 = por %p255, %p256
      %p258 = scmp.ne.s32.totalorder %s244, %s245
      %p259 = scmp.eq.s32.totalorder %s29, 1
      %p260 = por %p258, %p259
      %p262 = scmp.ne.s32.totalorder %s245, %s261
      %p263 = scmp.eq.s32.totalorder %s29, 0
      %p264 = por %p262, %p263
      %p265 = scmp.le.s32.totalorder 1, %s23
      %p266 = scmp.lt.s32.totalorder %s23, 3
      %p267 = pnand %p265, %p266
      %p268 = pneg %p267
      // Predicated region
      $region9: #{tpu_custom_call.1} parent=5 // pred_check
        _
      $region10: #{tpu_custom_call.1} parent=5 // pred_check_branch
        %270 = sbr.rel (%p267) target = $region12
      $region11: #{tpu_custom_call.1} parent=5 // pred_region
        %s271 = ssub.s32 %s23, 1
        // Predicated region
        $region13: #{tpu_custom_call.1} parent=11 // pred_check
          %p272 = pneg %p82
        $region14: #{tpu_custom_call.1} parent=11 // pred_check_branch
          %274 = sbr.rel (%p272) target = $region16
        $region15: #{tpu_custom_call.1} parent=11 // pred_region
          %s276 = ssub.s32 512, 512
          %277 = vsyncadd [#allocation8], %s276
          %s278 = sshll.u32 [#allocation7], 4
          %s279 = int_to_ptr.vmem [resolvable:$true] %s278
          %284 = dma.hbm_to_vmem [thread:$0]  %s1, 512, %s279, [#allocation8], 128, 128, 8
        $region16: #{tpu_custom_call.1} parent=11 // pred_fallthru
          _
        // Predicated region
        $region17: #{tpu_custom_call.1} parent=11 // pred_check
          %p285 = pneg %p103
        $region18: #{tpu_custom_call.1} parent=11 // pred_check_branch
          %287 = sbr.rel (%p285) target = $region20
        $region19: #{tpu_custom_call.1} parent=11 // pred_region
          %s289 = ssub.s32 512, 512
          %290 = vsyncadd [#allocation8], %s289
          %s291 = sshll.u32 [#allocation9], 4
          %s292 = int_to_ptr.vmem [resolvable:$true] %s291
          %297 = dma.hbm_to_vmem [thread:$0]  %s2, 512, %s292, [#allocation8], 128, 128, 8
        $region20: #{tpu_custom_call.1} parent=11 // pred_fallthru
          _
        // Predicated region
        $region21: #{tpu_custom_call.1} parent=11 // pred_check
          %p298 = pneg %p124
        $region22: #{tpu_custom_call.1} parent=11 // pred_check_branch
          %300 = sbr.rel (%p298) target = $region24
        $region23: #{tpu_custom_call.1} parent=11 // pred_region
          %s302 = ssub.s32 512, 512
          %303 = vsyncadd [#allocation11], %s302
          %s304 = sshll.u32 [#allocation10], 4
          %s305 = int_to_ptr.vmem [resolvable:$true] %s304
          %310 = dma.hbm_to_vmem [thread:$0]  %s3, 512, %s305, [#allocation11], 128, 128, 8
        $region24: #{tpu_custom_call.1} parent=11 // pred_fallthru
          _
        // Predicated region
        $region25: #{tpu_custom_call.1} parent=11 // pred_check
          %p311 = pneg %p145
        $region26: #{tpu_custom_call.1} parent=11 // pred_check_branch
          %313 = sbr.rel (%p311) target = $region28
        $region27: #{tpu_custom_call.1} parent=11 // pred_region
          _
        $region28: #{tpu_custom_call.1} parent=11 // pred_fallthru
          _
        // Predicated region
        $region29: #{tpu_custom_call.1} parent=11 // pred_check
          %p314 = pneg %p166
        $region30: #{tpu_custom_call.1} parent=11 // pred_check_branch
          %316 = sbr.rel (%p314) target = $region32
        $region31: #{tpu_custom_call.1} parent=11 // pred_region
          _
        $region32: #{tpu_custom_call.1} parent=11 // pred_fallthru
          _
        // Predicated region
        $region33: #{tpu_custom_call.1} parent=11 // pred_check
          %p317 = pneg %p187
        $region34: #{tpu_custom_call.1} parent=11 // pred_check_branch
          %319 = sbr.rel (%p317) target = $region36
        $region35: #{tpu_custom_call.1} parent=11 // pred_region
          _
        $region36: #{tpu_custom_call.1} parent=11 // pred_fallthru
          _
        // Predicated region
        $region37: #{tpu_custom_call.1} parent=11 // pred_check
          %p320 = pneg %p208
        $region38: #{tpu_custom_call.1} parent=11 // pred_check_branch
          %322 = sbr.rel (%p320) target = $region40
        $region39: #{tpu_custom_call.1} parent=11 // pred_region
          %s324 = ssub.s32 512, 512
          %325 = vsyncadd [#allocation11], %s324
          %s326 = sshll.u32 [#allocation12], 4
          %s327 = int_to_ptr.vmem [resolvable:$true] %s326
          %332 = dma.hbm_to_vmem [thread:$0]  %s7, 512, %s327, [#allocation11], 128, 128, 8
        $region40: #{tpu_custom_call.1} parent=11 // pred_fallthru
          _
        // Predicated region
        $region41: #{tpu_custom_call.1} parent=11 // pred_check
          %p333 = pneg %p229
        $region42: #{tpu_custom_call.1} parent=11 // pred_check_branch
          %335 = sbr.rel (%p333) target = $region44
        $region43: #{tpu_custom_call.1} parent=11 // pred_region
          _
        $region44: #{tpu_custom_call.1} parent=11 // pred_fallthru
          _
      $region12: #{tpu_custom_call.1} parent=5 // pred_fallthru
        _
      %p336 = scmp.lt.s32.totalorder %s23, 2
      // Predicated region
      $region45: #{tpu_custom_call.1} parent=5 // pred_check
        %p337 = pneg %p336
      $region46: #{tpu_custom_call.1} parent=5 // pred_check_branch
        %339 = sbr.rel (%p337) target = $region48
      $region47: #{tpu_custom_call.1} parent=5 // pred_region
        // Predicated region
        $region49: #{tpu_custom_call.1} parent=47 // pred_check
          %p340 = pneg %p55
        $region50: #{tpu_custom_call.1} parent=47 // pred_check_branch
          %342 = sbr.rel (%p340) target = $region52
        $region51: #{tpu_custom_call.1} parent=47 // pred_region
          %s343 = sand.u32 %s45, 1
          %s344 = scalar_lea.sflag [#allocation5], %s343
          %s345 = sand.u32 %s45, 1
          %s346 = smul.addr %s345, 8
          %s347 = scalar_lea.vmem [#allocation4], %s346
          %s349 = ssub.s32 128, 128
          %350 = vsyncadd %s344, %s349
          %s351 = smul.addr %s30, 128
          %s352 = scalar_lea.hbm %s0, %s351
          %s354 = sshll.u32 %s347, 4
          %s355 = int_to_ptr.vmem [resolvable:$true] %s354
          %357 = dma.hbm_to_vmem [thread:$0]  %s352, 128, %s355, %s344
        $region52: #{tpu_custom_call.1} parent=47 // pred_fallthru
          _
      $region48: #{tpu_custom_call.1} parent=5 // pred_fallthru
        _
      %p358 = scmp.le.s32.totalorder 1, %s23
      %p359 = scmp.lt.s32.totalorder %s23, 3
      %p360 = pnand %p358, %p359
      %p361 = pneg %p360
      // Predicated region
      $region53: #{tpu_custom_call.1} parent=5 // pred_check
        _
      $region54: #{tpu_custom_call.1} parent=5 // pred_check_branch
        %363 = sbr.rel (%p360) target = $region56
      $region55: #{tpu_custom_call.1} parent=5 // pred_region
        %s364 = ssub.s32 %s23, 1
        %s365 = sand.u32 %s48, 1
        %s366 = scalar_lea.sflag [#allocation5], %s365
        %s367 = sand.u32 %s48, 1
        %s368 = smul.addr %s367, 8
        %s369 = scalar_lea.vmem [#allocation4], %s368
        // Predicated region
        $region57: #{tpu_custom_call.1} parent=55 // pred_check
          %p370 = pneg %p61
        $region58: #{tpu_custom_call.1} parent=55 // pred_check_branch
          %372 = sbr.rel (%p370) target = $region60
        $region59: #{tpu_custom_call.1} parent=55 // pred_region
          %373 = dma.done %s366, 128
        $region60: #{tpu_custom_call.1} parent=55 // pred_fallthru
          _
        // Predicated region
        $region61: #{tpu_custom_call.1} parent=55 // pred_check
          %p374 = pneg %p82
        $region62: #{tpu_custom_call.1} parent=55 // pred_check_branch
          %376 = sbr.rel (%p374) target = $region64
        $region63: #{tpu_custom_call.1} parent=55 // pred_region
          %377 = dma.done [#allocation8], 512
        $region64: #{tpu_custom_call.1} parent=55 // pred_fallthru
          _
        // Predicated region
        $region65: #{tpu_custom_call.1} parent=55 // pred_check
          %p378 = pneg %p103
        $region66: #{tpu_custom_call.1} parent=55 // pred_check_branch
          %380 = sbr.rel (%p378) target = $region68
        $region67: #{tpu_custom_call.1} parent=55 // pred_region
          %381 = dma.done [#allocation8], 512
        $region68: #{tpu_custom_call.1} parent=55 // pred_fallthru
          _
        // Predicated region
        $region69: #{tpu_custom_call.1} parent=55 // pred_check
          %p382 = pneg %p124
        $region70: #{tpu_custom_call.1} parent=55 // pred_check_branch
          %384 = sbr.rel (%p382) target = $region72
        $region71: #{tpu_custom_call.1} parent=55 // pred_region
          %385 = dma.done [#allocation11], 512
        $region72: #{tpu_custom_call.1} parent=55 // pred_fallthru
          _
        // Predicated region
        $region73: #{tpu_custom_call.1} parent=55 // pred_check
          %p386 = pneg %p208
        $region74: #{tpu_custom_call.1} parent=55 // pred_check_branch
          %388 = sbr.rel (%p386) target = $region76
        $region75: #{tpu_custom_call.1} parent=55 // pred_region
          %389 = dma.done [#allocation11], 512
        $region76: #{tpu_custom_call.1} parent=55 // pred_fallthru
          _
        %s390 = sand.u32 %s48, 1
        %s391 = scalar_lea.sflag [#allocation5], %s390
        %s392 = sand.u32 %s48, 1
        %s393 = smul.addr %s392, 8
        %s394 = scalar_lea.vmem [#allocation4], %s393
        %p395 = pneg %p61
        %p396 = pneg %p58
        %p397 = pneg %p82
        %p398 = pneg %p79
        %p399 = pneg %p103
        %p400 = pneg %p100
        %p401 = pneg %p124
        %p402 = pneg %p121
        %p403 = pneg %p145
        %p404 = pneg %p142
        %p405 = pneg %p166
        %p406 = pneg %p163
        %p407 = pneg %p187
        %p408 = pneg %p184
        %p409 = pneg %p208
        %p410 = pneg %p205
        %p411 = pneg %p229
        %p412 = pneg %p226
        %p413 = pneg %p257
        %p414 = pneg %p254
        %s415 = sand.u32 %s244, 1
        %s416 = scalar_lea.sflag [#allocation6], %s415
        %s417 = sand.u32 %s244, 1
        %s418 = smul.addr %s417, 8
        %s419 = scalar_lea.vmem [#allocation13], %s418
        %p420 = scmp.eq.s32.totalorder %s33, 0
        // Predicated region
        $region77: #{tpu_custom_call.1} parent=55 // pred_check
          %p421 = pneg %p420
        $region78: #{tpu_custom_call.1} parent=55 // pred_check_branch
          %423 = sbr.rel (%p421) target = $region80
        $region79: #{tpu_custom_call.1} parent=55 // pred_region
          %v424 = vld [vmem:[%s369] sm:$0xff]
          %v425 = vld [vmem:[#allocation9] sm:$0xff]
          %v426 = vld [vmem:[#allocation9 + $0x8] sm:$0xff]
          %v427 = vld [vmem:[#allocation9 + $0x10] sm:$0xff]
          %v428 = vld [vmem:[#allocation9 + $0x18] sm:$0xff]
          %v429 = vld [vmem:[%s5] sm:$0x1]
          %v431 = vlaneseq
          %v432 = vshrl.u32 %v431, 7
          %v433 = vsub.s32 0, %v432
          %v434 = vrot.slane %v429, %v433
          %vm436 = vcmask 261120
          %v438 = vsel %vm436, %v424, 0
          %440 = vmatprep.subr.mxu0 0.0
          %441 = vmatpush1.msra.mxu0 %v425
          %442 = vmatprep.subr.mxu0 0.0
          %443 = vmatpush1.msra.mxu0 %v426
          %444 = vmatprep.subr.mxu0 0.0
          %445 = vmatpush1.msra.mxu0 %v427
          %446 = vmatprep.subr.mxu0 0.0
          %447 = vmatpush1.msra.mxu0 %v428
          %448 = vmatprep.subr.mxu0 0.0
          %449 = vmatpush1.msra.mxu0 0.0
          %450 = vmatprep.subr.mxu0 0.0
          %451 = vmatpush1.msra.mxu0 0.0
          %452 = vmatprep.subr.mxu0 0.0
          %453 = vmatpush1.msra.mxu0 0.0
          %454 = vmatprep.subr.mxu0 0.0
          %455 = vmatpush1.msra.mxu0 0.0
          %456 = vmatprep.subr.mxu0 0.0
          %457 = vmatpush1.msra.mxu0 0.0
          %458 = vmatprep.subr.mxu0 0.0
          %459 = vmatpush1.msra.mxu0 0.0
          %460 = vmatprep.subr.mxu0 0.0
          %461 = vmatpush1.msra.mxu0 0.0
          %462 = vmatprep.subr.mxu0 0.0
          %463 = vmatpush1.msra.mxu0 0.0
          %464 = vmatprep.subr.mxu0 0.0
          %465 = vmatpush1.msra.mxu0 0.0
          %466 = vmatprep.subr.mxu0 0.0
          %467 = vmatpush1.msra.mxu0 0.0
          %468 = vmatprep.subr.mxu0 0.0
          %469 = vmatpush1.msra.mxu0 0.0
          %470 = vmatprep.subr.mxu0 0.0
          %471 = vmatpush1.msra.mxu0 0.0
          %472 = vmatprep.subr.mxu0 0.0
          %473 = vmatpush1.msra.mxu0 0.0
          %474 = vmatprep.subr.mxu0 0.0
          %475 = vmatpush1.msra.mxu0 0.0
          %476 = vmatprep.subr.mxu0 0.0
          %477 = vmatpush1.msra.mxu0 0.0
          %478 = vmatprep.subr.mxu0 0.0
          %479 = vmatpush1.msra.mxu0 0.0
          %480 = vmatprep.subr.mxu0 0.0
          %481 = vmatpush1.msra.mxu0 0.0
          %482 = vmatprep.subr.mxu0 0.0
          %483 = vmatpush1.msra.mxu0 0.0
          %484 = vmatprep.subr.mxu0 0.0
          %485 = vmatpush1.msra.mxu0 0.0
          %486 = vmatprep.subr.mxu0 0.0
          %487 = vmatpush1.msra.mxu0 0.0
          %488 = vmatprep.subr.mxu0 0.0
          %489 = vmatpush1.msra.mxu0 0.0
          %490 = vmatprep.subr.mxu0 0.0
          %491 = vmatpush1.msra.mxu0 0.0
          %492 = vmatprep.subr.mxu0 0.0
          %493 = vmatpush1.msra.mxu0 0.0
          %494 = vmatprep.subr.mxu0 0.0
          %495 = vmatpush1.msra.mxu0 0.0
          %496 = vmatprep.subr.mxu0 0.0
          %497 = vmatpush1.msra.mxu0 0.0
          %498 = vmatprep.subr.mxu0 0.0
          %499 = vmatpush1.msra.mxu0 0.0
          %500 = vmatprep.subr.mxu0 0.0
          %501 = vmatpush1.msra.mxu0 0.0
          %502 = vmatprep.subr.mxu0 0.0
          %503 = vmatpush1.msra.mxu0 0.0
          %504 = vmatprep.mubr.f32.mxu0 0.0
          %505 = vmatmul.mubr.f32.gmra.mrb[0].mxu0 %v438
          %v506 = vpop.f32.mrb[0].mxu0
          %v507 = vadd.f32 %v434, %v506
          %v508 = vpop.f32.mrb[0].mxu0
          %509 = vdwg.mxu0
          %510 = vst.msk [vmem:[#allocation2] sm:$0xff] %vm436, %v507
          %v511 = vld [vmem:[#allocation10] sm:$0xff]
          %v512 = vld [vmem:[#allocation10 + $0x8] sm:$0xff]
          %v513 = vld [vmem:[#allocation10 + $0x10] sm:$0xff]
          %v514 = vld [vmem:[#allocation10 + $0x18] sm:$0xff]
          %v515 = vld [vmem:[%s6] sm:$0x1]
          %v517 = vlaneseq
          %v518 = vshrl.u32 %v517, 7
          %v519 = vsub.s32 0, %v518
          %v520 = vrot.slane %v515, %v519
          %522 = vmatprep.subr.mxu0 0.0
          %523 = vmatpush1.msra.mxu0 %v511
          %524 = vmatprep.subr.mxu0 0.0
          %525 = vmatpush1.msra.mxu0 %v512
          %526 = vmatprep.subr.mxu0 0.0
          %527 = vmatpush1.msra.mxu0 %v513
          %528 = vmatprep.subr.mxu0 0.0
          %529 = vmatpush1.msra.mxu0 %v514
          %530 = vmatprep.subr.mxu0 0.0
          %531 = vmatpush1.msra.mxu0 0.0
          %532 = vmatprep.subr.mxu0 0.0
          %533 = vmatpush1.msra.mxu0 0.0
          %534 = vmatprep.subr.mxu0 0.0
          %535 = vmatpush1.msra.mxu0 0.0
          %536 = vmatprep.subr.mxu0 0.0
          %537 = vmatpush1.msra.mxu0 0.0
          %538 = vmatprep.subr.mxu0 0.0
          %539 = vmatpush1.msra.mxu0 0.0
          %540 = vmatprep.subr.mxu0 0.0
          %541 = vmatpush1.msra.mxu0 0.0
          %542 = vmatprep.subr.mxu0 0.0
          %543 = vmatpush1.msra.mxu0 0.0
          %544 = vmatprep.subr.mxu0 0.0
          %545 = vmatpush1.msra.mxu0 0.0
          %546 = vmatprep.subr.mxu0 0.0
          %547 = vmatpush1.msra.mxu0 0.0
          %548 = vmatprep.subr.mxu0 0.0
          %549 = vmatpush1.msra.mxu0 0.0
          %550 = vmatprep.subr.mxu0 0.0
          %551 = vmatpush1.msra.mxu0 0.0
          %552 = vmatprep.subr.mxu0 0.0
          %553 = vmatpush1.msra.mxu0 0.0
          %554 = vmatprep.subr.mxu0 0.0
          %555 = vmatpush1.msra.mxu0 0.0
          %556 = vmatprep.subr.mxu0 0.0
          %557 = vmatpush1.msra.mxu0 0.0
          %558 = vmatprep.subr.mxu0 0.0
          %559 = vmatpush1.msra.mxu0 0.0
          %560 = vmatprep.subr.mxu0 0.0
          %561 = vmatpush1.msra.mxu0 0.0
          %562 = vmatprep.subr.mxu0 0.0
          %563 = vmatpush1.msra.mxu0 0.0
          %564 = vmatprep.subr.mxu0 0.0
          %565 = vmatpush1.msra.mxu0 0.0
          %566 = vmatprep.subr.mxu0 0.0
          %567 = vmatpush1.msra.mxu0 0.0
          %568 = vmatprep.subr.mxu0 0.0
          %569 = vmatpush1.msra.mxu0 0.0
          %570 = vmatprep.subr.mxu0 0.0
          %571 = vmatpush1.msra.mxu0 0.0
          %572 = vmatprep.subr.mxu0 0.0
          %573 = vmatpush1.msra.mxu0 0.0
          %574 = vmatprep.subr.mxu0 0.0
          %575 = vmatpush1.msra.mxu0 0.0
          %576 = vmatprep.subr.mxu0 0.0
          %577 = vmatpush1.msra.mxu0 0.0
          %578 = vmatprep.subr.mxu0 0.0
          %579 = vmatpush1.msra.mxu0 0.0
          %580 = vmatprep.subr.mxu0 0.0
          %581 = vmatpush1.msra.mxu0 0.0
          %582 = vmatprep.subr.mxu0 0.0
          %583 = vmatpush1.msra.mxu0 0.0
          %584 = vmatprep.subr.mxu0 0.0
          %585 = vmatpush1.msra.mxu0 0.0
          %586 = vmatprep.mubr.f32.mxu0 0.0
          %587 = vmatmul.mubr.f32.gmra.mrb[0].mxu0 %v438
          %v588 = vpop.f32.mrb[0].mxu0
          %v589 = vadd.f32 %v520, %v588
          %v590 = vpop.f32.mrb[0].mxu0
          %591 = vdwg.mxu0
          %592 = vst.msk [vmem:[#allocation3] sm:$0xff] %vm436, %v589
        $region80: #{tpu_custom_call.1} parent=55 // pred_fallthru
          _
        %s593 = smul.u32 %s33, 8
        %s594 = scalar_lea.vmem %s369, %s593 [#allocation4]
        %v595 = vld [vmem:[%s594] sm:$0xff]
        %v596 = vld [vmem:[#allocation7] sm:$0xff]
        %v597 = vld [vmem:[#allocation7 + $0x8] sm:$0xff]
        %v598 = vld [vmem:[#allocation7 + $0x10] sm:$0xff]
        %v599 = vld [vmem:[#allocation7 + $0x18] sm:$0xff]
        %v600 = vld [vmem:[%s4] sm:$0x1]
        %v602 = vlaneseq
        %v603 = vshrl.u32 %v602, 7
        %v604 = vsub.s32 0, %v603
        %v605 = vrot.slane %v600, %v604
        %vm607 = vcmask 261120
        %v609 = vsel %vm607, %v595, 0
        %611 = vmatprep.subr.mxu0 0.0
        %612 = vmatpush1.msra.mxu0 %v596
        %613 = vmatprep.subr.mxu0 0.0
        %614 = vmatpush1.msra.mxu0 %v597
        %615 = vmatprep.subr.mxu0 0.0
        %616 = vmatpush1.msra.mxu0 %v598
        %617 = vmatprep.subr.mxu0 0.0
        %618 = vmatpush1.msra.mxu0 %v599
        %619 = vmatprep.subr.mxu0 0.0
        %620 = vmatpush1.msra.mxu0 0.0
        %621 = vmatprep.subr.mxu0 0.0
        %622 = vmatpush1.msra.mxu0 0.0
        %623 = vmatprep.subr.mxu0 0.0
        %624 = vmatpush1.msra.mxu0 0.0
        %625 = vmatprep.subr.mxu0 0.0
        %626 = vmatpush1.msra.mxu0 0.0
        %627 = vmatprep.subr.mxu0 0.0
        %628 = vmatpush1.msra.mxu0 0.0
        %629 = vmatprep.subr.mxu0 0.0
        %630 = vmatpush1.msra.mxu0 0.0
        %631 = vmatprep.subr.mxu0 0.0
        %632 = vmatpush1.msra.mxu0 0.0
        %633 = vmatprep.subr.mxu0 0.0
        %634 = vmatpush1.msra.mxu0 0.0
        %635 = vmatprep.subr.mxu0 0.0
        %636 = vmatpush1.msra.mxu0 0.0
        %637 = vmatprep.subr.mxu0 0.0
        %638 = vmatpush1.msra.mxu0 0.0
        %639 = vmatprep.subr.mxu0 0.0
        %640 = vmatpush1.msra.mxu0 0.0
        %641 = vmatprep.subr.mxu0 0.0
        %642 = vmatpush1.msra.mxu0 0.0
        %643 = vmatprep.subr.mxu0 0.0
        %644 = vmatpush1.msra.mxu0 0.0
        %645 = vmatprep.subr.mxu0 0.0
        %646 = vmatpush1.msra.mxu0 0.0
        %647 = vmatprep.subr.mxu0 0.0
        %648 = vmatpush1.msra.mxu0 0.0
        %649 = vmatprep.subr.mxu0 0.0
        %650 = vmatpush1.msra.mxu0 0.0
        %651 = vmatprep.subr.mxu0 0.0
        %652 = vmatpush1.msra.mxu0 0.0
        %653 = vmatprep.subr.mxu0 0.0
        %654 = vmatpush1.msra.mxu0 0.0
        %655 = vmatprep.subr.mxu0 0.0
        %656 = vmatpush1.msra.mxu0 0.0
        %657 = vmatprep.subr.mxu0 0.0
        %658 = vmatpush1.msra.mxu0 0.0
        %659 = vmatprep.subr.mxu0 0.0
        %660 = vmatpush1.msra.mxu0 0.0
        %661 = vmatprep.subr.mxu0 0.0
        %662 = vmatpush1.msra.mxu0 0.0
        %663 = vmatprep.subr.mxu0 0.0
        %664 = vmatpush1.msra.mxu0 0.0
        %665 = vmatprep.subr.mxu0 0.0
        %666 = vmatpush1.msra.mxu0 0.0
        %667 = vmatprep.subr.mxu0 0.0
        %668 = vmatpush1.msra.mxu0 0.0
        %669 = vmatprep.subr.mxu0 0.0
        %670 = vmatpush1.msra.mxu0 0.0
        %671 = vmatprep.subr.mxu0 0.0
        %672 = vmatpush1.msra.mxu0 0.0
        %673 = vmatprep.subr.mxu0 0.0
        %674 = vmatpush1.msra.mxu0 0.0
        %675 = vmatprep.mubr.f32.mxu0 0.0
        %676 = vmatmul.mubr.f32.gmra.mrb[0].mxu0 %v609
        %v677 = vpop.f32.mrb[0].mxu0
        %v678 = vadd.f32 %v605, %v677
        %v679 = vpop.f32.mrb[0].mxu0
        %680 = vdwg.mxu0
        %v681 = vld [vmem:[#allocation2] sm:$0xff]
        %v682 = vld [vmem:[#allocation3] sm:$0xff]
        %vm683 = vcmask 64512
        %v685 = vsel %vm683, %v678, 0
        %v688 = vsel %vm683, %v681, 0
        %690 = vmatprep.subr.mxu0 0.0
        %691 = vmatpush1.xpose.msra.mxu0 %v688
        %692 = vmatprep.subr.mxu0 0.0
        %693 = vmatpush1.xpose.msra.mxu0 0.0
        %694 = vmatprep.subr.mxu0 0.0
        %695 = vmatpush1.xpose.msra.mxu0 0.0
        %696 = vmatprep.subr.mxu0 0.0
        %697 = vmatpush1.xpose.msra.mxu0 0.0
        %698 = vmatprep.subr.mxu0 0.0
        %699 = vmatpush1.xpose.msra.mxu0 0.0
        %700 = vmatprep.subr.mxu0 0.0
        %701 = vmatpush1.xpose.msra.mxu0 0.0
        %702 = vmatprep.subr.mxu0 0.0
        %703 = vmatpush1.xpose.msra.mxu0 0.0
        %704 = vmatprep.subr.mxu0 0.0
        %705 = vmatpush1.xpose.msra.mxu0 0.0
        %706 = vmatprep.subr.mxu0 0.0
        %707 = vmatpush1.xpose.msra.mxu0 0.0
        %708 = vmatprep.subr.mxu0 0.0
        %709 = vmatpush1.xpose.msra.mxu0 0.0
        %710 = vmatprep.subr.mxu0 0.0
        %711 = vmatpush1.xpose.msra.mxu0 0.0
        %712 = vmatprep.subr.mxu0 0.0
        %713 = vmatpush1.xpose.msra.mxu0 0.0
        %714 = vmatprep.subr.mxu0 0.0
        %715 = vmatpush1.xpose.msra.mxu0 0.0
        %716 = vmatprep.subr.mxu0 0.0
        %717 = vmatpush1.xpose.msra.mxu0 0.0
        %718 = vmatprep.subr.mxu0 0.0
        %719 = vmatpush1.xpose.msra.mxu0 0.0
        %720 = vmatprep.subr.mxu0 0.0
        %721 = vmatpush1.xpose.msra.mxu0 0.0
        %722 = vmatprep.subr.mxu0 0.0
        %723 = vmatpush1.xpose.msra.mxu0 0.0
        %724 = vmatprep.subr.mxu0 0.0
        %725 = vmatpush1.xpose.msra.mxu0 0.0
        %726 = vmatprep.subr.mxu0 0.0
        %727 = vmatpush1.xpose.msra.mxu0 0.0
        %728 = vmatprep.subr.mxu0 0.0
        %729 = vmatpush1.xpose.msra.mxu0 0.0
        %730 = vmatprep.subr.mxu0 0.0
        %731 = vmatpush1.xpose.msra.mxu0 0.0
        %732 = vmatprep.subr.mxu0 0.0
        %733 = vmatpush1.xpose.msra.mxu0 0.0
        %734 = vmatprep.subr.mxu0 0.0
        %735 = vmatpush1.xpose.msra.mxu0 0.0
        %736 = vmatprep.subr.mxu0 0.0
        %737 = vmatpush1.xpose.msra.mxu0 0.0
        %738 = vmatprep.subr.mxu0 0.0
        %739 = vmatpush1.xpose.msra.mxu0 0.0
        %740 = vmatprep.subr.mxu0 0.0
        %741 = vmatpush1.xpose.msra.mxu0 0.0
        %742 = vmatprep.subr.mxu0 0.0
        %743 = vmatpush1.xpose.msra.mxu0 0.0
        %744 = vmatprep.subr.mxu0 0.0
        %745 = vmatpush1.xpose.msra.mxu0 0.0
        %746 = vmatprep.subr.mxu0 0.0
        %747 = vmatpush1.xpose.msra.mxu0 0.0
        %748 = vmatprep.subr.mxu0 0.0
        %749 = vmatpush1.xpose.msra.mxu0 0.0
        %750 = vmatprep.subr.mxu0 0.0
        %751 = vmatpush1.xpose.msra.mxu0 0.0
        %752 = vmatprep.subr.mxu0 0.0
        %753 = vmatpush1.xpose.msra.mxu0 0.0
        %754 = vmatprep.mubr.f32.mxu0 0.0
        %755 = vmatmul.mubr.f32.gmra.mrb[0].mxu0 %v685
        %v756 = vpop.f32.mrb[0].mxu0
        %v757 = vadd.f32 0.0, %v756
        %v758 = vpop.f32.mrb[0].mxu0
        %759 = vdwg.mxu0
        %v760 = vsel %vm683, %v757, -inf
        %761 = vmax.xlane.f32.xlu0 %v760
        %v762 = vpop.xlane.xlu0 %761
        %v763 = vsub.f32 %v757, %v762
        %v764 = vmul.f32 %v763, 1.442695
        %v765 = vpow.pop %v764
        %v766 = vsel %vm683, %v765, 0.0
        %767 = vadd.xlane.f32.xlu0 %v766
        %v768 = vpop.xlane.xlu0 %767
        %v770 = vsel %vm683, %v765, 0
        %772 = vmatprep.subr.mxu0 0.0
        %773 = vmatpush1.msra.mxu0 %v682
        %774 = vmatprep.subr.mxu0 0.0
        %775 = vmatpush1.msra.mxu0 0.0
        %776 = vmatprep.subr.mxu0 0.0
        %777 = vmatpush1.msra.mxu0 0.0
        %778 = vmatprep.subr.mxu0 0.0
        %779 = vmatpush1.msra.mxu0 0.0
        %780 = vmatprep.subr.mxu0 0.0
        %781 = vmatpush1.msra.mxu0 0.0
        %782 = vmatprep.subr.mxu0 0.0
        %783 = vmatpush1.msra.mxu0 0.0
        %784 = vmatprep.subr.mxu0 0.0
        %785 = vmatpush1.msra.mxu0 0.0
        %786 = vmatprep.subr.mxu0 0.0
        %787 = vmatpush1.msra.mxu0 0.0
        %788 = vmatprep.subr.mxu0 0.0
        %789 = vmatpush1.msra.mxu0 0.0
        %790 = vmatprep.subr.mxu0 0.0
        %791 = vmatpush1.msra.mxu0 0.0
        %792 = vmatprep.subr.mxu0 0.0
        %793 = vmatpush1.msra.mxu0 0.0
        %794 = vmatprep.subr.mxu0 0.0
        %795 = vmatpush1.msra.mxu0 0.0
        %796 = vmatprep.subr.mxu0 0.0
        %797 = vmatpush1.msra.mxu0 0.0
        %798 = vmatprep.subr.mxu0 0.0
        %799 = vmatpush1.msra.mxu0 0.0
        %800 = vmatprep.subr.mxu0 0.0
        %801 = vmatpush1.msra.mxu0 0.0
        %802 = vmatprep.subr.mxu0 0.0
        %803 = vmatpush1.msra.mxu0 0.0
        %804 = vmatprep.subr.mxu0 0.0
        %805 = vmatpush1.msra.mxu0 0.0
        %806 = vmatprep.subr.mxu0 0.0
        %807 = vmatpush1.msra.mxu0 0.0
        %808 = vmatprep.subr.mxu0 0.0
        %809 = vmatpush1.msra.mxu0 0.0
        %810 = vmatprep.subr.mxu0 0.0
        %811 = vmatpush1.msra.mxu0 0.0
        %812 = vmatprep.subr.mxu0 0.0
        %813 = vmatpush1.msra.mxu0 0.0
        %814 = vmatprep.subr.mxu0 0.0
        %815 = vmatpush1.msra.mxu0 0.0
        %816 = vmatprep.subr.mxu0 0.0
        %817 = vmatpush1.msra.mxu0 0.0
        %818 = vmatprep.subr.mxu0 0.0
        %819 = vmatpush1.msra.mxu0 0.0
        %820 = vmatprep.subr.mxu0 0.0
        %821 = vmatpush1.msra.mxu0 0.0
        %822 = vmatprep.subr.mxu0 0.0
        %823 = vmatpush1.msra.mxu0 0.0
        %824 = vmatprep.subr.mxu0 0.0
        %825 = vmatpush1.msra.mxu0 0.0
        %826 = vmatprep.subr.mxu0 0.0
        %827 = vmatpush1.msra.mxu0 0.0
        %828 = vmatprep.subr.mxu0 0.0
        %829 = vmatpush1.msra.mxu0 0.0
        %830 = vmatprep.subr.mxu0 0.0
        %831 = vmatpush1.msra.mxu0 0.0
        %832 = vmatprep.subr.mxu0 0.0
        %833 = vmatpush1.msra.mxu0 0.0
        %834 = vmatprep.subr.mxu0 0.0
        %835 = vmatpush1.msra.mxu0 0.0
        %836 = vmatprep.mubr.f32.mxu0 0.0
        %837 = vmatmul.mubr.f32.gmra.mrb[0].mxu0 %v770
        %v838 = vpop.f32.mrb[0].mxu0
        %v839 = vadd.f32 0.0, %v838
        %v840 = vpop.f32.mrb[0].mxu0
        %841 = vdwg.mxu0
        %v842 = vrcp.pop %v768
        %v843 = vmul.f32 %v839, %v842
        %844 = vrot.lane.b32.xlu0 %v678, 120
        %v845 = vpop.permute.xlu0 %844
        %846 = vrot.lane.b32.xlu0 %v681, 120
        %v847 = vpop.permute.xlu0 %846
        %v848 = vsel %vm683, %v845, 0
        %v850 = vsel %vm683, %v847, 0
        %852 = vmatprep.subr.mxu0 0.0
        %853 = vmatpush1.xpose.msra.mxu0 %v850
        %854 = vmatprep.subr.mxu0 0.0
        %855 = vmatpush1.xpose.msra.mxu0 0.0
        %856 = vmatprep.subr.mxu0 0.0
        %857 = vmatpush1.xpose.msra.mxu0 0.0
        %858 = vmatprep.subr.mxu0 0.0
        %859 = vmatpush1.xpose.msra.mxu0 0.0
        %860 = vmatprep.subr.mxu0 0.0
        %861 = vmatpush1.xpose.msra.mxu0 0.0
        %862 = vmatprep.subr.mxu0 0.0
        %863 = vmatpush1.xpose.msra.mxu0 0.0
        %864 = vmatprep.subr.mxu0 0.0
        %865 = vmatpush1.xpose.msra.mxu0 0.0
        %866 = vmatprep.subr.mxu0 0.0
        %867 = vmatpush1.xpose.msra.mxu0 0.0
        %868 = vmatprep.subr.mxu0 0.0
        %869 = vmatpush1.xpose.msra.mxu0 0.0
        %870 = vmatprep.subr.mxu0 0.0
        %871 = vmatpush1.xpose.msra.mxu0 0.0
        %872 = vmatprep.subr.mxu0 0.0
        %873 = vmatpush1.xpose.msra.mxu0 0.0
        %874 = vmatprep.subr.mxu0 0.0
        %875 = vmatpush1.xpose.msra.mxu0 0.0
        %876 = vmatprep.subr.mxu0 0.0
        %877 = vmatpush1.xpose.msra.mxu0 0.0
        %878 = vmatprep.subr.mxu0 0.0
        %879 = vmatpush1.xpose.msra.mxu0 0.0
        %880 = vmatprep.subr.mxu0 0.0
        %881 = vmatpush1.xpose.msra.mxu0 0.0
        %882 = vmatprep.subr.mxu0 0.0
        %883 = vmatpush1.xpose.msra.mxu0 0.0
        %884 = vmatprep.subr.mxu0 0.0
        %885 = vmatpush1.xpose.msra.mxu0 0.0
        %886 = vmatprep.subr.mxu0 0.0
        %887 = vmatpush1.xpose.msra.mxu0 0.0
        %888 = vmatprep.subr.mxu0 0.0
        %889 = vmatpush1.xpose.msra.mxu0 0.0
        %890 = vmatprep.subr.mxu0 0.0
        %891 = vmatpush1.xpose.msra.mxu0 0.0
        %892 = vmatprep.subr.mxu0 0.0
        %893 = vmatpush1.xpose.msra.mxu0 0.0
        %894 = vmatprep.subr.mxu0 0.0
        %895 = vmatpush1.xpose.msra.mxu0 0.0
        %896 = vmatprep.subr.mxu0 0.0
        %897 = vmatpush1.xpose.msra.mxu0 0.0
        %898 = vmatprep.subr.mxu0 0.0
        %899 = vmatpush1.xpose.msra.mxu0 0.0
        %900 = vmatprep.subr.mxu0 0.0
        %901 = vmatpush1.xpose.msra.mxu0 0.0
        %902 = vmatprep.subr.mxu0 0.0
        %903 = vmatpush1.xpose.msra.mxu0 0.0
        %904 = vmatprep.subr.mxu0 0.0
        %905 = vmatpush1.xpose.msra.mxu0 0.0
        %906 = vmatprep.subr.mxu0 0.0
        %907 = vmatpush1.xpose.msra.mxu0 0.0
        %908 = vmatprep.subr.mxu0 0.0
        %909 = vmatpush1.xpose.msra.mxu0 0.0
        %910 = vmatprep.subr.mxu0 0.0
        %911 = vmatpush1.xpose.msra.mxu0 0.0
        %912 = vmatprep.subr.mxu0 0.0
        %913 = vmatpush1.xpose.msra.mxu0 0.0
        %914 = vmatprep.subr.mxu0 0.0
        %915 = vmatpush1.xpose.msra.mxu0 0.0
        %916 = vmatprep.mubr.f32.mxu0 0.0
        %917 = vmatmul.mubr.f32.gmra.mrb[0].mxu0 %v848
        %v918 = vpop.f32.mrb[0].mxu0
        %v919 = vadd.f32 0.0, %v918
        %v920 = vpop.f32.mrb[0].mxu0
        %921 = vdwg.mxu0
        %v922 = vsel %vm683, %v919, -inf
        %923 = vmax.xlane.f32.xlu0 %v922
        %v924 = vpop.xlane.xlu0 %923
        %v925 = vsub.f32 %v919, %v924
        %v926 = vmul.f32 %v925, 1.442695
        %v927 = vpow.pop %v926
        %v928 = vsel %vm683, %v927, 0.0
        %929 = vadd.xlane.f32.xlu0 %v928
        %v930 = vpop.xlane.xlu0 %929
        %932 = vrot.lane.b32.xlu0 %v682, 120
        %v933 = vpop.permute.xlu0 %932
        %v936 = vsel %vm683, %v927, 0
        %938 = vmatprep.subr.mxu0 0.0
        %939 = vmatpush1.msra.mxu0 %v933
        %940 = vmatprep.subr.mxu0 0.0
        %941 = vmatpush1.msra.mxu0 0.0
        %942 = vmatprep.subr.mxu0 0.0
        %943 = vmatpush1.msra.mxu0 0.0
        %944 = vmatprep.subr.mxu0 0.0
        %945 = vmatpush1.msra.mxu0 0.0
        %946 = vmatprep.subr.mxu0 0.0
        %947 = vmatpush1.msra.mxu0 0.0
        %948 = vmatprep.subr.mxu0 0.0
        %949 = vmatpush1.msra.mxu0 0.0
        %950 = vmatprep.subr.mxu0 0.0
        %951 = vmatpush1.msra.mxu0 0.0
        %952 = vmatprep.subr.mxu0 0.0
        %953 = vmatpush1.msra.mxu0 0.0
        %954 = vmatprep.subr.mxu0 0.0
        %955 = vmatpush1.msra.mxu0 0.0
        %956 = vmatprep.subr.mxu0 0.0
        %957 = vmatpush1.msra.mxu0 0.0
        %958 = vmatprep.subr.mxu0 0.0
        %959 = vmatpush1.msra.mxu0 0.0
        %960 = vmatprep.subr.mxu0 0.0
        %961 = vmatpush1.msra.mxu0 0.0
        %962 = vmatprep.subr.mxu0 0.0
        %963 = vmatpush1.msra.mxu0 0.0
        %964 = vmatprep.subr.mxu0 0.0
        %965 = vmatpush1.msra.mxu0 0.0
        %966 = vmatprep.subr.mxu0 0.0
        %967 = vmatpush1.msra.mxu0 0.0
        %968 = vmatprep.subr.mxu0 0.0
        %969 = vmatpush1.msra.mxu0 0.0
        %970 = vmatprep.subr.mxu0 0.0
        %971 = vmatpush1.msra.mxu0 0.0
        %972 = vmatprep.subr.mxu0 0.0
        %973 = vmatpush1.msra.mxu0 0.0
        %974 = vmatprep.subr.mxu0 0.0
        %975 = vmatpush1.msra.mxu0 0.0
        %976 = vmatprep.subr.mxu0 0.0
        %977 = vmatpush1.msra.mxu0 0.0
        %978 = vmatprep.subr.mxu0 0.0
        %979 = vmatpush1.msra.mxu0 0.0
        %980 = vmatprep.subr.mxu0 0.0
        %981 = vmatpush1.msra.mxu0 0.0
        %982 = vmatprep.subr.mxu0 0.0
        %983 = vmatpush1.msra.mxu0 0.0
        %984 = vmatprep.subr.mxu0 0.0
        %985 = vmatpush1.msra.mxu0 0.0
        %986 = vmatprep.subr.mxu0 0.0
        %987 = vmatpush1.msra.mxu0 0.0
        %988 = vmatprep.subr.mxu0 0.0
        %989 = vmatpush1.msra.mxu0 0.0
        %990 = vmatprep.subr.mxu0 0.0
        %991 = vmatpush1.msra.mxu0 0.0
        %992 = vmatprep.subr.mxu0 0.0
        %993 = vmatpush1.msra.mxu0 0.0
        %994 = vmatprep.subr.mxu0 0.0
        %995 = vmatpush1.msra.mxu0 0.0
        %996 = vmatprep.subr.mxu0 0.0
        %997 = vmatpush1.msra.mxu0 0.0
        %998 = vmatprep.subr.mxu0 0.0
        %999 = vmatpush1.msra.mxu0 0.0
        %1000 = vmatprep.subr.mxu0 0.0
        %1001 = vmatpush1.msra.mxu0 0.0
        %1002 = vmatprep.mubr.f32.mxu0 0.0
        %1003 = vmatmul.mubr.f32.gmra.mrb[0].mxu0 %v936
        %v1004 = vpop.f32.mrb[0].mxu0
        %v1005 = vadd.f32 0.0, %v1004
        %v1006 = vpop.f32.mrb[0].mxu0
        %1007 = vdwg.mxu0
        %v1008 = vrcp.pop %v930
        %v1009 = vmul.f32 %v1005, %v1008
        %1010 = vrot.lane.b32.xlu0 %v678, 112
        %v1011 = vpop.permute.xlu0 %1010
        %1012 = vrot.lane.b32.xlu0 %v681, 112
        %v1013 = vpop.permute.xlu0 %1012
        %v1014 = vsel %vm683, %v1011, 0
        %v1016 = vsel %vm683, %v1013, 0
        %1018 = vmatprep.subr.mxu0 0.0
        %1019 = vmatpush1.xpose.msra.mxu0 %v1016
        %1020 = vmatprep.subr.mxu0 0.0
        %1021 = vmatpush1.xpose.msra.mxu0 0.0
        %1022 = vmatprep.subr.mxu0 0.0
        %1023 = vmatpush1.xpose.msra.mxu0 0.0
        %1024 = vmatprep.subr.mxu0 0.0
        %1025 = vmatpush1.xpose.msra.mxu0 0.0
        %1026 = vmatprep.subr.mxu0 0.0
        %1027 = vmatpush1.xpose.msra.mxu0 0.0
        %1028 = vmatprep.subr.mxu0 0.0
        %1029 = vmatpush1.xpose.msra.mxu0 0.0
        %1030 = vmatprep.subr.mxu0 0.0
        %1031 = vmatpush1.xpose.msra.mxu0 0.0
        %1032 = vmatprep.subr.mxu0 0.0
        %1033 = vmatpush1.xpose.msra.mxu0 0.0
        %1034 = vmatprep.subr.mxu0 0.0
        %1035 = vmatpush1.xpose.msra.mxu0 0.0
        %1036 = vmatprep.subr.mxu0 0.0
        %1037 = vmatpush1.xpose.msra.mxu0 0.0
        %1038 = vmatprep.subr.mxu0 0.0
        %1039 = vmatpush1.xpose.msra.mxu0 0.0
        %1040 = vmatprep.subr.mxu0 0.0
        %1041 = vmatpush1.xpose.msra.mxu0 0.0
        %1042 = vmatprep.subr.mxu0 0.0
        %1043 = vmatpush1.xpose.msra.mxu0 0.0
        %1044 = vmatprep.subr.mxu0 0.0
        %1045 = vmatpush1.xpose.msra.mxu0 0.0
        %1046 = vmatprep.subr.mxu0 0.0
        %1047 = vmatpush1.xpose.msra.mxu0 0.0
        %1048 = vmatprep.subr.mxu0 0.0
        %1049 = vmatpush1.xpose.msra.mxu0 0.0
        %1050 = vmatprep.subr.mxu0 0.0
        %1051 = vmatpush1.xpose.msra.mxu0 0.0
        %1052 = vmatprep.subr.mxu0 0.0
        %1053 = vmatpush1.xpose.msra.mxu0 0.0
        %1054 = vmatprep.subr.mxu0 0.0
        %1055 = vmatpush1.xpose.msra.mxu0 0.0
        %1056 = vmatprep.subr.mxu0 0.0
        %1057 = vmatpush1.xpose.msra.mxu0 0.0
        %1058 = vmatprep.subr.mxu0 0.0
        %1059 = vmatpush1.xpose.msra.mxu0 0.0
        %1060 = vmatprep.subr.mxu0 0.0
        %1061 = vmatpush1.xpose.msra.mxu0 0.0
        %1062 = vmatprep.subr.mxu0 0.0
        %1063 = vmatpush1.xpose.msra.mxu0 0.0
        %1064 = vmatprep.subr.mxu0 0.0
        %1065 = vmatpush1.xpose.msra.mxu0 0.0
        %1066 = vmatprep.subr.mxu0 0.0
        %1067 = vmatpush1.xpose.msra.mxu0 0.0
        %1068 = vmatprep.subr.mxu0 0.0
        %1069 = vmatpush1.xpose.msra.mxu0 0.0
        %1070 = vmatprep.subr.mxu0 0.0
        %1071 = vmatpush1.xpose.msra.mxu0 0.0
        %1072 = vmatprep.subr.mxu0 0.0
        %1073 = vmatpush1.xpose.msra.mxu0 0.0
        %1074 = vmatprep.subr.mxu0 0.0
        %1075 = vmatpush1.xpose.msra.mxu0 0.0
        %1076 = vmatprep.subr.mxu0 0.0
        %1077 = vmatpush1.xpose.msra.mxu0 0.0
        %1078 = vmatprep.subr.mxu0 0.0
        %1079 = vmatpush1.xpose.msra.mxu0 0.0
        %1080 = vmatprep.subr.mxu0 0.0
        %1081 = vmatpush1.xpose.msra.mxu0 0.0
        %1082 = vmatprep.mubr.f32.mxu0 0.0
        %1083 = vmatmul.mubr.f32.gmra.mrb[0].mxu0 %v1014
        %v1084 = vpop.f32.mrb[0].mxu0
        %v1085 = vadd.f32 0.0, %v1084
        %v1086 = vpop.f32.mrb[0].mxu0
        %1087 = vdwg.mxu0
        %v1088 = vsel %vm683, %v1085, -inf
        %1089 = vmax.xlane.f32.xlu0 %v1088
        %v1090 = vpop.xlane.xlu0 %1089
        %v1091 = vsub.f32 %v1085, %v1090
        %v1092 = vmul.f32 %v1091, 1.442695
        %v1093 = vpow.pop %v1092
        %v1094 = vsel %vm683, %v1093, 0.0
        %1095 = vadd.xlane.f32.xlu0 %v1094
        %v1096 = vpop.xlane.xlu0 %1095
        %1097 = vrot.lane.b32.xlu0 %v682, 112
        %v1098 = vpop.permute.xlu0 %1097
        %v1101 = vsel %vm683, %v1093, 0
        %1103 = vmatprep.subr.mxu0 0.0
        %1104 = vmatpush1.msra.mxu0 %v1098
        %1105 = vmatprep.subr.mxu0 0.0
        %1106 = vmatpush1.msra.mxu0 0.0
        %1107 = vmatprep.subr.mxu0 0.0
        %1108 = vmatpush1.msra.mxu0 0.0
        %1109 = vmatprep.subr.mxu0 0.0
        %1110 = vmatpush1.msra.mxu0 0.0
        %1111 = vmatprep.subr.mxu0 0.0
        %1112 = vmatpush1.msra.mxu0 0.0
        %1113 = vmatprep.subr.mxu0 0.0
        %1114 = vmatpush1.msra.mxu0 0.0
        %1115 = vmatprep.subr.mxu0 0.0
        %1116 = vmatpush1.msra.mxu0 0.0
        %1117 = vmatprep.subr.mxu0 0.0
        %1118 = vmatpush1.msra.mxu0 0.0
        %1119 = vmatprep.subr.mxu0 0.0
        %1120 = vmatpush1.msra.mxu0 0.0
        %1121 = vmatprep.subr.mxu0 0.0
        %1122 = vmatpush1.msra.mxu0 0.0
        %1123 = vmatprep.subr.mxu0 0.0
        %1124 = vmatpush1.msra.mxu0 0.0
        %1125 = vmatprep.subr.mxu0 0.0
        %1126 = vmatpush1.msra.mxu0 0.0
        %1127 = vmatprep.subr.mxu0 0.0
        %1128 = vmatpush1.msra.mxu0 0.0
        %1129 = vmatprep.subr.mxu0 0.0
        %1130 = vmatpush1.msra.mxu0 0.0
        %1131 = vmatprep.subr.mxu0 0.0
        %1132 = vmatpush1.msra.mxu0 0.0
        %1133 = vmatprep.subr.mxu0 0.0
        %1134 = vmatpush1.msra.mxu0 0.0
        %1135 = vmatprep.subr.mxu0 0.0
        %1136 = vmatpush1.msra.mxu0 0.0
        %1137 = vmatprep.subr.mxu0 0.0
        %1138 = vmatpush1.msra.mxu0 0.0
        %1139 = vmatprep.subr.mxu0 0.0
        %1140 = vmatpush1.msra.mxu0 0.0
        %1141 = vmatprep.subr.mxu0 0.0
        %1142 = vmatpush1.msra.mxu0 0.0
        %1143 = vmatprep.subr.mxu0 0.0
        %1144 = vmatpush1.msra.mxu0 0.0
        %1145 = vmatprep.subr.mxu0 0.0
        %1146 = vmatpush1.msra.mxu0 0.0
        %1147 = vmatprep.subr.mxu0 0.0
        %1148 = vmatpush1.msra.mxu0 0.0
        %1149 = vmatprep.subr.mxu0 0.0
        %1150 = vmatpush1.msra.mxu0 0.0
        %1151 = vmatprep.subr.mxu0 0.0
        %1152 = vmatpush1.msra.mxu0 0.0
        %1153 = vmatprep.subr.mxu0 0.0
        %1154 = vmatpush1.msra.mxu0 0.0
        %1155 = vmatprep.subr.mxu0 0.0
        %1156 = vmatpush1.msra.mxu0 0.0
        %1157 = vmatprep.subr.mxu0 0.0
        %1158 = vmatpush1.msra.mxu0 0.0
        %1159 = vmatprep.subr.mxu0 0.0
        %1160 = vmatpush1.msra.mxu0 0.0
        %1161 = vmatprep.subr.mxu0 0.0
        %1162 = vmatpush1.msra.mxu0 0.0
        %1163 = vmatprep.subr.mxu0 0.0
        %1164 = vmatpush1.msra.mxu0 0.0
        %1165 = vmatprep.subr.mxu0 0.0
        %1166 = vmatpush1.msra.mxu0 0.0
        %1167 = vmatprep.mubr.f32.mxu0 0.0
        %1168 = vmatmul.mubr.f32.gmra.mrb[0].mxu0 %v1101
        %v1169 = vpop.f32.mrb[0].mxu0
        %v1170 = vadd.f32 0.0, %v1169
        %v1171 = vpop.f32.mrb[0].mxu0
        %1172 = vdwg.mxu0
        %v1173 = vrcp.pop %v1096
        %v1174 = vmul.f32 %v1170, %v1173
        %1175 = vrot.lane.b32.xlu0 %v678, 104
        %v1176 = vpop.permute.xlu0 %1175
        %1177 = vrot.lane.b32.xlu0 %v681, 104
        %v1178 = vpop.permute.xlu0 %1177
        %v1179 = vsel %vm683, %v1176, 0
        %v1181 = vsel %vm683, %v1178, 0
        %1183 = vmatprep.subr.mxu0 0.0
        %1184 = vmatpush1.xpose.msra.mxu0 %v1181
        %1185 = vmatprep.subr.mxu0 0.0
        %1186 = vmatpush1.xpose.msra.mxu0 0.0
        %1187 = vmatprep.subr.mxu0 0.0
        %1188 = vmatpush1.xpose.msra.mxu0 0.0
        %1189 = vmatprep.subr.mxu0 0.0
        %1190 = vmatpush1.xpose.msra.mxu0 0.0
        %1191 = vmatprep.subr.mxu0 0.0
        %1192 = vmatpush1.xpose.msra.mxu0 0.0
        %1193 = vmatprep.subr.mxu0 0.0
        %1194 = vmatpush1.xpose.msra.mxu0 0.0
        %1195 = vmatprep.subr.mxu0 0.0
        %1196 = vmatpush1.xpose.msra.mxu0 0.0
        %1197 = vmatprep.subr.mxu0 0.0
        %1198 = vmatpush1.xpose.msra.mxu0 0.0
        %1199 = vmatprep.subr.mxu0 0.0
        %1200 = vmatpush1.xpose.msra.mxu0 0.0
        %1201 = vmatprep.subr.mxu0 0.0
        %1202 = vmatpush1.xpose.msra.mxu0 0.0
        %1203 = vmatprep.subr.mxu0 0.0
        %1204 = vmatpush1.xpose.msra.mxu0 0.0
        %1205 = vmatprep.subr.mxu0 0.0
        %1206 = vmatpush1.xpose.msra.mxu0 0.0
        %1207 = vmatprep.subr.mxu0 0.0
        %1208 = vmatpush1.xpose.msra.mxu0 0.0
        %1209 = vmatprep.subr.mxu0 0.0
        %1210 = vmatpush1.xpose.msra.mxu0 0.0
        %1211 = vmatprep.subr.mxu0 0.0
        %1212 = vmatpush1.xpose.msra.mxu0 0.0
        %1213 = vmatprep.subr.mxu0 0.0
        %1214 = vmatpush1.xpose.msra.mxu0 0.0
        %1215 = vmatprep.subr.mxu0 0.0
        %1216 = vmatpush1.xpose.msra.mxu0 0.0
        %1217 = vmatprep.subr.mxu0 0.0
        %1218 = vmatpush1.xpose.msra.mxu0 0.0
        %1219 = vmatprep.subr.mxu0 0.0
        %1220 = vmatpush1.xpose.msra.mxu0 0.0
        %1221 = vmatprep.subr.mxu0 0.0
        %1222 = vmatpush1.xpose.msra.mxu0 0.0
        %1223 = vmatprep.subr.mxu0 0.0
        %1224 = vmatpush1.xpose.msra.mxu0 0.0
        %1225 = vmatprep.subr.mxu0 0.0
        %1226 = vmatpush1.xpose.msra.mxu0 0.0
        %1227 = vmatprep.subr.mxu0 0.0
        %1228 = vmatpush1.xpose.msra.mxu0 0.0
        %1229 = vmatprep.subr.mxu0 0.0
        %1230 = vmatpush1.xpose.msra.mxu0 0.0
        %1231 = vmatprep.subr.mxu0 0.0
        %1232 = vmatpush1.xpose.msra.mxu0 0.0
        %1233 = vmatprep.subr.mxu0 0.0
        %1234 = vmatpush1.xpose.msra.mxu0 0.0
        %1235 = vmatprep.subr.mxu0 0.0
        %1236 = vmatpush1.xpose.msra.mxu0 0.0
        %1237 = vmatprep.subr.mxu0 0.0
        %1238 = vmatpush1.xpose.msra.mxu0 0.0
        %1239 = vmatprep.subr.mxu0 0.0
        %1240 = vmatpush1.xpose.msra.mxu0 0.0
        %1241 = vmatprep.subr.mxu0 0.0
        %1242 = vmatpush1.xpose.msra.mxu0 0.0
        %1243 = vmatprep.subr.mxu0 0.0
        %1244 = vmatpush1.xpose.msra.mxu0 0.0
        %1245 = vmatprep.subr.mxu0 0.0
        %1246 = vmatpush1.xpose.msra.mxu0 0.0
        %1247 = vmatprep.mubr.f32.mxu0 0.0
        %1248 = vmatmul.mubr.f32.gmra.mrb[0].mxu0 %v1179
        %v1249 = vpop.f32.mrb[0].mxu0
        %v1250 = vadd.f32 0.0, %v1249
        %v1251 = vpop.f32.mrb[0].mxu0
        %1252 = vdwg.mxu0
        %v1253 = vsel %vm683, %v1250, -inf
        %1254 = vmax.xlane.f32.xlu0 %v1253
        %v1255 = vpop.xlane.xlu0 %1254
        %v1256 = vsub.f32 %v1250, %v1255
        %v1257 = vmul.f32 %v1256, 1.442695
        %v1258 = vpow.pop %v1257
        %v1259 = vsel %vm683, %v1258, 0.0
        %1260 = vadd.xlane.f32.xlu0 %v1259
        %v1261 = vpop.xlane.xlu0 %1260
        %1262 = vrot.lane.b32.xlu0 %v682, 104
        %v1263 = vpop.permute.xlu0 %1262
        %v1266 = vsel %vm683, %v1258, 0
        %1268 = vmatprep.subr.mxu0 0.0
        %1269 = vmatpush1.msra.mxu0 %v1263
        %1270 = vmatprep.subr.mxu0 0.0
        %1271 = vmatpush1.msra.mxu0 0.0
        %1272 = vmatprep.subr.mxu0 0.0
        %1273 = vmatpush1.msra.mxu0 0.0
        %1274 = vmatprep.subr.mxu0 0.0
        %1275 = vmatpush1.msra.mxu0 0.0
        %1276 = vmatprep.subr.mxu0 0.0
        %1277 = vmatpush1.msra.mxu0 0.0
        %1278 = vmatprep.subr.mxu0 0.0
        %1279 = vmatpush1.msra.mxu0 0.0
        %1280 = vmatprep.subr.mxu0 0.0
        %1281 = vmatpush1.msra.mxu0 0.0
        %1282 = vmatprep.subr.mxu0 0.0
        %1283 = vmatpush1.msra.mxu0 0.0
        %1284 = vmatprep.subr.mxu0 0.0
        %1285 = vmatpush1.msra.mxu0 0.0
        %1286 = vmatprep.subr.mxu0 0.0
        %1287 = vmatpush1.msra.mxu0 0.0
        %1288 = vmatprep.subr.mxu0 0.0
        %1289 = vmatpush1.msra.mxu0 0.0
        %1290 = vmatprep.subr.mxu0 0.0
        %1291 = vmatpush1.msra.mxu0 0.0
        %1292 = vmatprep.subr.mxu0 0.0
        %1293 = vmatpush1.msra.mxu0 0.0
        %1294 = vmatprep.subr.mxu0 0.0
        %1295 = vmatpush1.msra.mxu0 0.0
        %1296 = vmatprep.subr.mxu0 0.0
        %1297 = vmatpush1.msra.mxu0 0.0
        %1298 = vmatprep.subr.mxu0 0.0
        %1299 = vmatpush1.msra.mxu0 0.0
        %1300 = vmatprep.subr.mxu0 0.0
        %1301 = vmatpush1.msra.mxu0 0.0
        %1302 = vmatprep.subr.mxu0 0.0
        %1303 = vmatpush1.msra.mxu0 0.0
        %1304 = vmatprep.subr.mxu0 0.0
        %1305 = vmatpush1.msra.mxu0 0.0
        %1306 = vmatprep.subr.mxu0 0.0
        %1307 = vmatpush1.msra.mxu0 0.0
        %1308 = vmatprep.subr.mxu0 0.0
        %1309 = vmatpush1.msra.mxu0 0.0
        %1310 = vmatprep.subr.mxu0 0.0
        %1311 = vmatpush1.msra.mxu0 0.0
        %1312 = vmatprep.subr.mxu0 0.0
        %1313 = vmatpush1.msra.mxu0 0.0
        %1314 = vmatprep.subr.mxu0 0.0
        %1315 = vmatpush1.msra.mxu0 0.0
        %1316 = vmatprep.subr.mxu0 0.0
        %1317 = vmatpush1.msra.mxu0 0.0
        %1318 = vmatprep.subr.mxu0 0.0
        %1319 = vmatpush1.msra.mxu0 0.0
        %1320 = vmatprep.subr.mxu0 0.0
        %1321 = vmatpush1.msra.mxu0 0.0
        %1322 = vmatprep.subr.mxu0 0.0
        %1323 = vmatpush1.msra.mxu0 0.0
        %1324 = vmatprep.subr.mxu0 0.0
        %1325 = vmatpush1.msra.mxu0 0.0
        %1326 = vmatprep.subr.mxu0 0.0
        %1327 = vmatpush1.msra.mxu0 0.0
        %1328 = vmatprep.subr.mxu0 0.0
        %1329 = vmatpush1.msra.mxu0 0.0
        %1330 = vmatprep.subr.mxu0 0.0
        %1331 = vmatpush1.msra.mxu0 0.0
        %1332 = vmatprep.mubr.f32.mxu0 0.0
        %1333 = vmatmul.mubr.f32.gmra.mrb[0].mxu0 %v1266
        %v1334 = vpop.f32.mrb[0].mxu0
        %v1335 = vadd.f32 0.0, %v1334
        %v1336 = vpop.f32.mrb[0].mxu0
        %1337 = vdwg.mxu0
        %v1338 = vrcp.pop %v1261
        %v1339 = vmul.f32 %v1335, %v1338
        %1341 = vrot.lane.b32.xlu0 %v1009, 8
        %v1342 = vpop.permute.xlu0 %1341
        %1345 = vrot.lane.b32.xlu0 %v1174, 16
        %v1346 = vpop.permute.xlu0 %1345
        %1349 = vrot.lane.b32.xlu0 %v1339, 24
        %v1350 = vpop.permute.xlu0 %1349
        %v1352 = vsel %vm683, %v843, %v1342
        %vm1353 = vcmask 130048
        %v1354 = vsel %vm1353, %v1352, %v1346
        %vm1355 = vcmask 195584
        %v1356 = vsel %vm1355, %v1354, %v1350
        %v1357 = vld [vmem:[#allocation12] sm:$0xff]
        %v1358 = vld [vmem:[#allocation12 + $0x8] sm:$0xff]
        %v1359 = vld [vmem:[#allocation12 + $0x10] sm:$0xff]
        %v1360 = vld [vmem:[#allocation12 + $0x18] sm:$0xff]
        %v1361 = vld [vmem:[%s8] sm:$0x1]
        %v1363 = vlaneseq
        %v1364 = vshrl.u32 %v1363, 7
        %v1365 = vsub.s32 0, %v1364
        %v1366 = vrot.slane %v1361, %v1365
        %v1369 = vsel %vm607, %v1356, 0
        %1371 = vmatprep.subr.mxu0 0.0
        %1372 = vmatpush1.msra.mxu0 %v1357
        %1373 = vmatprep.subr.mxu0 0.0
        %1374 = vmatpush1.msra.mxu0 %v1358
        %1375 = vmatprep.subr.mxu0 0.0
        %1376 = vmatpush1.msra.mxu0 %v1359
        %1377 = vmatprep.subr.mxu0 0.0
        %1378 = vmatpush1.msra.mxu0 %v1360
        %1379 = vmatprep.subr.mxu0 0.0
        %1380 = vmatpush1.msra.mxu0 0.0
        %1381 = vmatprep.subr.mxu0 0.0
        %1382 = vmatpush1.msra.mxu0 0.0
        %1383 = vmatprep.subr.mxu0 0.0
        %1384 = vmatpush1.msra.mxu0 0.0
        %1385 = vmatprep.subr.mxu0 0.0
        %1386 = vmatpush1.msra.mxu0 0.0
        %1387 = vmatprep.subr.mxu0 0.0
        %1388 = vmatpush1.msra.mxu0 0.0
        %1389 = vmatprep.subr.mxu0 0.0
        %1390 = vmatpush1.msra.mxu0 0.0
        %1391 = vmatprep.subr.mxu0 0.0
        %1392 = vmatpush1.msra.mxu0 0.0
        %1393 = vmatprep.subr.mxu0 0.0
        %1394 = vmatpush1.msra.mxu0 0.0
        %1395 = vmatprep.subr.mxu0 0.0
        %1396 = vmatpush1.msra.mxu0 0.0
        %1397 = vmatprep.subr.mxu0 0.0
        %1398 = vmatpush1.msra.mxu0 0.0
        %1399 = vmatprep.subr.mxu0 0.0
        %1400 = vmatpush1.msra.mxu0 0.0
        %1401 = vmatprep.subr.mxu0 0.0
        %1402 = vmatpush1.msra.mxu0 0.0
        %1403 = vmatprep.subr.mxu0 0.0
        %1404 = vmatpush1.msra.mxu0 0.0
        %1405 = vmatprep.subr.mxu0 0.0
        %1406 = vmatpush1.msra.mxu0 0.0
        %1407 = vmatprep.subr.mxu0 0.0
        %1408 = vmatpush1.msra.mxu0 0.0
        %1409 = vmatprep.subr.mxu0 0.0
        %1410 = vmatpush1.msra.mxu0 0.0
        %1411 = vmatprep.subr.mxu0 0.0
        %1412 = vmatpush1.msra.mxu0 0.0
        %1413 = vmatprep.subr.mxu0 0.0
        %1414 = vmatpush1.msra.mxu0 0.0
        %1415 = vmatprep.subr.mxu0 0.0
        %1416 = vmatpush1.msra.mxu0 0.0
        %1417 = vmatprep.subr.mxu0 0.0
        %1418 = vmatpush1.msra.mxu0 0.0
        %1419 = vmatprep.subr.mxu0 0.0
        %1420 = vmatpush1.msra.mxu0 0.0
        %1421 = vmatprep.subr.mxu0 0.0
        %1422 = vmatpush1.msra.mxu0 0.0
        %1423 = vmatprep.subr.mxu0 0.0
        %1424 = vmatpush1.msra.mxu0 0.0
        %1425 = vmatprep.subr.mxu0 0.0
        %1426 = vmatpush1.msra.mxu0 0.0
        %1427 = vmatprep.subr.mxu0 0.0
        %1428 = vmatpush1.msra.mxu0 0.0
        %1429 = vmatprep.subr.mxu0 0.0
        %1430 = vmatpush1.msra.mxu0 0.0
        %1431 = vmatprep.subr.mxu0 0.0
        %1432 = vmatpush1.msra.mxu0 0.0
        %1433 = vmatprep.subr.mxu0 0.0
        %1434 = vmatpush1.msra.mxu0 0.0
        %1435 = vmatprep.mubr.f32.mxu0 0.0
        %1436 = vmatmul.mubr.f32.gmra.mrb[0].mxu0 %v1369
        %v1437 = vpop.f32.mrb[0].mxu0
        %v1438 = vadd.f32 %v1366, %v1437
        %v1439 = vpop.f32.mrb[0].mxu0
        %1440 = vdwg.mxu0
        %1441 = vst.msk [vmem:[%s419] sm:$0xff] %vm607, %v1438
        %s1442 = sand.u32 %s244, 1
        %s1443 = scalar_lea.sflag [#allocation6], %s1442
        %s1444 = sand.u32 %s244, 1
        %s1445 = smul.addr %s1444, 8
        %s1446 = scalar_lea.vmem [#allocation13], %s1445
        // Predicated region
        $region81: #{tpu_custom_call.1} parent=55 // pred_check
          %p1447 = pneg %p254
        $region82: #{tpu_custom_call.1} parent=55 // pred_check_branch
          %1449 = sbr.rel (%p1447) target = $region84
        $region83: #{tpu_custom_call.1} parent=55 // pred_region
          %s1451 = ssub.s32 128, 128
          %1452 = vsyncadd %s1443, %s1451
          %s1453 = sadd.s32 %s33, %s32
          %s1454 = smul.addr %s1453, 128
          %s1455 = scalar_lea.hbm %s9, %s1454
          %s1457 = sshll.u32 %s1446, 4
          %s1458 = int_to_ptr.vmem [resolvable:$true] %s1457
          %1460 = dma.vmem_to_hbm [thread:$0]  %s1458, 128, %s1455, %s1443
        $region84: #{tpu_custom_call.1} parent=55 // pred_fallthru
          _
      $region56: #{tpu_custom_call.1} parent=5 // pred_fallthru
        _
      %p1461 = scmp.le.s32.totalorder 2, %s23
      // Predicated region
      $region85: #{tpu_custom_call.1} parent=5 // pred_check
        %p1462 = pneg %p1461
      $region86: #{tpu_custom_call.1} parent=5 // pred_check_branch
        %1464 = sbr.rel (%p1462) target = $region88
      $region87: #{tpu_custom_call.1} parent=5 // pred_region
        %s1465 = ssub.s32 %s23, 2
        // Predicated region
        $region89: #{tpu_custom_call.1} parent=87 // pred_check
          %p1466 = pneg %p260
        $region90: #{tpu_custom_call.1} parent=87 // pred_check_branch
          %1468 = sbr.rel (%p1466) target = $region92
        $region91: #{tpu_custom_call.1} parent=87 // pred_region
          %s1469 = sand.u32 %s245, 1
          %s1470 = scalar_lea.sflag [#allocation6], %s1469
          %s1471 = sand.u32 %s245, 1
          %s1472 = smul.addr %s1471, 8
          %s1473 = scalar_lea.vmem [#allocation13], %s1472
          %1474 = dma.done %s1470, 128
        $region92: #{tpu_custom_call.1} parent=87 // pred_fallthru
          _
      $region88: #{tpu_custom_call.1} parent=5 // pred_fallthru
        _
    $region6: #{tpu_custom_call.1} parent=1 // loop_footer
      %s27 = sadd.s32 1, %s23
    $region7: #{tpu_custom_call.1} parent=1 // loop_footer_branch
      %22 = sbr.rel target = $region3
    $region8: #{tpu_custom_call.1} parent=1 // loop_exit
      _
    %1475 = vsyncpa [#allocation5], 1
    %s1476 = scalar_lea.sflag [#allocation5], 1
    %1477 = vsyncpa %s1476, 1
    %1478 = vsyncpa [#allocation8], 1
    %1479 = vsyncpa [#allocation11], 1
    %1480 = vsyncpa [#allocation6], 1
    %s1481 = scalar_lea.sflag [#allocation6], 1
    %1482 = vsyncpa %s1481, 1

// kernel: tpu_custom_call.1
$region0: #{tpu_custom_call.1}
  #allocation0 [shape = 'u32[]', space=smem, size = 0x4, offset = 0x4, fixed_abs, tag = 'smem constant byte address 0x4 - core index']
  #allocation1 [shape = 'u32[144,128]{1,0:T(1,128)}', space=vmem, size = 0x12000, scoped, tag = 'internal scratch']
  #allocation2 [shape = 'f32[8,32]{1,0:T(8,128)}', space=vmem, size = 0x1000, scoped, tag = 'scratch operand']
  #allocation3 [shape = 'f32[8,32]{1,0:T(8,128)}', space=vmem, size = 0x1000, scoped, tag = 'scratch operand']
  %s0 = inlined_call_operand.hbm [shape: f32[2,8,32], index: 0, kind: input, shape index: {}]
  %s1 = inlined_call_operand.hbm [shape: f32[32,32], index: 1, kind: input, shape index: {}]
  %s2 = inlined_call_operand.hbm [shape: f32[32,32], index: 2, kind: input, shape index: {}]
  %s3 = inlined_call_operand.hbm [shape: f32[32,32], index: 3, kind: input, shape index: {}]
  %s4 = inlined_call_operand.vmem [shape: f32[1,32], index: 4, kind: input, shape index: {}]
  %s5 = inlined_call_operand.vmem [shape: f32[1,32], index: 5, kind: input, shape index: {}]
  %s6 = inlined_call_operand.vmem [shape: f32[1,32], index: 6, kind: input, shape index: {}]
  %s7 = inlined_call_operand.hbm [shape: f32[32,32], index: 7, kind: input, shape index: {}]
  %s8 = inlined_call_operand.vmem [shape: f32[1,32], index: 8, kind: input, shape index: {}]
  %s9 = inlined_call_operand.hbm [shape: f32[2,8,32], index: 9, kind: output, shape index: {}]
  %s10 = sld [smem:[#allocation0]]
  $region93: #{tpu_custom_call.1} parent=0
    _
  %s12 = ssub.s32 1, %s10
  %s13 = scalar_select 0, %s12, %s10
  $region1: #{tpu_custom_call.1} parent=0
    #allocation4 [shape = 'u8[8192]{0}', space=vmem, size = 0x2000, scoped, tag = 'input window, operand 0']
    #allocation5 [shape = 's32[2]{0}', space=sflag, size = 0x8, scoped, tag = 'scoped memory for tpu_custom_call.1']
    #allocation6 [shape = 's32[2]{0}', space=sflag, size = 0x8, scoped, tag = 'scoped memory for tpu_custom_call.1']
    #allocation7 [shape = 'u8[16384]{0}', space=vmem, size = 0x4000, scoped, tag = 'input window, operand 1, single buffered']
    #allocation8 [shape = 's32[1]{0}', space=sflag, size = 0x4, scoped, tag = 'scoped memory for tpu_custom_call.1']
    #allocation9 [shape = 'u8[16384]{0}', space=vmem, size = 0x4000, scoped, tag = 'input window, operand 2, single buffered']
    #allocation10 [shape = 'u8[16384]{0}', space=vmem, size = 0x4000, scoped, tag = 'input window, operand 3, single buffered']
    #allocation11 [shape = 's32[1]{0}', space=sflag, size = 0x4, scoped, tag = 'scoped memory for tpu_custom_call.1']
    #allocation12 [shape = 'u8[16384]{0}', space=vmem, size = 0x4000, scoped, tag = 'input window, operand 7, single buffered']
    #allocation13 [shape = 'u8[8192]{0}', space=vmem, size = 0x2000, scoped, tag = 'output window, operand 0']
    %14 = vsyncpa [#allocation5], 0
    %s15 = scalar_lea.sflag [#allocation5], 1
    %16 = vsyncpa %s15, 0
    %17 = vsyncpa [#allocation8], 0
    %18 = vsyncpa [#allocation11], 0
    %19 = vsyncpa [#allocation6], 0
    %s20 = scalar_lea.sflag [#allocation6], 1
    %21 = vsyncpa %s20, 0
    loop: start=0, step=1, limit=4
    $region2: #{tpu_custom_call.1} parent=1 // loop_pre_header
      _
    $region3: #{tpu_custom_call.1} parent=1 // loop_header
      %s23 = sphi 0, %s27
      %p24 = scmp.ge.s32.totalorder %s23, 4
      %s30 = sphi 0, %s42
      %s31 = sphi 0, %s38
      %s32 = sphi 0, %s30
      %s33 = sphi 0, %s31
      %s34 = sphi 0, %s32
      %s35 = sphi 0, %s33
      %s45 = sphi 0, %s47
      %s48 = sphi 0, %s45
      %s49 = sphi 0, %s48
      %s65 = sphi 0, %s49
      %s69 = sphi 0, %s69
      %s71 = sphi 0, %s69
      %s72 = sphi 0, %s71
      %s86 = sphi 0, %s72
      %s90 = sphi 0, %s90
      %s92 = sphi 0, %s90
      %s93 = sphi 0, %s92
      %s107 = sphi 0, %s93
      %s111 = sphi 0, %s111
      %s113 = sphi 0, %s111
      %s114 = sphi 0, %s113
      %s128 = sphi 0, %s114
      %s132 = sphi 0, %s132
      %s134 = sphi 0, %s132
      %s135 = sphi 0, %s134
      %s149 = sphi 0, %s135
      %s153 = sphi 0, %s153
      %s155 = sphi 0, %s153
      %s156 = sphi 0, %s155
      %s170 = sphi 0, %s156
      %s174 = sphi 0, %s174
      %s176 = sphi 0, %s174
      %s177 = sphi 0, %s176
      %s191 = sphi 0, %s177
      %s195 = sphi 0, %s195
      %s197 = sphi 0, %s195
      %s198 = sphi 0, %s197
      %s212 = sphi 0, %s198
      %s216 = sphi 0, %s216
      %s218 = sphi 0, %s216
      %s219 = sphi 0, %s218
      %s233 = sphi 0, %s219
      %s241 = sphi 0, %s243
      %s244 = sphi 0, %s241
      %s245 = sphi 0, %s244
      %s261 = sphi 0, %s245
    $region4: #{tpu_custom_call.1} parent=1 // loop_header_branch
      %26 = sbr.rel (%p24) target = $region8
    $region5: #{tpu_custom_call.1} parent=1 // loop_body
      %s28 = ssub.s32 %s23, 1
      %s29 = ssub.s32 %s23, 2
      %s36 = sadd.s32 1, %s31
      %p37 = scmp.ge.s32.totalorder %s36, 1
      %s38 = scalar_select %p37, 0, %s36
      %s39 = sadd.s32 1, %s30
      %s40 = scalar_select %p37, %s39, %s30
      %p41 = scmp.ge.s32.totalorder %s40, 2
      %s42 = scalar_select %p41, 0, %s40
      %s43 = ssub.s32 %s30, %s42
      %p44 = scmp.eq.s32.totalorder %s43, 0
      %s46 = sadd.s32 %s45, 1
      %s47 = scalar_select %p44, %s45, %s46
      %p50 = pneg %p44
      %p51 = scmp.eq.s32.totalorder %s23, 1
      %p52 = por %p50, %p51
      %p53 = scmp.ne.s32.totalorder %s45, %s48
      %p54 = scmp.eq.s32.totalorder %s23, 0
      %p55 = por %p53, %p54
      %p56 = scmp.ne.s32.totalorder %s45, %s48
      %p57 = scmp.eq.s32.totalorder %s28, 1
      %p58 = por %p56, %p57
      %p59 = scmp.ne.s32.totalorder %s48, %s49
      %p60 = scmp.eq.s32.totalorder %s28, 0
      %p61 = por %p59, %p60
      %p62 = scmp.ne.s32.totalorder %s48, %s49
      %p63 = scmp.eq.s32.totalorder %s29, 1
      %p64 = por %p62, %p63
      %p66 = scmp.ne.s32.totalorder %s49, %s65
      %p67 = scmp.eq.s32.totalorder %s29, 0
      %p68 = por %p66, %p67
      %s70 = sadd.s32 %s69, 1
      %p73 = scmp.eq.s32.totalorder %s23, 1
      %p74 = scmp.ne.s32.totalorder %s69, %s71
      %p75 = scmp.eq.s32.totalorder %s23, 0
      %p76 = por %p74, %p75
      %p77 = scmp.ne.s32.totalorder %s69, %s71
      %p78 = scmp.eq.s32.totalorder %s28, 1
      %p79 = por %p77, %p78
      %p80 = scmp.ne.s32.totalorder %s71, %s72
      %p81 = scmp.eq.s32.totalorder %s28, 0
      %p82 = por %p80, %p81
      %p83 = scmp.ne.s32.totalorder %s71, %s72
      %p84 = scmp.eq.s32.totalorder %s29, 1
      %p85 = por %p83, %p84
      %p87 = scmp.ne.s32.totalorder %s72, %s86
      %p88 = scmp.eq.s32.totalorder %s29, 0
      %p89 = por %p87, %p88
      %s91 = sadd.s32 %s90, 1
      %p94 = scmp.eq.s32.totalorder %s23, 1
      %p95 = scmp.ne.s32.totalorder %s90, %s92
      %p96 = scmp.eq.s32.totalorder %s23, 0
      %p97 = por %p95, %p96
      %p98 = scmp.ne.s32.totalorder %s90, %s92
      %p99 = scmp.eq.s32.totalorder %s28, 1
      %p100 = por %p98, %p99
      %p101 = scmp.ne.s32.totalorder %s92, %s93
      %p102 = scmp.eq.s32.totalorder %s28, 0
      %p103 = por %p101, %p102
      %p104 = scmp.ne.s32.totalorder %s92, %s93
      %p105 = scmp.eq.s32.totalorder %s29, 1
      %p106 = por %p104, %p105
      %p108 = scmp.ne.s32.totalorder %s93, %s107
      %p109 = scmp.eq.s32.totalorder %s29, 0
      %p110 = por %p108, %p109
      %s112 = sadd.s32 %s111, 1
      %p115 = scmp.eq.s32.totalorder %s23, 1
      %p116 = scmp.ne.s32.totalorder %s111, %s113
      %p117 = scmp.eq.s32.totalorder %s23, 0
      %p118 = por %p116, %p117
      %p119 = scmp.ne.s32.totalorder %s111, %s113
      %p120 = scmp.eq.s32.totalorder %s28, 1
      %p121 = por %p119, %p120
      %p122 = scmp.ne.s32.totalorder %s113, %s114
      %p123 = scmp.eq.s32.totalorder %s28, 0
      %p124 = por %p122, %p123
      %p125 = scmp.ne.s32.totalorder %s113, %s114
      %p126 = scmp.eq.s32.totalorder %s29, 1
      %p127 = por %p125, %p126
      %p129 = scmp.ne.s32.totalorder %s114, %s128
      %p130 = scmp.eq.s32.totalorder %s29, 0
      %p131 = por %p129, %p130
      %s133 = sadd.s32 %s132, 1
      %p136 = scmp.eq.s32.totalorder %s23, 1
      %p137 = scmp.ne.s32.totalorder %s132, %s134
      %p138 = scmp.eq.s32.totalorder %s23, 0
      %p139 = por %p137, %p138
      %p140 = scmp.ne.s32.totalorder %s132, %s134
      %p141 = scmp.eq.s32.totalorder %s28, 1
      %p142 = por %p140, %p141
      %p143 = scmp.ne.s32.totalorder %s134, %s135
      %p144 = scmp.eq.s32.totalorder %s28, 0
      %p145 = por %p143, %p144
      %p146 = scmp.ne.s32.totalorder %s134, %s135
      %p147 = scmp.eq.s32.totalorder %s29, 1
      %p148 = por %p146, %p147
      %p150 = scmp.ne.s32.totalorder %s135, %s149
      %p151 = scmp.eq.s32.totalorder %s29, 0
      %p152 = por %p150, %p151
      %s154 = sadd.s32 %s153, 1
      %p157 = scmp.eq.s32.totalorder %s23, 1
      %p158 = scmp.ne.s32.totalorder %s153, %s155
      %p159 = scmp.eq.s32.totalorder %s23, 0
      %p160 = por %p158, %p159
      %p161 = scmp.ne.s32.totalorder %s153, %s155
      %p162 = scmp.eq.s32.totalorder %s28, 1
      %p163 = por %p161, %p162
      %p164 = scmp.ne.s32.totalorder %s155, %s156
      %p165 = scmp.eq.s32.totalorder %s28, 0
      %p166 = por %p164, %p165
      %p167 = scmp.ne.s32.totalorder %s155, %s156
      %p168 = scmp.eq.s32.totalorder %s29, 1
      %p169 = por %p167, %p168
      %p171 = scmp.ne.s32.totalorder %s156, %s170
      %p172 = scmp.eq.s32.totalorder %s29, 0
      %p173 = por %p171, %p172
      %s175 = sadd.s32 %s174, 1
      %p178 = scmp.eq.s32.totalorder %s23, 1
      %p179 = scmp.ne.s32.totalorder %s174, %s176
      %p180 = scmp.eq.s32.totalorder %s23, 0
      %p181 = por %p179, %p180
      %p182 = scmp.ne.s32.totalorder %s174, %s176
      %p183 = scmp.eq.s32.totalorder %s28, 1
      %p184 = por %p182, %p183
      %p185 = scmp.ne.s32.totalorder %s176, %s177
      %p186 = scmp.eq.s32.totalorder %s28, 0
      %p187 = por %p185, %p186
      %p188 = scmp.ne.s32.totalorder %s176, %s177
      %p189 = scmp.eq.s32.totalorder %s29, 1
      %p190 = por %p188, %p189
      %p192 = scmp.ne.s32.totalorder %s177, %s191
      %p193 = scmp.eq.s32.totalorder %s29, 0
      %p194 = por %p192, %p193
      %s196 = sadd.s32 %s195, 1
      %p199 = scmp.eq.s32.totalorder %s23, 1
      %p200 = scmp.ne.s32.totalorder %s195, %s197
      %p201 = scmp.eq.s32.totalorder %s23, 0
      %p202 = por %p200, %p201
      %p203 = scmp.ne.s32.totalorder %s195, %s197
      %p204 = scmp.eq.s32.totalorder %s28, 1
      %p205 = por %p203, %p204
      %p206 = scmp.ne.s32.totalorder %s197, %s198
      %p207 = scmp.eq.s32.totalorder %s28, 0
      %p208 = por %p206, %p207
      %p209 = scmp.ne.s32.totalorder %s197, %s198
      %p210 = scmp.eq.s32.totalorder %s29, 1
      %p211 = por %p209, %p210
      %p213 = scmp.ne.s32.totalorder %s198, %s212
      %p214 = scmp.eq.s32.totalorder %s29, 0
      %p215 = por %p213, %p214
      %s217 = sadd.s32 %s216, 1
      %p220 = scmp.eq.s32.totalorder %s23, 1
      %p221 = scmp.ne.s32.totalorder %s216, %s218
      %p222 = scmp.eq.s32.totalorder %s23, 0
      %p223 = por %p221, %p222
      %p224 = scmp.ne.s32.totalorder %s216, %s218
      %p225 = scmp.eq.s32.totalorder %s28, 1
      %p226 = por %p224, %p225
      %p227 = scmp.ne.s32.totalorder %s218, %s219
      %p228 = scmp.eq.s32.totalorder %s28, 0
      %p229 = por %p227, %p228
      %p230 = scmp.ne.s32.totalorder %s218, %s219
      %p231 = scmp.eq.s32.totalorder %s29, 1
      %p232 = por %p230, %p231
      %p234 = scmp.ne.s32.totalorder %s219, %s233
      %p235 = scmp.eq.s32.totalorder %s29, 0
      %p236 = por %p234, %p235
      %s237 = ssub.s32 %s30, %s42
      %s238 = ssub.s32 %s31, %s38
      %s239 = sor.u32 %s237, %s238
      %p240 = scmp.eq.s32.totalorder %s239, 0
      %s242 = sadd.s32 %s241, 1
      %s243 = scalar_select %p240, %s241, %s242
      %p246 = pneg %p240
      %p247 = scmp.eq.s32.totalorder %s23, 1
      %p248 = por %p246, %p247
      %p249 = scmp.ne.s32.totalorder %s241, %s244
      %p250 = scmp.eq.s32.totalorder %s23, 0
      %p251 = por %p249, %p250
      %p252 = scmp.ne.s32.totalorder %s241, %s244
      %p253 = scmp.eq.s32.totalorder %s28, 1
      %p254 = por %p252, %p253
      %p255 = scmp.ne.s32.totalorder %s244, %s245
      %p256 = scmp.eq.s32.totalorder %s28, 0
      %p257 = por %p255, %p256
      %p258 = scmp.ne.s32.totalorder %s244, %s245
      %p259 = scmp.eq.s32.totalorder %s29, 1
      %p260 = por %p258, %p259
      %p262 = scmp.ne.s32.totalorder %s245, %s261
      %p263 = scmp.eq.s32.totalorder %s29, 0
      %p264 = por %p262, %p263
      %p265 = scmp.le.s32.totalorder 1, %s23
      %p266 = scmp.lt.s32.totalorder %s23, 3
      %p267 = pnand %p265, %p266
      %p268 = pneg %p267
      // Predicated region
      $region9: #{tpu_custom_call.1} parent=5 // pred_check
        _
      $region10: #{tpu_custom_call.1} parent=5 // pred_check_branch
        %270 = sbr.rel (%p267) target = $region12
      $region11: #{tpu_custom_call.1} parent=5 // pred_region
        %s271 = ssub.s32 %s23, 1
        // Predicated region
        $region13: #{tpu_custom_call.1} parent=11 // pred_check
          %p272 = pneg %p82
        $region14: #{tpu_custom_call.1} parent=11 // pred_check_branch
          %274 = sbr.rel (%p272) target = $region16
        $region15: #{tpu_custom_call.1} parent=11 // pred_region
          %s276 = ssub.s32 512, 512
          %277 = vsyncadd [#allocation8], %s276
          %s278 = sshll.u32 [#allocation7], 4
          %s279 = int_to_ptr.vmem [resolvable:$true] %s278
          %284 = dma.hbm_to_vmem [thread:$0]  %s1, 512, %s279, [#allocation8], 128, 128, 8
        $region16: #{tpu_custom_call.1} parent=11 // pred_fallthru
          _
        // Predicated region
        $region17: #{tpu_custom_call.1} parent=11 // pred_check
          %p285 = pneg %p103
        $region18: #{tpu_custom_call.1} parent=11 // pred_check_branch
          %287 = sbr.rel (%p285) target = $region20
        $region19: #{tpu_custom_call.1} parent=11 // pred_region
          %s289 = ssub.s32 512, 512
          %290 = vsyncadd [#allocation8], %s289
          %s291 = sshll.u32 [#allocation9], 4
          %s292 = int_to_ptr.vmem [resolvable:$true] %s291
          %297 = dma.hbm_to_vmem [thread:$0]  %s2, 512, %s292, [#allocation8], 128, 128, 8
        $region20: #{tpu_custom_call.1} parent=11 // pred_fallthru
          _
        // Predicated region
        $region21: #{tpu_custom_call.1} parent=11 // pred_check
          %p298 = pneg %p124
        $region22: #{tpu_custom_call.1} parent=11 // pred_check_branch
          %300 = sbr.rel (%p298) target = $region24
        $region23: #{tpu_custom_call.1} parent=11 // pred_region
          %s302 = ssub.s32 512, 512
          %303 = vsyncadd [#allocation11], %s302
          %s304 = sshll.u32 [#allocation10], 4
          %s305 = int_to_ptr.vmem [resolvable:$true] %s304
          %310 = dma.hbm_to_vmem [thread:$0]  %s3, 512, %s305, [#allocation11], 128, 128, 8
        $region24: #{tpu_custom_call.1} parent=11 // pred_fallthru
          _
        // Predicated region
        $region25: #{tpu_custom_call.1} parent=11 // pred_check
          %p311 = pneg %p145
        $region26: #{tpu_custom_call.1} parent=11 // pred_check_branch
          %313 = sbr.rel (%p311) target = $region28
        $region27: #{tpu_custom_call.1} parent=11 // pred_region
          _
        $region28: #{tpu_custom_call.1} parent=11 // pred_fallthru
          _
        // Predicated region
        $region29: #{tpu_custom_call.1} parent=11 // pred_check
          %p314 = pneg %p166
        $region30: #{tpu_custom_call.1} parent=11 // pred_check_branch
          %316 = sbr.rel (%p314) target = $region32
        $region31: #{tpu_custom_call.1} parent=11 // pred_region
          _
        $region32: #{tpu_custom_call.1} parent=11 // pred_fallthru
          _
        // Predicated region
        $region33: #{tpu_custom_call.1} parent=11 // pred_check
          %p317 = pneg %p187
        $region34: #{tpu_custom_call.1} parent=11 // pred_check_branch
          %319 = sbr.rel (%p317) target = $region36
        $region35: #{tpu_custom_call.1} parent=11 // pred_region
          _
        $region36: #{tpu_custom_call.1} parent=11 // pred_fallthru
          _
        // Predicated region
        $region37: #{tpu_custom_call.1} parent=11 // pred_check
          %p320 = pneg %p208
        $region38: #{tpu_custom_call.1} parent=11 // pred_check_branch
          %322 = sbr.rel (%p320) target = $region40
        $region39: #{tpu_custom_call.1} parent=11 // pred_region
          %s324 = ssub.s32 512, 512
          %325 = vsyncadd [#allocation11], %s324
          %s326 = sshll.u32 [#allocation12], 4
          %s327 = int_to_ptr.vmem [resolvable:$true] %s326
          %332 = dma.hbm_to_vmem [thread:$0]  %s7, 512, %s327, [#allocation11], 128, 128, 8
        $region40: #{tpu_custom_call.1} parent=11 // pred_fallthru
          _
        // Predicated region
        $region41: #{tpu_custom_call.1} parent=11 // pred_check
          %p333 = pneg %p229
        $region42: #{tpu_custom_call.1} parent=11 // pred_check_branch
          %335 = sbr.rel (%p333) target = $region44
        $region43: #{tpu_custom_call.1} parent=11 // pred_region
          _
        $region44: #{tpu_custom_call.1} parent=11 // pred_fallthru
          _
      $region12: #{tpu_custom_call.1} parent=5 // pred_fallthru
        _
      %p336 = scmp.lt.s32.totalorder %s23, 2
      // Predicated region
      $region45: #{tpu_custom_call.1} parent=5 // pred_check
        %p337 = pneg %p336
      $region46: #{tpu_custom_call.1} parent=5 // pred_check_branch
        %339 = sbr.rel (%p337) target = $region48
      $region47: #{tpu_custom_call.1} parent=5 // pred_region
        // Predicated region
        $region49: #{tpu_custom_call.1} parent=47 // pred_check
          %p340 = pneg %p55
        $region50: #{tpu_custom_call.1} parent=47 // pred_check_branch
          %342 = sbr.rel (%p340) target = $region52
        $region51: #{tpu_custom_call.1} parent=47 // pred_region
          %s343 = sand.u32 %s45, 1
          %s344 = scalar_lea.sflag [#allocation5], %s343
          %s345 = sand.u32 %s45, 1
          %s346 = smul.addr %s345, 8
          %s347 = scalar_lea.vmem [#allocation4], %s346
          %s349 = ssub.s32 128, 128
          %350 = vsyncadd %s344, %s349
          %s351 = smul.addr %s30, 128
          %s352 = scalar_lea.hbm %s0, %s351
          %s354 = sshll.u32 %s347, 4
          %s355 = int_to_ptr.vmem [resolvable:$true] %s354
          %357 = dma.hbm_to_vmem [thread:$0]  %s352, 128, %s355, %s344
        $region52: #{tpu_custom_call.1} parent=47 // pred_fallthru
          _
      $region48: #{tpu_custom_call.1} parent=5 // pred_fallthru
        _
      %p358 = scmp.le.s32.totalorder 1, %s23
      %p359 = scmp.lt.s32.totalorder %s23, 3
      %p360 = pnand %p358, %p359
      %p361 = pneg %p360
      // Predicated region
      $region53: #{tpu_custom_call.1} parent=5 // pred_check
        _
      $region54: #{tpu_custom_call.1} parent=5 // pred_check_branch
        %363 = sbr.rel (%p360) target = $region56
      $region55: #{tpu_custom_call.1} parent=5 // pred_region
        %s364 = ssub.s32 %s23, 1
        %s365 = sand.u32 %s48, 1
        %s366 = scalar_lea.sflag [#allocation5], %s365
        %s367 = sand.u32 %s48, 1
        %s368 = smul.addr %s367, 8
        %s369 = scalar_lea.vmem [#allocation4], %s368
        // Predicated region
        $region57: #{tpu_custom_call.1} parent=55 // pred_check
          %p370 = pneg %p61
        $region58: #{tpu_custom_call.1} parent=55 // pred_check_branch
          %372 = sbr.rel (%p370) target = $region60
        $region59: #{tpu_custom_call.1} parent=55 // pred_region
          %373 = dma.done %s366, 128
        $region60: #{tpu_custom_call.1} parent=55 // pred_fallthru
          _
        // Predicated region
        $region61: #{tpu_custom_call.1} parent=55 // pred_check
          %p374 = pneg %p82
        $region62: #{tpu_custom_call.1} parent=55 // pred_check_branch
          %376 = sbr.rel (%p374) target = $region64
        $region63: #{tpu_custom_call.1} parent=55 // pred_region
          %377 = dma.done [#allocation8], 512
        $region64: #{tpu_custom_call.1} parent=55 // pred_fallthru
          _
        // Predicated region
        $region65: #{tpu_custom_call.1} parent=55 // pred_check
          %p378 = pneg %p103
        $region66: #{tpu_custom_call.1} parent=55 // pred_check_branch
          %380 = sbr.rel (%p378) target = $region68
        $region67: #{tpu_custom_call.1} parent=55 // pred_region
          %381 = dma.done [#allocation8], 512
        $region68: #{tpu_custom_call.1} parent=55 // pred_fallthru
          _
        // Predicated region
        $region69: #{tpu_custom_call.1} parent=55 // pred_check
          %p382 = pneg %p124
        $region70: #{tpu_custom_call.1} parent=55 // pred_check_branch
          %384 = sbr.rel (%p382) target = $region72
        $region71: #{tpu_custom_call.1} parent=55 // pred_region
          %385 = dma.done [#allocation11], 512
        $region72: #{tpu_custom_call.1} parent=55 // pred_fallthru
          _
        // Predicated region
        $region73: #{tpu_custom_call.1} parent=55 // pred_check
          %p386 = pneg %p208
        $region74: #{tpu_custom_call.1} parent=55 // pred_check_branch
          %388 = sbr.rel (%p386) target = $region76
        $region75: #{tpu_custom_call.1} parent=55 // pred_region
          %389 = dma.done [#allocation11], 512
        $region76: #{tpu_custom_call.1} parent=55 // pred_fallthru
          _
        %s390 = sand.u32 %s48, 1
        %s391 = scalar_lea.sflag [#allocation5], %s390
        %s392 = sand.u32 %s48, 1
        %s393 = smul.addr %s392, 8
        %s394 = scalar_lea.vmem [#allocation4], %s393
        %p395 = pneg %p61
        %p396 = pneg %p58
        %p397 = pneg %p82
        %p398 = pneg %p79
        %p399 = pneg %p103
        %p400 = pneg %p100
        %p401 = pneg %p124
        %p402 = pneg %p121
        %p403 = pneg %p145
        %p404 = pneg %p142
        %p405 = pneg %p166
        %p406 = pneg %p163
        %p407 = pneg %p187
        %p408 = pneg %p184
        %p409 = pneg %p208
        %p410 = pneg %p205
        %p411 = pneg %p229
        %p412 = pneg %p226
        %p413 = pneg %p257
        %p414 = pneg %p254
        %s415 = sand.u32 %s244, 1
        %s416 = scalar_lea.sflag [#allocation6], %s415
        %s417 = sand.u32 %s244, 1
        %s418 = smul.addr %s417, 8
        %s419 = scalar_lea.vmem [#allocation13], %s418
        %p420 = scmp.eq.s32.totalorder %s33, 0
        // Predicated region
        $region77: #{tpu_custom_call.1} parent=55 // pred_check
          %p421 = pneg %p420
        $region78: #{tpu_custom_call.1} parent=55 // pred_check_branch
          %423 = sbr.rel (%p421) target = $region80
        $region79: #{tpu_custom_call.1} parent=55 // pred_region
          %v424 = vld [vmem:[%s369] sm:$0xff]
          %v425 = vld [vmem:[#allocation9] sm:$0xff]
          %v426 = vld [vmem:[#allocation9 + $0x8] sm:$0xff]
          %v427 = vld [vmem:[#allocation9 + $0x10] sm:$0xff]
          %v428 = vld [vmem:[#allocation9 + $0x18] sm:$0xff]
          %v429 = vld [vmem:[%s5] sm:$0x1]
          %v431 = vlaneseq
          %v432 = vshrl.u32 %v431, 7
          %v433 = vsub.s32 0, %v432
          %v434 = vrot.slane %v429, %v433
          %vm436 = vcmask 261120
          %v438 = vsel %vm436, %v424, 0
          %440 = vmatprep.subr.mxu0 0.0
          %441 = vmatpush1.msra.mxu0 %v425
          %442 = vmatprep.subr.mxu0 0.0
          %443 = vmatpush1.msra.mxu0 %v426
          %444 = vmatprep.subr.mxu0 0.0
          %445 = vmatpush1.msra.mxu0 %v427
          %446 = vmatprep.subr.mxu0 0.0
          %447 = vmatpush1.msra.mxu0 %v428
          %448 = vmatprep.subr.mxu0 0.0
          %449 = vmatpush1.msra.mxu0 0.0
          %450 = vmatprep.subr.mxu0 0.0
          %451 = vmatpush1.msra.mxu0 0.0
          %452 = vmatprep.subr.mxu0 0.0
          %453 = vmatpush1.msra.mxu0 0.0
          %454 = vmatprep.subr.mxu0 0.0
          %455 = vmatpush1.msra.mxu0 0.0
          %456 = vmatprep.subr.mxu0 0.0
          %457 = vmatpush1.msra.mxu0 0.0
          %458 = vmatprep.subr.mxu0 0.0
          %459 = vmatpush1.msra.mxu0 0.0
          %460 = vmatprep.subr.mxu0 0.0
          %461 = vmatpush1.msra.mxu0 0.0
          %462 = vmatprep.subr.mxu0 0.0
          %463 = vmatpush1.msra.mxu0 0.0
          %464 = vmatprep.subr.mxu0 0.0
          %465 = vmatpush1.msra.mxu0 0.0
          %466 = vmatprep.subr.mxu0 0.0
          %467 = vmatpush1.msra.mxu0 0.0
          %468 = vmatprep.subr.mxu0 0.0
          %469 = vmatpush1.msra.mxu0 0.0
          %470 = vmatprep.subr.mxu0 0.0
          %471 = vmatpush1.msra.mxu0 0.0
          %472 = vmatprep.subr.mxu0 0.0
          %473 = vmatpush1.msra.mxu0 0.0
          %474 = vmatprep.subr.mxu0 0.0
          %475 = vmatpush1.msra.mxu0 0.0
          %476 = vmatprep.subr.mxu0 0.0
          %477 = vmatpush1.msra.mxu0 0.0
          %478 = vmatprep.subr.mxu0 0.0
          %479 = vmatpush1.msra.mxu0 0.0
          %480 = vmatprep.subr.mxu0 0.0
          %481 = vmatpush1.msra.mxu0 0.0
          %482 = vmatprep.subr.mxu0 0.0
          %483 = vmatpush1.msra.mxu0 0.0
          %484 = vmatprep.subr.mxu0 0.0
          %485 = vmatpush1.msra.mxu0 0.0
          %486 = vmatprep.subr.mxu0 0.0
          %487 = vmatpush1.msra.mxu0 0.0
          %488 = vmatprep.subr.mxu0 0.0
          %489 = vmatpush1.msra.mxu0 0.0
          %490 = vmatprep.subr.mxu0 0.0
          %491 = vmatpush1.msra.mxu0 0.0
          %492 = vmatprep.subr.mxu0 0.0
          %493 = vmatpush1.msra.mxu0 0.0
          %494 = vmatprep.subr.mxu0 0.0
          %495 = vmatpush1.msra.mxu0 0.0
          %496 = vmatprep.subr.mxu0 0.0
          %497 = vmatpush1.msra.mxu0 0.0
          %498 = vmatprep.subr.mxu0 0.0
          %499 = vmatpush1.msra.mxu0 0.0
          %500 = vmatprep.subr.mxu0 0.0
          %501 = vmatpush1.msra.mxu0 0.0
          %502 = vmatprep.subr.mxu0 0.0
          %503 = vmatpush1.msra.mxu0 0.0
          %504 = vmatprep.mubr.f32.mxu0 0.0
          %505 = vmatmul.mubr.f32.gmra.mrb[0].mxu0 %v438
          %v506 = vpop.f32.mrb[0].mxu0
          %v507 = vadd.f32 %v434, %v506
          %v508 = vpop.f32.mrb[0].mxu0
          %509 = vdwg.mxu0
          %510 = vst.msk [vmem:[#allocation2] sm:$0xff] %vm436, %v507
          %v511 = vld [vmem:[#allocation10] sm:$0xff]
          %v512 = vld [vmem:[#allocation10 + $0x8] sm:$0xff]
          %v513 = vld [vmem:[#allocation10 + $0x10] sm:$0xff]
          %v514 = vld [vmem:[#allocation10 + $0x18] sm:$0xff]
          %v515 = vld [vmem:[%s6] sm:$0x1]
          %v517 = vlaneseq
          %v518 = vshrl.u32 %v517, 7
          %v519 = vsub.s32 0, %v518
          %v520 = vrot.slane %v515, %v519
          %522 = vmatprep.subr.mxu0 0.0
          %523 = vmatpush1.msra.mxu0 %v511
          %524 = vmatprep.subr.mxu0 0.0
          %525 = vmatpush1.msra.mxu0 %v512
          %526 = vmatprep.subr.mxu0 0.0
          %527 = vmatpush1.msra.mxu0 %v513
          %528 = vmatprep.subr.mxu0 0.0
          %529 = vmatpush1.msra.mxu0 %v514
          %530 = vmatprep.subr.mxu0 0.0
          %531 = vmatpush1.msra.mxu0 0.0
          %532 = vmatprep.subr.mxu0 0.0
          %533 = vmatpush1.msra.mxu0 0.0
          %534 = vmatprep.subr.mxu0 0.0
          %535 = vmatpush1.msra.mxu0 0.0
          %536 = vmatprep.subr.mxu0 0.0
          %537 = vmatpush1.msra.mxu0 0.0
          %538 = vmatprep.subr.mxu0 0.0
          %539 = vmatpush1.msra.mxu0 0.0
          %540 = vmatprep.subr.mxu0 0.0
          %541 = vmatpush1.msra.mxu0 0.0
          %542 = vmatprep.subr.mxu0 0.0
          %543 = vmatpush1.msra.mxu0 0.0
          %544 = vmatprep.subr.mxu0 0.0
          %545 = vmatpush1.msra.mxu0 0.0
          %546 = vmatprep.subr.mxu0 0.0
          %547 = vmatpush1.msra.mxu0 0.0
          %548 = vmatprep.subr.mxu0 0.0
          %549 = vmatpush1.msra.mxu0 0.0
          %550 = vmatprep.subr.mxu0 0.0
          %551 = vmatpush1.msra.mxu0 0.0
          %552 = vmatprep.subr.mxu0 0.0
          %553 = vmatpush1.msra.mxu0 0.0
          %554 = vmatprep.subr.mxu0 0.0
          %555 = vmatpush1.msra.mxu0 0.0
          %556 = vmatprep.subr.mxu0 0.0
          %557 = vmatpush1.msra.mxu0 0.0
          %558 = vmatprep.subr.mxu0 0.0
          %559 = vmatpush1.msra.mxu0 0.0
          %560 = vmatprep.subr.mxu0 0.0
          %561 = vmatpush1.msra.mxu0 0.0
          %562 = vmatprep.subr.mxu0 0.0
          %563 = vmatpush1.msra.mxu0 0.0
          %564 = vmatprep.subr.mxu0 0.0
          %565 = vmatpush1.msra.mxu0 0.0
          %566 = vmatprep.subr.mxu0 0.0
          %567 = vmatpush1.msra.mxu0 0.0
          %568 = vmatprep.subr.mxu0 0.0
          %569 = vmatpush1.msra.mxu0 0.0
          %570 = vmatprep.subr.mxu0 0.0
          %571 = vmatpush1.msra.mxu0 0.0
          %572 = vmatprep.subr.mxu0 0.0
          %573 = vmatpush1.msra.mxu0 0.0
          %574 = vmatprep.subr.mxu0 0.0
          %575 = vmatpush1.msra.mxu0 0.0
          %576 = vmatprep.subr.mxu0 0.0
          %577 = vmatpush1.msra.mxu0 0.0
          %578 = vmatprep.subr.mxu0 0.0
          %579 = vmatpush1.msra.mxu0 0.0
          %580 = vmatprep.subr.mxu0 0.0
          %581 = vmatpush1.msra.mxu0 0.0
          %582 = vmatprep.subr.mxu0 0.0
          %583 = vmatpush1.msra.mxu0 0.0
          %584 = vmatprep.subr.mxu0 0.0
          %585 = vmatpush1.msra.mxu0 0.0
          %586 = vmatprep.mubr.f32.mxu0 0.0
          %587 = vmatmul.mubr.f32.gmra.mrb[0].mxu0 %v438
          %v588 = vpop.f32.mrb[0].mxu0
          %v589 = vadd.f32 %v520, %v588
          %v590 = vpop.f32.mrb[0].mxu0
          %591 = vdwg.mxu0
          %592 = vst.msk [vmem:[#allocation3] sm:$0xff] %vm436, %v589
        $region80: #{tpu_custom_call.1} parent=55 // pred_fallthru
          _
        %s593 = smul.u32 %s33, 8
        %s594 = scalar_lea.vmem %s369, %s593 [#allocation4]
        %v595 = vld [vmem:[%s594] sm:$0xff]
        %v596 = vld [vmem:[#allocation7] sm:$0xff]
        %v597 = vld [vmem:[#allocation7 + $0x8] sm:$0xff]
        %v598 = vld [vmem:[#allocation7 + $0x10] sm:$0xff]
        %v599 = vld [vmem:[#allocation7 + $0x18] sm:$0xff]
        %v600 = vld [vmem:[%s4] sm:$0x1]
        %v602 = vlaneseq
        %v603 = vshrl.u32 %v602, 7
        %v604 = vsub.s32 0, %v603
        %v605 = vrot.slane %v600, %v604
        %vm607 = vcmask 261120
        %v609 = vsel %vm607, %v595, 0
        %611 = vmatprep.subr.mxu0 0.0
        %612 = vmatpush1.msra.mxu0 %v596
        %613 = vmatprep.subr.mxu0 0.0
        %614 = vmatpush1.msra.mxu0 %v597
        %615 = vmatprep.subr.mxu0 0.0
        %616 = vmatpush1.msra.mxu0 %v598
        %617 = vmatprep.subr.mxu0 0.0
        %618 = vmatpush1.msra.mxu0 %v599
        %619 = vmatprep.subr.mxu0 0.0
        %620 = vmatpush1.msra.mxu0 0.0
        %621 = vmatprep.subr.mxu0 0.0
        %622 = vmatpush1.msra.mxu0 0.0
        %623 = vmatprep.subr.mxu0 0.0
        %624 = vmatpush1.msra.mxu0 0.0
        %625 = vmatprep.subr.mxu0 0.0
        %626 = vmatpush1.msra.mxu0 0.0
        %627 = vmatprep.subr.mxu0 0.0
        %628 = vmatpush1.msra.mxu0 0.0
        %629 = vmatprep.subr.mxu0 0.0
        %630 = vmatpush1.msra.mxu0 0.0
        %631 = vmatprep.subr.mxu0 0.0
        %632 = vmatpush1.msra.mxu0 0.0
        %633 = vmatprep.subr.mxu0 0.0
        %634 = vmatpush1.msra.mxu0 0.0
        %635 = vmatprep.subr.mxu0 0.0
        %636 = vmatpush1.msra.mxu0 0.0
        %637 = vmatprep.subr.mxu0 0.0
        %638 = vmatpush1.msra.mxu0 0.0
        %639 = vmatprep.subr.mxu0 0.0
        %640 = vmatpush1.msra.mxu0 0.0
        %641 = vmatprep.subr.mxu0 0.0
        %642 = vmatpush1.msra.mxu0 0.0
        %643 = vmatprep.subr.mxu0 0.0
        %644 = vmatpush1.msra.mxu0 0.0
        %645 = vmatprep.subr.mxu0 0.0
        %646 = vmatpush1.msra.mxu0 0.0
        %647 = vmatprep.subr.mxu0 0.0
        %648 = vmatpush1.msra.mxu0 0.0
        %649 = vmatprep.subr.mxu0 0.0
        %650 = vmatpush1.msra.mxu0 0.0
        %651 = vmatprep.subr.mxu0 0.0
        %652 = vmatpush1.msra.mxu0 0.0
        %653 = vmatprep.subr.mxu0 0.0
        %654 = vmatpush1.msra.mxu0 0.0
        %655 = vmatprep.subr.mxu0 0.0
        %656 = vmatpush1.msra.mxu0 0.0
        %657 = vmatprep.subr.mxu0 0.0
        %658 = vmatpush1.msra.mxu0 0.0
        %659 = vmatprep.subr.mxu0 0.0
        %660 = vmatpush1.msra.mxu0 0.0
        %661 = vmatprep.subr.mxu0 0.0
        %662 = vmatpush1.msra.mxu0 0.0
        %663 = vmatprep.subr.mxu0 0.0
        %664 = vmatpush1.msra.mxu0 0.0
        %665 = vmatprep.subr.mxu0 0.0
        %666 = vmatpush1.msra.mxu0 0.0
        %667 = vmatprep.subr.mxu0 0.0
        %668 = vmatpush1.msra.mxu0 0.0
        %669 = vmatprep.subr.mxu0 0.0
        %670 = vmatpush1.msra.mxu0 0.0
        %671 = vmatprep.subr.mxu0 0.0
        %672 = vmatpush1.msra.mxu0 0.0
        %673 = vmatprep.subr.mxu0 0.0
        %674 = vmatpush1.msra.mxu0 0.0
        %675 = vmatprep.mubr.f32.mxu0 0.0
        %676 = vmatmul.mubr.f32.gmra.mrb[0].mxu0 %v609
        %v677 = vpop.f32.mrb[0].mxu0
        %v678 = vadd.f32 %v605, %v677
        %v679 = vpop.f32.mrb[0].mxu0
        %680 = vdwg.mxu0
        %v681 = vld [vmem:[#allocation2] sm:$0xff]
        %v682 = vld [vmem:[#allocation3] sm:$0xff]
        %vm683 = vcmask 64512
        %v685 = vsel %vm683, %v678, 0
        %v688 = vsel %vm683, %v681, 0
        %690 = vmatprep.subr.mxu0 0.0
        %691 = vmatpush1.xpose.msra.mxu0 %v688
        %692 = vmatprep.subr.mxu0 0.0
        %693 = vmatpush1.xpose.msra.mxu0 0.0
        %694 = vmatprep.subr.mxu0 0.0
        %695 = vmatpush1.xpose.msra.mxu0 0.0
        %696 = vmatprep.subr.mxu0 0.0
        %697 = vmatpush1.xpose.msra.mxu0 0.0
        %698 = vmatprep.subr.mxu0 0.0
        %699 = vmatpush1.xpose.msra.mxu0 0.0
        %700 = vmatprep.subr.mxu0 0.0
        %701 = vmatpush1.xpose.msra.mxu0 0.0
        %702 = vmatprep.subr.mxu0 0.0
        %703 = vmatpush1.xpose.msra.mxu0 0.0
        %704 = vmatprep.subr.mxu0 0.0
        %705 = vmatpush1.xpose.msra.mxu0 0.0
        %706 = vmatprep.subr.mxu0 0.0
        %707 = vmatpush1.xpose.msra.mxu0 0.0
        %708 = vmatprep.subr.mxu0 0.0
        %709 = vmatpush1.xpose.msra.mxu0 0.0
        %710 = vmatprep.subr.mxu0 0.0
        %711 = vmatpush1.xpose.msra.mxu0 0.0
        %712 = vmatprep.subr.mxu0 0.0
        %713 = vmatpush1.xpose.msra.mxu0 0.0
        %714 = vmatprep.subr.mxu0 0.0
        %715 = vmatpush1.xpose.msra.mxu0 0.0
        %716 = vmatprep.subr.mxu0 0.0
        %717 = vmatpush1.xpose.msra.mxu0 0.0
        %718 = vmatprep.subr.mxu0 0.0
        %719 = vmatpush1.xpose.msra.mxu0 0.0
        %720 = vmatprep.subr.mxu0 0.0
        %721 = vmatpush1.xpose.msra.mxu0 0.0
        %722 = vmatprep.subr.mxu0 0.0
        %723 = vmatpush1.xpose.msra.mxu0 0.0
        %724 = vmatprep.subr.mxu0 0.0
        %725 = vmatpush1.xpose.msra.mxu0 0.0
        %726 = vmatprep.subr.mxu0 0.0
        %727 = vmatpush1.xpose.msra.mxu0 0.0
        %728 = vmatprep.subr.mxu0 0.0
        %729 = vmatpush1.xpose.msra.mxu0 0.0
        %730 = vmatprep.subr.mxu0 0.0
        %731 = vmatpush1.xpose.msra.mxu0 0.0
        %732 = vmatprep.subr.mxu0 0.0
        %733 = vmatpush1.xpose.msra.mxu0 0.0
        %734 = vmatprep.subr.mxu0 0.0
        %735 = vmatpush1.xpose.msra.mxu0 0.0
        %736 = vmatprep.subr.mxu0 0.0
        %737 = vmatpush1.xpose.msra.mxu0 0.0
        %738 = vmatprep.subr.mxu0 0.0
        %739 = vmatpush1.xpose.msra.mxu0 0.0
        %740 = vmatprep.subr.mxu0 0.0
        %741 = vmatpush1.xpose.msra.mxu0 0.0
        %742 = vmatprep.subr.mxu0 0.0
        %743 = vmatpush1.xpose.msra.mxu0 0.0
        %744 = vmatprep.subr.mxu0 0.0
        %745 = vmatpush1.xpose.msra.mxu0 0.0
        %746 = vmatprep.subr.mxu0 0.0
        %747 = vmatpush1.xpose.msra.mxu0 0.0
        %748 = vmatprep.subr.mxu0 0.0
        %749 = vmatpush1.xpose.msra.mxu0 0.0
        %750 = vmatprep.subr.mxu0 0.0
        %751 = vmatpush1.xpose.msra.mxu0 0.0
        %752 = vmatprep.subr.mxu0 0.0
        %753 = vmatpush1.xpose.msra.mxu0 0.0
        %754 = vmatprep.mubr.f32.mxu0 0.0
        %755 = vmatmul.mubr.f32.gmra.mrb[0].mxu0 %v685
        %v756 = vpop.f32.mrb[0].mxu0
        %v757 = vadd.f32 0.0, %v756
        %v758 = vpop.f32.mrb[0].mxu0
        %759 = vdwg.mxu0
        %v760 = vsel %vm683, %v757, -inf
        %761 = vmax.xlane.f32.xlu0 %v760
        %v762 = vpop.xlane.xlu0 %761
        %v763 = vsub.f32 %v757, %v762
        %v764 = vmul.f32 %v763, 1.442695
        %v765 = vpow.pop %v764
        %v766 = vsel %vm683, %v765, 0.0
        %767 = vadd.xlane.f32.xlu0 %v766
        %v768 = vpop.xlane.xlu0 %767
        %v770 = vsel %vm683, %v765, 0
        %772 = vmatprep.subr.mxu0 0.0
        %773 = vmatpush1.msra.mxu0 %v682
        %774 = vmatprep.subr.mxu0 0.0
        %775 = vmatpush1.msra.mxu0 0.0
        %776 = vmatprep.subr.mxu0 0.0
        %777 = vmatpush1.msra.mxu0 0.0
        %778 = vmatprep.subr.mxu0 0.0
        %779 = vmatpush1.msra.mxu0 0.0
        %780 = vmatprep.subr.mxu0 0.0
        %781 = vmatpush1.msra.mxu0 0.0
        %782 = vmatprep.subr.mxu0 0.0
        %783 = vmatpush1.msra.mxu0 0.0
        %784 = vmatprep.subr.mxu0 0.0
        %785 = vmatpush1.msra.mxu0 0.0
        %786 = vmatprep.subr.mxu0 0.0
        %787 = vmatpush1.msra.mxu0 0.0
        %788 = vmatprep.subr.mxu0 0.0
        %789 = vmatpush1.msra.mxu0 0.0
        %790 = vmatprep.subr.mxu0 0.0
        %791 = vmatpush1.msra.mxu0 0.0
        %792 = vmatprep.subr.mxu0 0.0
        %793 = vmatpush1.msra.mxu0 0.0
        %794 = vmatprep.subr.mxu0 0.0
        %795 = vmatpush1.msra.mxu0 0.0
        %796 = vmatprep.subr.mxu0 0.0
        %797 = vmatpush1.msra.mxu0 0.0
        %798 = vmatprep.subr.mxu0 0.0
        %799 = vmatpush1.msra.mxu0 0.0
        %800 = vmatprep.subr.mxu0 0.0
        %801 = vmatpush1.msra.mxu0 0.0
        %802 = vmatprep.subr.mxu0 0.0
        %803 = vmatpush1.msra.mxu0 0.0
        %804 = vmatprep.subr.mxu0 0.0
        %805 = vmatpush1.msra.mxu0 0.0
        %806 = vmatprep.subr.mxu0 0.0
        %807 = vmatpush1.msra.mxu0 0.0
        %808 = vmatprep.subr.mxu0 0.0
        %809 = vmatpush1.msra.mxu0 0.0
        %810 = vmatprep.subr.mxu0 0.0
        %811 = vmatpush1.msra.mxu0 0.0
        %812 = vmatprep.subr.mxu0 0.0
        %813 = vmatpush1.msra.mxu0 0.0
        %814 = vmatprep.subr.mxu0 0.0
        %815 = vmatpush1.msra.mxu0 0.0
        %816 = vmatprep.subr.mxu0 0.0
        %817 = vmatpush1.msra.mxu0 0.0
        %818 = vmatprep.subr.mxu0 0.0
        %819 = vmatpush1.msra.mxu0 0.0
        %820 = vmatprep.subr.mxu0 0.0
        %821 = vmatpush1.msra.mxu0 0.0
        %822 = vmatprep.subr.mxu0 0.0
        %823 = vmatpush1.msra.mxu0 0.0
        %824 = vmatprep.subr.mxu0 0.0
        %825 = vmatpush1.msra.mxu0 0.0
        %826 = vmatprep.subr.mxu0 0.0
        %827 = vmatpush1.msra.mxu0 0.0
        %828 = vmatprep.subr.mxu0 0.0
        %829 = vmatpush1.msra.mxu0 0.0
        %830 = vmatprep.subr.mxu0 0.0
        %831 = vmatpush1.msra.mxu0 0.0
        %832 = vmatprep.subr.mxu0 0.0
        %833 = vmatpush1.msra.mxu0 0.0
        %834 = vmatprep.subr.mxu0 0.0
        %835 = vmatpush1.msra.mxu0 0.0
        %836 = vmatprep.mubr.f32.mxu0 0.0
        %837 = vmatmul.mubr.f32.gmra.mrb[0].mxu0 %v770
        %v838 = vpop.f32.mrb[0].mxu0
        %v839 = vadd.f32 0.0, %v838
        %v840 = vpop.f32.mrb[0].mxu0
        %841 = vdwg.mxu0
        %v842 = vrcp.pop %v768
        %v843 = vmul.f32 %v839, %v842
        %844 = vrot.lane.b32.xlu0 %v678, 120
        %v845 = vpop.permute.xlu0 %844
        %846 = vrot.lane.b32.xlu0 %v681, 120
        %v847 = vpop.permute.xlu0 %846
        %v848 = vsel %vm683, %v845, 0
        %v850 = vsel %vm683, %v847, 0
        %852 = vmatprep.subr.mxu0 0.0
        %853 = vmatpush1.xpose.msra.mxu0 %v850
        %854 = vmatprep.subr.mxu0 0.0
        %855 = vmatpush1.xpose.msra.mxu0 0.0
        %856 = vmatprep.subr.mxu0 0.0
        %857 = vmatpush1.xpose.msra.mxu0 0.0
        %858 = vmatprep.subr.mxu0 0.0
        %859 = vmatpush1.xpose.msra.mxu0 0.0
        %860 = vmatprep.subr.mxu0 0.0
        %861 = vmatpush1.xpose.msra.mxu0 0.0
        %862 = vmatprep.subr.mxu0 0.0
        %863 = vmatpush1.xpose.msra.mxu0 0.0
        %864 = vmatprep.subr.mxu0 0.0
        %865 = vmatpush1.xpose.msra.mxu0 0.0
        %866 = vmatprep.subr.mxu0 0.0
        %867 = vmatpush1.xpose.msra.mxu0 0.0
        %868 = vmatprep.subr.mxu0 0.0
        %869 = vmatpush1.xpose.msra.mxu0 0.0
        %870 = vmatprep.subr.mxu0 0.0
        %871 = vmatpush1.xpose.msra.mxu0 0.0
        %872 = vmatprep.subr.mxu0 0.0
        %873 = vmatpush1.xpose.msra.mxu0 0.0
        %874 = vmatprep.subr.mxu0 0.0
        %875 = vmatpush1.xpose.msra.mxu0 0.0
        %876 = vmatprep.subr.mxu0 0.0
        %877 = vmatpush1.xpose.msra.mxu0 0.0
        %878 = vmatprep.subr.mxu0 0.0
        %879 = vmatpush1.xpose.msra.mxu0 0.0
        %880 = vmatprep.subr.mxu0 0.0
        %881 = vmatpush1.xpose.msra.mxu0 0.0
        %882 = vmatprep.subr.mxu0 0.0
        %883 = vmatpush1.xpose.msra.mxu0 0.0
        %884 = vmatprep.subr.mxu0 0.0
        %885 = vmatpush1.xpose.msra.mxu0 0.0
        %886 = vmatprep.subr.mxu0 0.0
        %887 = vmatpush1.xpose.msra.mxu0 0.0
        %888 = vmatprep.subr.mxu0 0.0
        %889 = vmatpush1.xpose.msra.mxu0 0.0
        %890 = vmatprep.subr.mxu0 0.0
        %891 = vmatpush1.xpose.msra.mxu0 0.0
        %892 = vmatprep.subr.mxu0 0.0
        %893 = vmatpush1.xpose.msra.mxu0 0.0
        %894 = vmatprep.subr.mxu0 0.0
        %895 = vmatpush1.xpose.msra.mxu0 0.0
        %896 = vmatprep.subr.mxu0 0.0
        %897 = vmatpush1.xpose.msra.mxu0 0.0
        %898 = vmatprep.subr.mxu0 0.0
        %899 = vmatpush1.xpose.msra.mxu0 0.0
        %900 = vmatprep.subr.mxu0 0.0
        %901 = vmatpush1.xpose.msra.mxu0 0.0
        %902 = vmatprep.subr.mxu0 0.0
        %903 = vmatpush1.xpose.msra.mxu0 0.0
        %904 = vmatprep.subr.mxu0 0.0
        %905 = vmatpush1.xpose.msra.mxu0 0.0
        %906 = vmatprep.subr.mxu0 0.0
        %907 = vmatpush1.xpose.msra.mxu0 0.0
        %908 = vmatprep.subr.mxu0 0.0
        %909 = vmatpush1.xpose.msra.mxu0 0.0
        %910 = vmatprep.subr.mxu0 0.0
        %911 = vmatpush1.xpose.msra.mxu0 0.0
        %912 = vmatprep.subr.mxu0 0.0
        %913 = vmatpush1.xpose.msra.mxu0 0.0
        %914 = vmatprep.subr.mxu0 0.0
        %915 = vmatpush1.xpose.msra.mxu0 0.0
        %916 = vmatprep.mubr.f32.mxu0 0.0
        %917 = vmatmul.mubr.f32.gmra.mrb[0].mxu0 %v848
        %v918 = vpop.f32.mrb[0].mxu0
        %v919 = vadd.f32 0.0, %v918
        %v920 = vpop.f32.mrb[0].mxu0
        %921 = vdwg.mxu0
        %v922 = vsel %vm683, %v919, -inf
        %923 = vmax.xlane.f32.xlu0 %v922
        %v924 = vpop.xlane.xlu0 %923
        %v925 = vsub.f32 %v919, %v924
        %v926 = vmul.f32 %v925, 1.442695
        %v927 = vpow.pop %v926
        %v928 = vsel %vm683, %v927, 0.0
        %929 = vadd.xlane.f32.xlu0 %v928
        %v930 = vpop.xlane.xlu0 %929
        %932 = vrot.lane.b32.xlu0 %v682, 120
        %v933 = vpop.permute.xlu0 %932
        %v936 = vsel %vm683, %v927, 0
        %938 = vmatprep.subr.mxu0 0.0
        %939 = vmatpush1.msra.mxu0 %v933
        %940 = vmatprep.subr.mxu0 0.0
        %941 = vmatpush1.msra.mxu0 0.0
        %942 = vmatprep.subr.mxu0 0.0
        %943 = vmatpush1.msra.mxu0 0.0
        %944 = vmatprep.subr.mxu0 0.0
        %945 = vmatpush1.msra.mxu0 0.0
        %946 = vmatprep.subr.mxu0 0.0
        %947 = vmatpush1.msra.mxu0 0.0
        %948 = vmatprep.subr.mxu0 0.0
        %949 = vmatpush1.msra.mxu0 0.0
        %950 = vmatprep.subr.mxu0 0.0
        %951 = vmatpush1.msra.mxu0 0.0
        %952 = vmatprep.subr.mxu0 0.0
        %953 = vmatpush1.msra.mxu0 0.0
        %954 = vmatprep.subr.mxu0 0.0
        %955 = vmatpush1.msra.mxu0 0.0
        %956 = vmatprep.subr.mxu0 0.0
        %957 = vmatpush1.msra.mxu0 0.0
        %958 = vmatprep.subr.mxu0 0.0
        %959 = vmatpush1.msra.mxu0 0.0
        %960 = vmatprep.subr.mxu0 0.0
        %961 = vmatpush1.msra.mxu0 0.0
        %962 = vmatprep.subr.mxu0 0.0
        %963 = vmatpush1.msra.mxu0 0.0
        %964 = vmatprep.subr.mxu0 0.0
        %965 = vmatpush1.msra.mxu0 0.0
        %966 = vmatprep.subr.mxu0 0.0
        %967 = vmatpush1.msra.mxu0 0.0
        %968 = vmatprep.subr.mxu0 0.0
        %969 = vmatpush1.msra.mxu0 0.0
        %970 = vmatprep.subr.mxu0 0.0
        %971 = vmatpush1.msra.mxu0 0.0
        %972 = vmatprep.subr.mxu0 0.0
        %973 = vmatpush1.msra.mxu0 0.0
        %974 = vmatprep.subr.mxu0 0.0
        %975 = vmatpush1.msra.mxu0 0.0
        %976 = vmatprep.subr.mxu0 0.0
        %977 = vmatpush1.msra.mxu0 0.0
        %978 = vmatprep.subr.mxu0 0.0
        %979 = vmatpush1.msra.mxu0 0.0
        %980 = vmatprep.subr.mxu0 0.0
        %981 = vmatpush1.msra.mxu0 0.0
        %982 = vmatprep.subr.mxu0 0.0
        %983 = vmatpush1.msra.mxu0 0.0
        %984 = vmatprep.subr.mxu0 0.0
        %985 = vmatpush1.msra.mxu0 0.0
        %986 = vmatprep.subr.mxu0 0.0
        %987 = vmatpush1.msra.mxu0 0.0
        %988 = vmatprep.subr.mxu0 0.0
        %989 = vmatpush1.msra.mxu0 0.0
        %990 = vmatprep.subr.mxu0 0.0
        %991 = vmatpush1.msra.mxu0 0.0
        %992 = vmatprep.subr.mxu0 0.0
        %993 = vmatpush1.msra.mxu0 0.0
        %994 = vmatprep.subr.mxu0 0.0
        %995 = vmatpush1.msra.mxu0 0.0
        %996 = vmatprep.subr.mxu0 0.0
        %997 = vmatpush1.msra.mxu0 0.0
        %998 = vmatprep.subr.mxu0 0.0
        %999 = vmatpush1.msra.mxu0 0.0
        %1000 = vmatprep.subr.mxu0 0.0
        %1001 = vmatpush1.msra.mxu0 0.0
        %1002 = vmatprep.mubr.f32.mxu0 0.0
        %1003 = vmatmul.mubr.f32.gmra.mrb[0].mxu0 %v936
        %v1004 = vpop.f32.mrb[0].mxu0
        %v1005 = vadd.f32 0.0, %v1004
        %v1006 = vpop.f32.mrb[0].mxu0
        %1007 = vdwg.mxu0
        %v1008 = vrcp.pop %v930
        %v1009 = vmul.f32 %v1005, %v1008
        %1010 = vrot.lane.b32.xlu0 %v678, 112
        %v1011 = vpop.permute.xlu0 %1010
        %1012 = vrot.lane.b32.xlu0 %v681, 112
        %v1013 = vpop.permute.xlu0 %1012
        %v1014 = vsel %vm683, %v1011, 0
        %v1016 = vsel %vm683, %v1013, 0
        %1018 = vmatprep.subr.mxu0 0.0
        %1019 = vmatpush1.xpose.msra.mxu0 %v1016
        %1020 = vmatprep.subr.mxu0 0.0
        %1021 = vmatpush1.xpose.msra.mxu0 0.0
        %1022 = vmatprep.subr.mxu0 0.0
        %1023 = vmatpush1.xpose.msra.mxu0 0.0
        %1024 = vmatprep.subr.mxu0 0.0
        %1025 = vmatpush1.xpose.msra.mxu0 0.0
        %1026 = vmatprep.subr.mxu0 0.0
        %1027 = vmatpush1.xpose.msra.mxu0 0.0
        %1028 = vmatprep.subr.mxu0 0.0
        %1029 = vmatpush1.xpose.msra.mxu0 0.0
        %1030 = vmatprep.subr.mxu0 0.0
        %1031 = vmatpush1.xpose.msra.mxu0 0.0
        %1032 = vmatprep.subr.mxu0 0.0
        %1033 = vmatpush1.xpose.msra.mxu0 0.0
        %1034 = vmatprep.subr.mxu0 0.0
        %1035 = vmatpush1.xpose.msra.mxu0 0.0
        %1036 = vmatprep.subr.mxu0 0.0
        %1037 = vmatpush1.xpose.msra.mxu0 0.0
        %1038 = vmatprep.subr.mxu0 0.0
        %1039 = vmatpush1.xpose.msra.mxu0 0.0
        %1040 = vmatprep.subr.mxu0 0.0
        %1041 = vmatpush1.xpose.msra.mxu0 0.0
        %1042 = vmatprep.subr.mxu0 0.0
        %1043 = vmatpush1.xpose.msra.mxu0 0.0
        %1044 = vmatprep.subr.mxu0 0.0
        %1045 = vmatpush1.xpose.msra.mxu0 0.0
        %1046 = vmatprep.subr.mxu0 0.0
        %1047 = vmatpush1.xpose.msra.mxu0 0.0
        %1048 = vmatprep.subr.mxu0 0.0
        %1049 = vmatpush1.xpose.msra.mxu0 0.0
        %1050 = vmatprep.subr.mxu0 0.0
        %1051 = vmatpush1.xpose.msra.mxu0 0.0
        %1052 = vmatprep.subr.mxu0 0.0
        %1053 = vmatpush1.xpose.msra.mxu0 0.0
        %1054 = vmatprep.subr.mxu0 0.0
        %1055 = vmatpush1.xpose.msra.mxu0 0.0
        %1056 = vmatprep.subr.mxu0 0.0
        %1057 = vmatpush1.xpose.msra.mxu0 0.0
        %1058 = vmatprep.subr.mxu0 0.0
        %1059 = vmatpush1.xpose.msra.mxu0 0.0
        %1060 = vmatprep.subr.mxu0 0.0
        %1061 = vmatpush1.xpose.msra.mxu0 0.0
        %1062 = vmatprep.subr.mxu0 0.0
        %1063 = vmatpush1.xpose.msra.mxu0 0.0
        %1064 = vmatprep.subr.mxu0 0.0
        %1065 = vmatpush1.xpose.msra.mxu0 0.0
        %1066 = vmatprep.subr.mxu0 0.0
        %1067 = vmatpush1.xpose.msra.mxu0 0.0
        %1068 = vmatprep.subr.mxu0 0.0
        %1069 = vmatpush1.xpose.msra.mxu0 0.0
        %1070 = vmatprep.subr.mxu0 0.0
        %1071 = vmatpush1.xpose.msra.mxu0 0.0
        %1072 = vmatprep.subr.mxu0 0.0
        %1073 = vmatpush1.xpose.msra.mxu0 0.0
        %1074 = vmatprep.subr.mxu0 0.0
        %1075 = vmatpush1.xpose.msra.mxu0 0.0
        %1076 = vmatprep.subr.mxu0 0.0
        %1077 = vmatpush1.xpose.msra.mxu0 0.0
        %1078 = vmatprep.subr.mxu0 0.0
        %1079 = vmatpush1.xpose.msra.mxu0 0.0
        %1080 = vmatprep.subr.mxu0 0.0
        %1081 = vmatpush1.xpose.msra.mxu0 0.0
        %1082 = vmatprep.mubr.f32.mxu0 0.0
        %1083 = vmatmul.mubr.f32.gmra.mrb[0].mxu0 %v1014
        %v1084 = vpop.f32.mrb[0].mxu0
        %v1085 = vadd.f32 0.0, %v1084
        %v1086 = vpop.f32.mrb[0].mxu0
        %1087 = vdwg.mxu0
        %v1088 = vsel %vm683, %v1085, -inf
        %1089 = vmax.xlane.f32.xlu0 %v1088
        %v1090 = vpop.xlane.xlu0 %1089
        %v1091 = vsub.f32 %v1085, %v1090
        %v1092 = vmul.f32 %v1091, 1.442695
        %v1093 = vpow.pop %v1092
        %v1094 = vsel %vm683, %v1093, 0.0
        %1095 = vadd.xlane.f32.xlu0 %v1094
        %v1096 = vpop.xlane.xlu0 %1095
        %1097 = vrot.lane.b32.xlu0 %v682, 112
        %v1098 = vpop.permute.xlu0 %1097
        %v1101 = vsel %vm683, %v1093, 0
        %1103 = vmatprep.subr.mxu0 0.0
        %1104 = vmatpush1.msra.mxu0 %v1098
        %1105 = vmatprep.subr.mxu0 0.0
        %1106 = vmatpush1.msra.mxu0 0.0
        %1107 = vmatprep.subr.mxu0 0.0
        %1108 = vmatpush1.msra.mxu0 0.0
        %1109 = vmatprep.subr.mxu0 0.0
        %1110 = vmatpush1.msra.mxu0 0.0
        %1111 = vmatprep.subr.mxu0 0.0
        %1112 = vmatpush1.msra.mxu0 0.0
        %1113 = vmatprep.subr.mxu0 0.0
        %1114 = vmatpush1.msra.mxu0 0.0
        %1115 = vmatprep.subr.mxu0 0.0
        %1116 = vmatpush1.msra.mxu0 0.0
        %1117 = vmatprep.subr.mxu0 0.0
        %1118 = vmatpush1.msra.mxu0 0.0
        %1119 = vmatprep.subr.mxu0 0.0
        %1120 = vmatpush1.msra.mxu0 0.0
        %1121 = vmatprep.subr.mxu0 0.0
        %1122 = vmatpush1.msra.mxu0 0.0
        %1123 = vmatprep.subr.mxu0 0.0
        %1124 = vmatpush1.msra.mxu0 0.0
        %1125 = vmatprep.subr.mxu0 0.0
        %1126 = vmatpush1.msra.mxu0 0.0
        %1127 = vmatprep.subr.mxu0 0.0
        %1128 = vmatpush1.msra.mxu0 0.0
        %1129 = vmatprep.subr.mxu0 0.0
        %1130 = vmatpush1.msra.mxu0 0.0
        %1131 = vmatprep.subr.mxu0 0.0
        %1132 = vmatpush1.msra.mxu0 0.0
        %1133 = vmatprep.subr.mxu0 0.0
        %1134 = vmatpush1.msra.mxu0 0.0
        %1135 = vmatprep.subr.mxu0 0.0
        %1136 = vmatpush1.msra.mxu0 0.0
        %1137 = vmatprep.subr.mxu0 0.0
        %1138 = vmatpush1.msra.mxu0 0.0
        %1139 = vmatprep.subr.mxu0 0.0
        %1140 = vmatpush1.msra.mxu0 0.0
        %1141 = vmatprep.subr.mxu0 0.0
        %1142 = vmatpush1.msra.mxu0 0.0
        %1143 = vmatprep.subr.mxu0 0.0
        %1144 = vmatpush1.msra.mxu0 0.0
        %1145 = vmatprep.subr.mxu0 0.0
        %1146 = vmatpush1.msra.mxu0 0.0
        %1147 = vmatprep.subr.mxu0 0.0
        %1148 = vmatpush1.msra.mxu0 0.0
        %1149 = vmatprep.subr.mxu0 0.0
        %1150 = vmatpush1.msra.mxu0 0.0
        %1151 = vmatprep.subr.mxu0 0.0
        %1152 = vmatpush1.msra.mxu0 0.0
        %1153 = vmatprep.subr.mxu0 0.0
        %1154 = vmatpush1.msra.mxu0 0.0
        %1155 = vmatprep.subr.mxu0 0.0
        %1156 = vmatpush1.msra.mxu0 0.0
        %1157 = vmatprep.subr.mxu0 0.0
        %1158 = vmatpush1.msra.mxu0 0.0
        %1159 = vmatprep.subr.mxu0 0.0
        %1160 = vmatpush1.msra.mxu0 0.0
        %1161 = vmatprep.subr.mxu0 0.0
        %1162 = vmatpush1.msra.mxu0 0.0
        %1163 = vmatprep.subr.mxu0 0.0
        %1164 = vmatpush1.msra.mxu0 0.0
        %1165 = vmatprep.subr.mxu0 0.0
        %1166 = vmatpush1.msra.mxu0 0.0
        %1167 = vmatprep.mubr.f32.mxu0 0.0
        %1168 = vmatmul.mubr.f32.gmra.mrb[0].mxu0 %v1101
        %v1169 = vpop.f32.mrb[0].mxu0
        %v1170 = vadd.f32 0.0, %v1169
        %v1171 = vpop.f32.mrb[0].mxu0
        %1172 = vdwg.mxu0
        %v1173 = vrcp.pop %v1096
        %v1174 = vmul.f32 %v1170, %v1173
        %1175 = vrot.lane.b32.xlu0 %v678, 104
        %v1176 = vpop.permute.xlu0 %1175
        %1177 = vrot.lane.b32.xlu0 %v681, 104
        %v1178 = vpop.permute.xlu0 %1177
        %v1179 = vsel %vm683, %v1176, 0
        %v1181 = vsel %vm683, %v1178, 0
        %1183 = vmatprep.subr.mxu0 0.0
        %1184 = vmatpush1.xpose.msra.mxu0 %v1181
        %1185 = vmatprep.subr.mxu0 0.0
        %1186 = vmatpush1.xpose.msra.mxu0 0.0
        %1187 = vmatprep.subr.mxu0 0.0
        %1188 = vmatpush1.xpose.msra.mxu0 0.0
        %1189 = vmatprep.subr.mxu0 0.0
        %1190 = vmatpush1.xpose.msra.mxu0 0.0
        %1191 = vmatprep.subr.mxu0 0.0
        %1192 = vmatpush1.xpose.msra.mxu0 0.0
        %1193 = vmatprep.subr.mxu0 0.0
        %1194 = vmatpush1.xpose.msra.mxu0 0.0
        %1195 = vmatprep.subr.mxu0 0.0
        %1196 = vmatpush1.xpose.msra.mxu0 0.0
        %1197 = vmatprep.subr.mxu0 0.0
        %1198 = vmatpush1.xpose.msra.mxu0 0.0
        %1199 = vmatprep.subr.mxu0 0.0
        %1200 = vmatpush1.xpose.msra.mxu0 0.0
        %1201 = vmatprep.subr.mxu0 0.0
        %1202 = vmatpush1.xpose.msra.mxu0 0.0
        %1203 = vmatprep.subr.mxu0 0.0
        %1204 = vmatpush1.xpose.msra.mxu0 0.0
        %1205 = vmatprep.subr.mxu0 0.0
        %1206 = vmatpush1.xpose.msra.mxu0 0.0
        %1207 = vmatprep.subr.mxu0 0.0
        %1208 = vmatpush1.xpose.msra.mxu0 0.0
        %1209 = vmatprep.subr.mxu0 0.0
        %1210 = vmatpush1.xpose.msra.mxu0 0.0
        %1211 = vmatprep.subr.mxu0 0.0
        %1212 = vmatpush1.xpose.msra.mxu0 0.0
        %1213 = vmatprep.subr.mxu0 0.0
        %1214 = vmatpush1.xpose.msra.mxu0 0.0
        %1215 = vmatprep.subr.mxu0 0.0
        %1216 = vmatpush1.xpose.msra.mxu0 0.0
        %1217 = vmatprep.subr.mxu0 0.0
        %1218 = vmatpush1.xpose.msra.mxu0 0.0
        %1219 = vmatprep.subr.mxu0 0.0
        %1220 = vmatpush1.xpose.msra.mxu0 0.0
        %1221 = vmatprep.subr.mxu0 0.0
        %1222 = vmatpush1.xpose.msra.mxu0 0.0
        %1223 = vmatprep.subr.mxu0 0.0
        %1224 = vmatpush1.xpose.msra.mxu0 0.0
        %1225 = vmatprep.subr.mxu0 0.0
        %1226 = vmatpush1.xpose.msra.mxu0 0.0
        %1227 = vmatprep.subr.mxu0 0.0
        %1228 = vmatpush1.xpose.msra.mxu0 0.0
        %1229 = vmatprep.subr.mxu0 0.0
        %1230 = vmatpush1.xpose.msra.mxu0 0.0
        %1231 = vmatprep.subr.mxu0 0.0
        %1232 = vmatpush1.xpose.msra.mxu0 0.0
        %1233 = vmatprep.subr.mxu0 0.0
        %1234 = vmatpush1.xpose.msra.mxu0 0.0
        %1235 = vmatprep.subr.mxu0 0.0
        %1236 = vmatpush1.xpose.msra.mxu0 0.0
        %1237 = vmatprep.subr.mxu0 0.0
        %1238 = vmatpush1.xpose.msra.mxu0 0.0
        %1239 = vmatprep.subr.mxu0 0.0
        %1240 = vmatpush1.xpose.msra.mxu0 0.0
        %1241 = vmatprep.subr.mxu0 0.0
        %1242 = vmatpush1.xpose.msra.mxu0 0.0
        %1243 = vmatprep.subr.mxu0 0.0
        %1244 = vmatpush1.xpose.msra.mxu0 0.0
        %1245 = vmatprep.subr.mxu0 0.0
        %1246 = vmatpush1.xpose.msra.mxu0 0.0
        %1247 = vmatprep.mubr.f32.mxu0 0.0
        %1248 = vmatmul.mubr.f32.gmra.mrb[0].mxu0 %v1179
        %v1249 = vpop.f32.mrb[0].mxu0
        %v1250 = vadd.f32 0.0, %v1249
        %v1251 = vpop.f32.mrb[0].mxu0
        %1252 = vdwg.mxu0
        %v1253 = vsel %vm683, %v1250, -inf
        %1254 = vmax.xlane.f32.xlu0 %v1253
        %v1255 = vpop.xlane.xlu0 %1254
        %v1256 = vsub.f32 %v1250, %v1255
        %v1257 = vmul.f32 %v1256, 1.442695
        %v1258 = vpow.pop %v1257
        %v1259 = vsel %vm683, %v1258, 0.0
        %1260 = vadd.xlane.f32.xlu0 %v1259
        %v1261 = vpop.xlane.xlu0 %1260
        %1262 = vrot.lane.b32.xlu0 %v682, 104
        %v1263 = vpop.permute.xlu0 %1262
        %v1266 = vsel %vm683, %v1258, 0
        %1268 = vmatprep.subr.mxu0 0.0
        %1269 = vmatpush1.msra.mxu0 %v1263
        %1270 = vmatprep.subr.mxu0 0.0
        %1271 = vmatpush1.msra.mxu0 0.0
        %1272 = vmatprep.subr.mxu0 0.0
        %1273 = vmatpush1.msra.mxu0 0.0
        %1274 = vmatprep.subr.mxu0 0.0
        %1275 = vmatpush1.msra.mxu0 0.0
        %1276 = vmatprep.subr.mxu0 0.0
        %1277 = vmatpush1.msra.mxu0 0.0
        %1278 = vmatprep.subr.mxu0 0.0
        %1279 = vmatpush1.msra.mxu0 0.0
        %1280 = vmatprep.subr.mxu0 0.0
        %1281 = vmatpush1.msra.mxu0 0.0
        %1282 = vmatprep.subr.mxu0 0.0
        %1283 = vmatpush1.msra.mxu0 0.0
        %1284 = vmatprep.subr.mxu0 0.0
        %1285 = vmatpush1.msra.mxu0 0.0
        %1286 = vmatprep.subr.mxu0 0.0
        %1287 = vmatpush1.msra.mxu0 0.0
        %1288 = vmatprep.subr.mxu0 0.0
        %1289 = vmatpush1.msra.mxu0 0.0
        %1290 = vmatprep.subr.mxu0 0.0
        %1291 = vmatpush1.msra.mxu0 0.0
        %1292 = vmatprep.subr.mxu0 0.0
        %1293 = vmatpush1.msra.mxu0 0.0
        %1294 = vmatprep.subr.mxu0 0.0
        %1295 = vmatpush1.msra.mxu0 0.0
        %1296 = vmatprep.subr.mxu0 0.0
        %1297 = vmatpush1.msra.mxu0 0.0
        %1298 = vmatprep.subr.mxu0 0.0
        %1299 = vmatpush1.msra.mxu0 0.0
        %1300 = vmatprep.subr.mxu0 0.0
        %1301 = vmatpush1.msra.mxu0 0.0
        %1302 = vmatprep.subr.mxu0 0.0
        %1303 = vmatpush1.msra.mxu0 0.0
        %1304 = vmatprep.subr.mxu0 0.0
        %1305 = vmatpush1.msra.mxu0 0.0
        %1306 = vmatprep.subr.mxu0 0.0
        %1307 = vmatpush1.msra.mxu0 0.0
        %1308 = vmatprep.subr.mxu0 0.0
        %1309 = vmatpush1.msra.mxu0 0.0
        %1310 = vmatprep.subr.mxu0 0.0
        %1311 = vmatpush1.msra.mxu0 0.0
        %1312 = vmatprep.subr.mxu0 0.0
        %1313 = vmatpush1.msra.mxu0 0.0
        %1314 = vmatprep.subr.mxu0 0.0
        %1315 = vmatpush1.msra.mxu0 0.0
        %1316 = vmatprep.subr.mxu0 0.0
        %1317 = vmatpush1.msra.mxu0 0.0
        %1318 = vmatprep.subr.mxu0 0.0
        %1319 = vmatpush1.msra.mxu0 0.0
        %1320 = vmatprep.subr.mxu0 0.0
        %1321 = vmatpush1.msra.mxu0 0.0
        %1322 = vmatprep.subr.mxu0 0.0
        %1323 = vmatpush1.msra.mxu0 0.0
        %1324 = vmatprep.subr.mxu0 0.0
        %1325 = vmatpush1.msra.mxu0 0.0
        %1326 = vmatprep.subr.mxu0 0.0
        %1327 = vmatpush1.msra.mxu0 0.0
        %1328 = vmatprep.subr.mxu0 0.0
        %1329 = vmatpush1.msra.mxu0 0.0
        %1330 = vmatprep.subr.mxu0 0.0
        %1331 = vmatpush1.msra.mxu0 0.0
        %1332 = vmatprep.mubr.f32.mxu0 0.0
        %1333 = vmatmul.mubr.f32.gmra.mrb[0].mxu0 %v1266
        %v1334 = vpop.f32.mrb[0].mxu0
        %v1335 = vadd.f32 0.0, %v1334
        %v1336 = vpop.f32.mrb[0].mxu0
        %1337 = vdwg.mxu0
        %v1338 = vrcp.pop %v1261
        %v1339 = vmul.f32 %v1335, %v1338
        %1341 = vrot.lane.b32.xlu0 %v1009, 8
        %v1342 = vpop.permute.xlu0 %1341
        %1345 = vrot.lane.b32.xlu0 %v1174, 16
        %v1346 = vpop.permute.xlu0 %1345
        %1349 = vrot.lane.b32.xlu0 %v1339, 24
        %v1350 = vpop.permute.xlu0 %1349
        %v1352 = vsel %vm683, %v843, %v1342
        %vm1353 = vcmask 130048
        %v1354 = vsel %vm1353, %v1352, %v1346
        %vm1355 = vcmask 195584
        %v1356 = vsel %vm1355, %v1354, %v1350
        %v1357 = vld [vmem:[#allocation12] sm:$0xff]
        %v1358 = vld [vmem:[#allocation12 + $0x8] sm:$0xff]
        %v1359 = vld [vmem:[#allocation12 + $0x10] sm:$0xff]
        %v1360 = vld [vmem:[#allocation12 + $0x18] sm:$0xff]
        %v1361 = vld [vmem:[%s8] sm:$0x1]
        %v1363 = vlaneseq
        %v1364 = vshrl.u32 %v1363, 7
        %v1365 = vsub.s32 0, %v1364
        %v1366 = vrot.slane %v1361, %v1365
        %v1369 = vsel %vm607, %v1356, 0
        %1371 = vmatprep.subr.mxu0 0.0
        %1372 = vmatpush1.msra.mxu0 %v1357
        %1373 = vmatprep.subr.mxu0 0.0
        %1374 = vmatpush1.msra.mxu0 %v1358
        %1375 = vmatprep.subr.mxu0 0.0
        %1376 = vmatpush1.msra.mxu0 %v1359
        %1377 = vmatprep.subr.mxu0 0.0
        %1378 = vmatpush1.msra.mxu0 %v1360
        %1379 = vmatprep.subr.mxu0 0.0
        %1380 = vmatpush1.msra.mxu0 0.0
        %1381 = vmatprep.subr.mxu0 0.0
        %1382 = vmatpush1.msra.mxu0 0.0
        %1383 = vmatprep.subr.mxu0 0.0
        %1384 = vmatpush1.msra.mxu0 0.0
        %1385 = vmatprep.subr.mxu0 0.0
        %1386 = vmatpush1.msra.mxu0 0.0
        %1387 = vmatprep.subr.mxu0 0.0
        %1388 = vmatpush1.msra.mxu0 0.0
        %1389 = vmatprep.subr.mxu0 0.0
        %1390 = vmatpush1.msra.mxu0 0.0
        %1391 = vmatprep.subr.mxu0 0.0
        %1392 = vmatpush1.msra.mxu0 0.0
        %1393 = vmatprep.subr.mxu0 0.0
        %1394 = vmatpush1.msra.mxu0 0.0
        %1395 = vmatprep.subr.mxu0 0.0
        %1396 = vmatpush1.msra.mxu0 0.0
        %1397 = vmatprep.subr.mxu0 0.0
        %1398 = vmatpush1.msra.mxu0 0.0
        %1399 = vmatprep.subr.mxu0 0.0
        %1400 = vmatpush1.msra.mxu0 0.0
        %1401 = vmatprep.subr.mxu0 0.0
        %1402 = vmatpush1.msra.mxu0 0.0
        %1403 = vmatprep.subr.mxu0 0.0
        %1404 = vmatpush1.msra.mxu0 0.0
        %1405 = vmatprep.subr.mxu0 0.0
        %1406 = vmatpush1.msra.mxu0 0.0
        %1407 = vmatprep.subr.mxu0 0.0
        %1408 = vmatpush1.msra.mxu0 0.0
        %1409 = vmatprep.subr.mxu0 0.0
        %1410 = vmatpush1.msra.mxu0 0.0
        %1411 = vmatprep.subr.mxu0 0.0
        %1412 = vmatpush1.msra.mxu0 0.0
        %1413 = vmatprep.subr.mxu0 0.0
        %1414 = vmatpush1.msra.mxu0 0.0
        %1415 = vmatprep.subr.mxu0 0.0
        %1416 = vmatpush1.msra.mxu0 0.0
        %1417 = vmatprep.subr.mxu0 0.0
        %1418 = vmatpush1.msra.mxu0 0.0
        %1419 = vmatprep.subr.mxu0 0.0
        %1420 = vmatpush1.msra.mxu0 0.0
        %1421 = vmatprep.subr.mxu0 0.0
        %1422 = vmatpush1.msra.mxu0 0.0
        %1423 = vmatprep.subr.mxu0 0.0
        %1424 = vmatpush1.msra.mxu0 0.0
        %1425 = vmatprep.subr.mxu0 0.0
        %1426 = vmatpush1.msra.mxu0 0.0
        %1427 = vmatprep.subr.mxu0 0.0
        %1428 = vmatpush1.msra.mxu0 0.0
        %1429 = vmatprep.subr.mxu0 0.0
        %1430 = vmatpush1.msra.mxu0 0.0
        %1431 = vmatprep.subr.mxu0 0.0
        %1432 = vmatpush1.msra.mxu0 0.0
        %1433 = vmatprep.subr.mxu0 0.0
        %1434 = vmatpush1.msra.mxu0 0.0
        %1435 = vmatprep.mubr.f32.mxu0 0.0
        %1436 = vmatmul.mubr.f32.gmra.mrb[0].mxu0 %v1369
        %v1437 = vpop.f32.mrb[0].mxu0
        %v1438 = vadd.f32 %v1366, %v1437
        %v1439 = vpop.f32.mrb[0].mxu0
        %1440 = vdwg.mxu0
        %1441 = vst.msk [vmem:[%s419] sm:$0xff] %vm607, %v1438
        %s1442 = sand.u32 %s244, 1
        %s1443 = scalar_lea.sflag [#allocation6], %s1442
        %s1444 = sand.u32 %s244, 1
        %s1445 = smul.addr %s1444, 8
        %s1446 = scalar_lea.vmem [#allocation13], %s1445
        // Predicated region
        $region81: #{tpu_custom_call.1} parent=55 // pred_check
          %p1447 = pneg %p254
        $region82: #{tpu_custom_call.1} parent=55 // pred_check_branch
          %1449 = sbr.rel (%p1447) target = $region84
        $region83: #{tpu_custom_call.1} parent=55 // pred_region
          %s1451 = ssub.s32 128, 128
          %1452 = vsyncadd %s1443, %s1451
          %s1453 = sadd.s32 %s33, %s32
          %s1454 = smul.addr %s1453, 128
          %s1455 = scalar_lea.hbm %s9, %s1454
          %s1457 = sshll.u32 %s1446, 4
          %s1458 = int_to_ptr.vmem [resolvable:$true] %s1457
          %1460 = dma.vmem_to_hbm [thread:$0]  %s1458, 128, %s1455, %s1443
        $region84: #{tpu_custom_call.1} parent=55 // pred_fallthru
          _
      $region56: #{tpu_custom_call.1} parent=5 // pred_fallthru
        _
      %p1461 = scmp.le.s32.totalorder 2, %s23
      // Predicated region
      $region85: #{tpu_custom_call.1} parent=5 // pred_check
        %p1462 = pneg %p1461
      $region86: #{tpu_custom_call.1} parent=5 // pred_check_branch
        %1464 = sbr.rel (%p1462) target = $region88
      $region87: #{tpu_custom_call.1} parent=5 // pred_region
        %s1465 = ssub.s32 %s23, 2
        // Predicated region
        $region89: #{tpu_custom_call.1} parent=87 // pred_check
          %p1466 = pneg %p260
        $region90: #{tpu_custom_call.1} parent=87 // pred_check_branch
          %1468 = sbr.rel (%p1466) target = $region92
        $region91: #{tpu_custom_call.1} parent=87 // pred_region
          %s1469 = sand.u32 %s245, 1
          %s1470 = scalar_lea.sflag [#allocation6], %s1469
          %s1471 = sand.u32 %s245, 1
          %s1472 = smul.addr %s1471, 8
          %s1473 = scalar_lea.vmem [#allocation13], %s1472
          %1474 = dma.done %s1470, 128
        $region92: #{tpu_custom_call.1} parent=87 // pred_fallthru
          _
      $region88: #{tpu_custom_call.1} parent=5 // pred_fallthru
        _
    $region6: #{tpu_custom_call.1} parent=1 // loop_footer
      %s27 = sadd.s32 1, %s23
    $region7: #{tpu_custom_call.1} parent=1 // loop_footer_branch
      %22 = sbr.rel target = $region3
    $region8: #{tpu_custom_call.1} parent=1 // loop_exit
      _
    %1475 = vsyncpa [#allocation5], 1
    %s1476 = scalar_lea.sflag [#allocation5], 1
    %1477 = vsyncpa %s1476, 1
    %1478 = vsyncpa [#allocation8], 1
    %1479 = vsyncpa [#allocation11], 1
    %1480 = vsyncpa [#allocation6], 1
    %s1481 = scalar_lea.sflag [#allocation6], 1
    %1482 = vsyncpa %s1481, 1

</llo_original>
